<compile_context>
chip_gen: v7x
topology: tpu7x:2x2x1
jax: 0.10.0
libtpu: 0.0.40
codegen_flags: <defaults>
</compile_context>

<pallas_src>
import jax
import jax.numpy as jnp
from jax import lax
from jax.experimental import pallas as pl
from jax.experimental.pallas import tpu as pltpu


# ------------------------------ fused kernel -------------------------------

def _convnet_kernel(xr_ref, w1m_ref, b1r_ref, w2m_ref, b2r_ref,
                    wf1_ref, bf1_ref, wf2_ref, bf2_ref, wf3_ref, bf3_ref,
                    out_ref):
    f32 = jnp.float32

    def even_rows(m, n):
        # 0/1 selection matrix S with S[i, 2*i] = 1 (row-pool compaction on MXU).
        r = lax.broadcasted_iota(jnp.int32, (m, n), 0)
        c = lax.broadcasted_iota(jnp.int32, (m, n), 1)
        return jnp.where(c == 2 * r, 1.0, 0.0).astype(f32)

    def conv_relu_pool(act, wm_ref, brow_ref, out_h, out_hh):
        # act: [rows, 128], columns = (channel, width) zero-padded to 128 lanes.
        # wm_ref: [5, 128, 256] banded weights, columns = (parity, c_out, w_out/2)
        # padded to 2 x 128 lanes. Returns pooled activation [out_hh, 128].
        acc = jnp.dot(act[0:out_h, :], wm_ref[0], preferred_element_type=f32)
        for kh in range(1, 5):
            acc = acc + jnp.dot(act[kh:kh + out_h, :], wm_ref[kh],
                                preferred_element_type=f32)
        acc = jnp.maximum(acc + brow_ref[...], 0.0)           # bias + ReLU
        # width pool: max of the two lane-aligned parity column blocks
        h = jnp.maximum(acc[:, :128], acc[:, 128:])           # [out_h, 128]
        # height pool: max of adjacent rows, keep even rows via 0/1 matmul
        g = jnp.maximum(h[0:out_h - 1, :], h[1:out_h, :])     # [out_h-1, 128]
        s = even_rows(out_hh, out_h - 1)
        return jnp.dot(s, g, preferred_element_type=f32)      # [out_hh, 128]

    x = xr_ref[0]                                             # [32, 128]
    x2 = conv_relu_pool(x, w1m_ref, b1r_ref, 28, 14)          # conv1 stage
    x3 = conv_relu_pool(x2, w2m_ref, b2r_ref, 10, 5)          # conv2 stage

    # fc1: contraction over (row, channel*width) as 5 accumulated matmuls.
    z = jnp.dot(x3[0:1, :], wf1_ref[0], preferred_element_type=f32)
    for h in range(1, 5):
        z = z + jnp.dot(x3[h:h + 1, :], wf1_ref[h], preferred_element_type=f32)
    z = jnp.maximum(z + bf1_ref[...], 0.0)                    # [1, 128]
    z = jnp.maximum(jnp.dot(z, wf2_ref[...], preferred_element_type=f32)
                    + bf2_ref[...], 0.0)                      # [1, 128]
    z = jnp.dot(z, wf3_ref[...], preferred_element_type=f32) + bf3_ref[...]
    out_ref[0] = z                                            # padded logits [1,128]


# --------------------------- weight preparation -----------------------------
# Done ONCE (outside the per-step forward). Plain JAX on tiny arrays.

def _conv_band_matrix(w, w_in, out_w, row_pad=128, col_block=128):
    # Build M[kh, c*w_in + i, parity*128 + o*(out_w//2) + ow'] =
    #   w[o, c, kh, i - (2*ow'+parity)]  (0 where the tap falls outside [0,K)).
    O, C, K, _ = w.shape
    owh = out_w // 2
    i = jnp.arange(w_in)
    par = jnp.arange(2)
    owp = jnp.arange(owh)
    ow_full = 2 * owp[None, :] + par[:, None]                 # [2, owh]
    kw = i[:, None, None] - ow_full[None, :, :]               # [w_in, 2, owh]
    valid = (kw >= 0) & (kw < K)
    kwc = jnp.clip(kw, 0, K - 1)
    wt = jnp.transpose(w, (2, 1, 0, 3))                       # [kh, c, o, kw]
    g = wt[:, :, :, kwc]                                      # [kh, c, o, w_in, 2, owh]
    g = jnp.where(valid[None, None, None], g, 0.0)
    g = jnp.transpose(g, (0, 1, 3, 4, 2, 5))                  # [kh, c, i, p, o, ow']
    m = g.reshape(K, C * w_in, 2, O * owh)
    m = jnp.pad(m, ((0, 0), (0, row_pad - C * w_in), (0, 0),
                    (0, col_block - O * owh)))
    return m.reshape(K, row_pad, 2 * col_block)               # [K, 128, 256]


def _conv_band_bias(b, out_w, col_block=128):
    owh = out_w // 2
    v = jnp.repeat(b, owh)                                    # (o, ow') order
    v = jnp.pad(v, (0, col_block - v.shape[0]))
    return jnp.tile(v, 2)[None, :]                            # [1, 256]


def prepare_params(p):
    wf1 = p['fw1'].reshape(120, 16, 5, 5).transpose(2, 1, 3, 0).reshape(5, 80, 120)
    return dict(
        w1m=_conv_band_matrix(p['w1'], w_in=32, out_w=28),    # [5, 128, 256]
        b1r=_conv_band_bias(p['b1'], out_w=28),               # [1, 256]
        w2m=_conv_band_matrix(p['w2'], w_in=14, out_w=10),    # [5, 128, 256]
        b2r=_conv_band_bias(p['b2'], out_w=10),               # [1, 256]
        wf1=jnp.pad(wf1, ((0, 0), (0, 48), (0, 8))),          # [5, 128, 128]
        bf1=jnp.pad(p['fb1'], (0, 8))[None, :],               # [1, 128]
        wf2=jnp.pad(p['fw2'].T, ((0, 8), (0, 44))),           # [128, 128]
        bf2=jnp.pad(p['fb2'], (0, 44))[None, :],              # [1, 128]
        wf3=jnp.pad(p['fw3'].T, ((0, 44), (0, 118))),         # [128, 128]
        bf3=jnp.pad(p['fb3'], (0, 118))[None, :],             # [1, 128]
    )


# ------------------------------ forward pass --------------------------------

@jax.jit
def convnet_forward(x, kp):
    B, C, H, W = x.shape                                      # (B, 3, 32, 32)
    # rows = image rows, lanes = (channel, width), zero-padded to 128 lanes.
    xr = jnp.transpose(x, (0, 2, 1, 3)).reshape(B, H, C * W)
    xr = jnp.pad(xr, ((0, 0), (0, 0), (0, 128 - C * W)))

    const3 = lambda b: (0, 0, 0)
    const2 = lambda b: (0, 0)
    out = pl.pallas_call(
        _convnet_kernel,
        out_shape=jax.ShapeDtypeStruct((B, 1, 128), jnp.float32),
        grid=(B,),
        in_specs=[
            pl.BlockSpec((1, H, 128), lambda b: (b, 0, 0)),   # input image rows
            pl.BlockSpec((5, 128, 256), const3),              # conv1 banded W
            pl.BlockSpec((1, 256), const2),                   # conv1 bias row
            pl.BlockSpec((5, 128, 256), const3),              # conv2 banded W
            pl.BlockSpec((1, 256), const2),                   # conv2 bias row
            pl.BlockSpec((5, 128, 128), const3),              # fc1 weight slabs
            pl.BlockSpec((1, 128), const2),                   # fc1 bias
            pl.BlockSpec((128, 128), const2),                 # fc2 weight
            pl.BlockSpec((1, 128), const2),                   # fc2 bias
            pl.BlockSpec((128, 128), const2),                 # fc3 weight
            pl.BlockSpec((1, 128), const2),                   # fc3 bias
        ],
        out_specs=pl.BlockSpec((1, 1, 128), lambda b: (b, 0, 0)),
        compiler_params=pltpu.CompilerParams(
            dimension_semantics=("parallel",)),
    )(xr, kp['w1m'], kp['b1r'], kp['w2m'], kp['b2r'],
      kp['wf1'], kp['bf1'], kp['wf2'], kp['bf2'], kp['wf3'], kp['bf3'])
    return out[:, 0, :10]


# ------------------------------- reference ----------------------------------

def init_params(key):
    # Deterministic PyTorch-style uniform(-1/sqrt(fan_in), 1/sqrt(fan_in)) init.
    def u(k, shape, fan_in):
        bound = 1.0 / jnp.sqrt(jnp.float32(fan_in))
        return jax.random.uniform(k, shape, jnp.float32, -bound, bound)

    ks = jax.random.split(key, 10)
    return dict(
        w1=u(ks[0], (6, 3, 5, 5), 3 * 25),   b1=u(ks[1], (6,), 3 * 25),
        w2=u(ks[2], (16, 6, 5, 5), 6 * 25),  b2=u(ks[3], (16,), 6 * 25),
        fw1=u(ks[4], (120, 400), 400),       fb1=u(ks[5], (120,), 400),
        fw2=u(ks[6], (84, 120), 120),        fb2=u(ks[7], (84,), 120),
        fw3=u(ks[8], (10, 84), 84),          fb3=u(ks[9], (10,), 84),
    )


def ref_forward(x, p):
    # Pure-JAX reference for correctness checking (matches the PyTorch module).
    dn = ('NCHW', 'OIHW', 'NCHW')
    h = lax.conv_general_dilated(x, p['w1'], (1, 1), 'VALID', dimension_numbers=dn)
    h = jax.nn.relu(h + p['b1'][None, :, None, None])
    h = lax.reduce_window(h, -jnp.inf, lax.max, (1, 1, 2, 2), (1, 1, 2, 2), 'VALID')
    h = lax.conv_general_dilated(h, p['w2'], (1, 1), 'VALID', dimension_numbers=dn)
    h = jax.nn.relu(h + p['b2'][None, :, None, None])
    h = lax.reduce_window(h, -jnp.inf, lax.max, (1, 1, 2, 2), (1, 1, 2, 2), 'VALID')
    h = h.reshape(h.shape[0], 400)
    h = jax.nn.relu(h @ p['fw1'].T + p['fb1'])
    h = jax.nn.relu(h @ p['fw2'].T + p['fb2'])
    return h @ p['fw3'].T + p['fb3']


if __name__ == "__main__":
    key = jax.random.PRNGKey(0)
    kx, kp = jax.random.split(key)
    # fc1 (16*5*5 = 400) fixes the spatial size at 32 — CIFAR-sized input.
    x = jax.random.normal(kx, (2, 3, 32, 32), jnp.float32)
    params = init_params(kp)
    kparams = prepare_params(params)          # one-time weight repacking

    out = jax.block_until_ready(convnet_forward(x, kparams))
    ref = jax.block_until_ready(ref_forward(x, params))

    assert out.shape == (2, 10), out.shape
    assert jnp.allclose(out, ref, atol=1e-3, rtol=1e-3), "mismatch vs JAX reference"
    print("KERNEL_OK")
</pallas_src>

<mosaic_0001>
module attributes {stable_mosaic.version = 11 : i64} {
  func.func @_convnet_kernel(%arg0: i32, %arg1: memref<1x32x128xf32, #tpu.memory_space<vmem>>, %arg2: memref<5x128x256xf32, #tpu.memory_space<vmem>>, %arg3: memref<1x256xf32, #tpu.memory_space<vmem>>, %arg4: memref<5x128x256xf32, #tpu.memory_space<vmem>>, %arg5: memref<1x256xf32, #tpu.memory_space<vmem>>, %arg6: memref<5x128x128xf32, #tpu.memory_space<vmem>>, %arg7: memref<1x128xf32, #tpu.memory_space<vmem>>, %arg8: memref<128x128xf32, #tpu.memory_space<vmem>>, %arg9: memref<1x128xf32, #tpu.memory_space<vmem>>, %arg10: memref<128x128xf32, #tpu.memory_space<vmem>>, %arg11: memref<1x128xf32, #tpu.memory_space<vmem>>, %arg12: memref<1x1x128xf32, #tpu.memory_space<vmem>>) attributes {dimension_semantics = [#tpu.dimension_semantics<parallel>], iteration_bounds = array<i64: 2>, scalar_prefetch = 0 : i64, scratch_operands = 0 : i64, tpu.core_type = #tpu.core_type<tc>, window_params = [{transform_indices = @transform_0, window_bounds = array<i64: 1, 32, 128>}, {pipeline_mode = #tpu.pipeline_mode<synchronous>, transform_indices = @transform_1, window_bounds = array<i64: 5, 128, 256>}, {pipeline_mode = #tpu.pipeline_mode<synchronous>, transform_indices = @transform_2, window_bounds = array<i64: 1, 256>}, {pipeline_mode = #tpu.pipeline_mode<synchronous>, transform_indices = @transform_3, window_bounds = array<i64: 5, 128, 256>}, {pipeline_mode = #tpu.pipeline_mode<synchronous>, transform_indices = @transform_4, window_bounds = array<i64: 1, 256>}, {pipeline_mode = #tpu.pipeline_mode<synchronous>, transform_indices = @transform_5, window_bounds = array<i64: 5, 128, 128>}, {pipeline_mode = #tpu.pipeline_mode<synchronous>, transform_indices = @transform_6, window_bounds = array<i64: 1, 128>}, {pipeline_mode = #tpu.pipeline_mode<synchronous>, transform_indices = @transform_7, window_bounds = array<i64: 128, 128>}, {pipeline_mode = #tpu.pipeline_mode<synchronous>, transform_indices = @transform_8, window_bounds = array<i64: 1, 128>}, {pipeline_mode = #tpu.pipeline_mode<synchronous>, transform_indices = @transform_9, window_bounds = array<i64: 128, 128>}, {pipeline_mode = #tpu.pipeline_mode<synchronous>, transform_indices = @transform_10, window_bounds = array<i64: 1, 128>}, {transform_indices = @transform_11, window_bounds = array<i64: 1, 1, 128>}]} {
    %c0 = arith.constant 0 : index
    %c0_0 = arith.constant 0 : index
    %c0_1 = arith.constant 0 : index
    %0 = vector.load %arg1[%c0, %c0_0, %c0_1] : memref<1x32x128xf32, #tpu.memory_space<vmem>>, vector<1x32x128xf32>
    %1 = vector.shape_cast %0 : vector<1x32x128xf32> to vector<32x128xf32>
    %2 = vector.extract_strided_slice %1 {offsets = [0, 0], sizes = [28, 128], strides = [1, 1]} : vector<32x128xf32> to vector<28x128xf32>
    %c0_2 = arith.constant 0 : index
    %c0_3 = arith.constant 0 : index
    %c0_4 = arith.constant 0 : index
    %3 = vector.load %arg2[%c0_2, %c0_3, %c0_4] : memref<5x128x256xf32, #tpu.memory_space<vmem>>, vector<1x128x256xf32>
    %4 = vector.shape_cast %3 : vector<1x128x256xf32> to vector<128x256xf32>
    %cst = arith.constant dense<0.000000e+00> : vector<28x256xf32>
    %5 = tpu.matmul %2, %4, %cst {dimension_numbers = #tpu.dot_dimension_numbers<[1], [0], [0], [1], [0, 0, 1, 1], [], []>} : vector<28x128xf32>, vector<128x256xf32>, vector<28x256xf32> -> vector<28x256xf32>
    %6 = vector.extract_strided_slice %1 {offsets = [1, 0], sizes = [28, 128], strides = [1, 1]} : vector<32x128xf32> to vector<28x128xf32>
    %c1 = arith.constant 1 : index
    %c0_5 = arith.constant 0 : index
    %c0_6 = arith.constant 0 : index
    %7 = vector.load %arg2[%c1, %c0_5, %c0_6] : memref<5x128x256xf32, #tpu.memory_space<vmem>>, vector<1x128x256xf32>
    %8 = vector.shape_cast %7 : vector<1x128x256xf32> to vector<128x256xf32>
    %cst_7 = arith.constant dense<0.000000e+00> : vector<28x256xf32>
    %9 = tpu.matmul %6, %8, %cst_7 {dimension_numbers = #tpu.dot_dimension_numbers<[1], [0], [0], [1], [0, 0, 1, 1], [], []>} : vector<28x128xf32>, vector<128x256xf32>, vector<28x256xf32> -> vector<28x256xf32>
    %10 = arith.addf %5, %9 : vector<28x256xf32>
    %11 = vector.extract_strided_slice %1 {offsets = [2, 0], sizes = [28, 128], strides = [1, 1]} : vector<32x128xf32> to vector<28x128xf32>
    %c2 = arith.constant 2 : index
    %c0_8 = arith.constant 0 : index
    %c0_9 = arith.constant 0 : index
    %12 = vector.load %arg2[%c2, %c0_8, %c0_9] : memref<5x128x256xf32, #tpu.memory_space<vmem>>, vector<1x128x256xf32>
    %13 = vector.shape_cast %12 : vector<1x128x256xf32> to vector<128x256xf32>
    %cst_10 = arith.constant dense<0.000000e+00> : vector<28x256xf32>
    %14 = tpu.matmul %11, %13, %cst_10 {dimension_numbers = #tpu.dot_dimension_numbers<[1], [0], [0], [1], [0, 0, 1, 1], [], []>} : vector<28x128xf32>, vector<128x256xf32>, vector<28x256xf32> -> vector<28x256xf32>
    %15 = arith.addf %10, %14 : vector<28x256xf32>
    %16 = vector.extract_strided_slice %1 {offsets = [3, 0], sizes = [28, 128], strides = [1, 1]} : vector<32x128xf32> to vector<28x128xf32>
    %c3 = arith.constant 3 : index
    %c0_11 = arith.constant 0 : index
    %c0_12 = arith.constant 0 : index
    %17 = vector.load %arg2[%c3, %c0_11, %c0_12] : memref<5x128x256xf32, #tpu.memory_space<vmem>>, vector<1x128x256xf32>
    %18 = vector.shape_cast %17 : vector<1x128x256xf32> to vector<128x256xf32>
    %cst_13 = arith.constant dense<0.000000e+00> : vector<28x256xf32>
    %19 = tpu.matmul %16, %18, %cst_13 {dimension_numbers = #tpu.dot_dimension_numbers<[1], [0], [0], [1], [0, 0, 1, 1], [], []>} : vector<28x128xf32>, vector<128x256xf32>, vector<28x256xf32> -> vector<28x256xf32>
    %20 = arith.addf %15, %19 : vector<28x256xf32>
    %21 = vector.extract_strided_slice %1 {offsets = [4, 0], sizes = [28, 128], strides = [1, 1]} : vector<32x128xf32> to vector<28x128xf32>
    %c4 = arith.constant 4 : index
    %c0_14 = arith.constant 0 : index
    %c0_15 = arith.constant 0 : index
    %22 = vector.load %arg2[%c4, %c0_14, %c0_15] : memref<5x128x256xf32, #tpu.memory_space<vmem>>, vector<1x128x256xf32>
    %23 = vector.shape_cast %22 : vector<1x128x256xf32> to vector<128x256xf32>
    %cst_16 = arith.constant dense<0.000000e+00> : vector<28x256xf32>
    %24 = tpu.matmul %21, %23, %cst_16 {dimension_numbers = #tpu.dot_dimension_numbers<[1], [0], [0], [1], [0, 0, 1, 1], [], []>} : vector<28x128xf32>, vector<128x256xf32>, vector<28x256xf32> -> vector<28x256xf32>
    %25 = arith.addf %20, %24 : vector<28x256xf32>
    %c0_17 = arith.constant 0 : index
    %c0_18 = arith.constant 0 : index
    %26 = vector.load %arg3[%c0_17, %c0_18] : memref<1x256xf32, #tpu.memory_space<vmem>>, vector<1x256xf32>
    %27 = vector.broadcast %26 : vector<1x256xf32> to vector<28x256xf32>
    %28 = arith.addf %25, %27 : vector<28x256xf32>
    %cst_19 = arith.constant 0.000000e+00 : f32
    %29 = vector.broadcast %cst_19 : f32 to vector<28x256xf32>
    %30 = arith.maximumf %28, %29 : vector<28x256xf32>
    %31 = vector.extract_strided_slice %30 {offsets = [0, 0], sizes = [28, 128], strides = [1, 1]} : vector<28x256xf32> to vector<28x128xf32>
    %32 = vector.extract_strided_slice %30 {offsets = [0, 128], sizes = [28, 128], strides = [1, 1]} : vector<28x256xf32> to vector<28x128xf32>
    %33 = arith.maximumf %31, %32 : vector<28x128xf32>
    %34 = vector.extract_strided_slice %33 {offsets = [0, 0], sizes = [27, 128], strides = [1, 1]} : vector<28x128xf32> to vector<27x128xf32>
    %35 = vector.extract_strided_slice %33 {offsets = [1, 0], sizes = [27, 128], strides = [1, 1]} : vector<28x128xf32> to vector<27x128xf32>
    %36 = arith.maximumf %34, %35 : vector<27x128xf32>
    %37 = tpu.iota {dimensions = array<i32: 0>} : vector<14x27xi32>
    %38 = tpu.iota {dimensions = array<i32: 1>} : vector<14x27xi32>
    %c2_i32 = arith.constant 2 : i32
    %39 = vector.broadcast %c2_i32 : i32 to vector<14x27xi32>
    %40 = arith.muli %39, %37 : vector<14x27xi32>
    %41 = arith.cmpi eq, %38, %40 : vector<14x27xi32>
    %cst_20 = arith.constant 1.000000e+00 : f32
    %cst_21 = arith.constant 0.000000e+00 : f32
    %42 = vector.broadcast %cst_20 : f32 to vector<14x27xf32>
    %43 = vector.broadcast %cst_21 : f32 to vector<14x27xf32>
    %44 = arith.select %41, %42, %43 : vector<14x27xi1>, vector<14x27xf32>
    %cst_22 = arith.constant dense<0.000000e+00> : vector<14x128xf32>
    %45 = tpu.matmul %44, %36, %cst_22 {dimension_numbers = #tpu.dot_dimension_numbers<[1], [0], [0], [1], [0, 0, 1, 1], [], []>} : vector<14x27xf32>, vector<27x128xf32>, vector<14x128xf32> -> vector<14x128xf32>
    %46 = vector.extract_strided_slice %45 {offsets = [0, 0], sizes = [10, 128], strides = [1, 1]} : vector<14x128xf32> to vector<10x128xf32>
    %c0_23 = arith.constant 0 : index
    %c0_24 = arith.constant 0 : index
    %c0_25 = arith.constant 0 : index
    %47 = vector.load %arg4[%c0_23, %c0_24, %c0_25] : memref<5x128x256xf32, #tpu.memory_space<vmem>>, vector<1x128x256xf32>
    %48 = vector.shape_cast %47 : vector<1x128x256xf32> to vector<128x256xf32>
    %cst_26 = arith.constant dense<0.000000e+00> : vector<10x256xf32>
    %49 = tpu.matmul %46, %48, %cst_26 {dimension_numbers = #tpu.dot_dimension_numbers<[1], [0], [0], [1], [0, 0, 1, 1], [], []>} : vector<10x128xf32>, vector<128x256xf32>, vector<10x256xf32> -> vector<10x256xf32>
    %50 = vector.extract_strided_slice %45 {offsets = [1, 0], sizes = [10, 128], strides = [1, 1]} : vector<14x128xf32> to vector<10x128xf32>
    %c1_27 = arith.constant 1 : index
    %c0_28 = arith.constant 0 : index
    %c0_29 = arith.constant 0 : index
    %51 = vector.load %arg4[%c1_27, %c0_28, %c0_29] : memref<5x128x256xf32, #tpu.memory_space<vmem>>, vector<1x128x256xf32>
    %52 = vector.shape_cast %51 : vector<1x128x256xf32> to vector<128x256xf32>
    %cst_30 = arith.constant dense<0.000000e+00> : vector<10x256xf32>
    %53 = tpu.matmul %50, %52, %cst_30 {dimension_numbers = #tpu.dot_dimension_numbers<[1], [0], [0], [1], [0, 0, 1, 1], [], []>} : vector<10x128xf32>, vector<128x256xf32>, vector<10x256xf32> -> vector<10x256xf32>
    %54 = arith.addf %49, %53 : vector<10x256xf32>
    %55 = vector.extract_strided_slice %45 {offsets = [2, 0], sizes = [10, 128], strides = [1, 1]} : vector<14x128xf32> to vector<10x128xf32>
    %c2_31 = arith.constant 2 : index
    %c0_32 = arith.constant 0 : index
    %c0_33 = arith.constant 0 : index
    %56 = vector.load %arg4[%c2_31, %c0_32, %c0_33] : memref<5x128x256xf32, #tpu.memory_space<vmem>>, vector<1x128x256xf32>
    %57 = vector.shape_cast %56 : vector<1x128x256xf32> to vector<128x256xf32>
    %cst_34 = arith.constant dense<0.000000e+00> : vector<10x256xf32>
    %58 = tpu.matmul %55, %57, %cst_34 {dimension_numbers = #tpu.dot_dimension_numbers<[1], [0], [0], [1], [0, 0, 1, 1], [], []>} : vector<10x128xf32>, vector<128x256xf32>, vector<10x256xf32> -> vector<10x256xf32>
    %59 = arith.addf %54, %58 : vector<10x256xf32>
    %60 = vector.extract_strided_slice %45 {offsets = [3, 0], sizes = [10, 128], strides = [1, 1]} : vector<14x128xf32> to vector<10x128xf32>
    %c3_35 = arith.constant 3 : index
    %c0_36 = arith.constant 0 : index
    %c0_37 = arith.constant 0 : index
    %61 = vector.load %arg4[%c3_35, %c0_36, %c0_37] : memref<5x128x256xf32, #tpu.memory_space<vmem>>, vector<1x128x256xf32>
    %62 = vector.shape_cast %61 : vector<1x128x256xf32> to vector<128x256xf32>
    %cst_38 = arith.constant dense<0.000000e+00> : vector<10x256xf32>
    %63 = tpu.matmul %60, %62, %cst_38 {dimension_numbers = #tpu.dot_dimension_numbers<[1], [0], [0], [1], [0, 0, 1, 1], [], []>} : vector<10x128xf32>, vector<128x256xf32>, vector<10x256xf32> -> vector<10x256xf32>
    %64 = arith.addf %59, %63 : vector<10x256xf32>
    %65 = vector.extract_strided_slice %45 {offsets = [4, 0], sizes = [10, 128], strides = [1, 1]} : vector<14x128xf32> to vector<10x128xf32>
    %c4_39 = arith.constant 4 : index
    %c0_40 = arith.constant 0 : index
    %c0_41 = arith.constant 0 : index
    %66 = vector.load %arg4[%c4_39, %c0_40, %c0_41] : memref<5x128x256xf32, #tpu.memory_space<vmem>>, vector<1x128x256xf32>
    %67 = vector.shape_cast %66 : vector<1x128x256xf32> to vector<128x256xf32>
    %cst_42 = arith.constant dense<0.000000e+00> : vector<10x256xf32>
    %68 = tpu.matmul %65, %67, %cst_42 {dimension_numbers = #tpu.dot_dimension_numbers<[1], [0], [0], [1], [0, 0, 1, 1], [], []>} : vector<10x128xf32>, vector<128x256xf32>, vector<10x256xf32> -> vector<10x256xf32>
    %69 = arith.addf %64, %68 : vector<10x256xf32>
    %c0_43 = arith.constant 0 : index
    %c0_44 = arith.constant 0 : index
    %70 = vector.load %arg5[%c0_43, %c0_44] : memref<1x256xf32, #tpu.memory_space<vmem>>, vector<1x256xf32>
    %71 = vector.broadcast %70 : vector<1x256xf32> to vector<10x256xf32>
    %72 = arith.addf %69, %71 : vector<10x256xf32>
    %cst_45 = arith.constant 0.000000e+00 : f32
    %73 = vector.broadcast %cst_45 : f32 to vector<10x256xf32>
    %74 = arith.maximumf %72, %73 : vector<10x256xf32>
    %75 = vector.extract_strided_slice %74 {offsets = [0, 0], sizes = [10, 128], strides = [1, 1]} : vector<10x256xf32> to vector<10x128xf32>
    %76 = vector.extract_strided_slice %74 {offsets = [0, 128], sizes = [10, 128], strides = [1, 1]} : vector<10x256xf32> to vector<10x128xf32>
    %77 = arith.maximumf %75, %76 : vector<10x128xf32>
    %78 = vector.extract_strided_slice %77 {offsets = [0, 0], sizes = [9, 128], strides = [1, 1]} : vector<10x128xf32> to vector<9x128xf32>
    %79 = vector.extract_strided_slice %77 {offsets = [1, 0], sizes = [9, 128], strides = [1, 1]} : vector<10x128xf32> to vector<9x128xf32>
    %80 = arith.maximumf %78, %79 : vector<9x128xf32>
    %81 = tpu.iota {dimensions = array<i32: 0>} : vector<5x9xi32>
    %82 = tpu.iota {dimensions = array<i32: 1>} : vector<5x9xi32>
    %c2_i32_46 = arith.constant 2 : i32
    %83 = vector.broadcast %c2_i32_46 : i32 to vector<5x9xi32>
    %84 = arith.muli %83, %81 : vector<5x9xi32>
    %85 = arith.cmpi eq, %82, %84 : vector<5x9xi32>
    %cst_47 = arith.constant 1.000000e+00 : f32
    %cst_48 = arith.constant 0.000000e+00 : f32
    %86 = vector.broadcast %cst_47 : f32 to vector<5x9xf32>
    %87 = vector.broadcast %cst_48 : f32 to vector<5x9xf32>
    %88 = arith.select %85, %86, %87 : vector<5x9xi1>, vector<5x9xf32>
    %cst_49 = arith.constant dense<0.000000e+00> : vector<5x128xf32>
    %89 = tpu.matmul %88, %80, %cst_49 {dimension_numbers = #tpu.dot_dimension_numbers<[1], [0], [0], [1], [0, 0, 1, 1], [], []>} : vector<5x9xf32>, vector<9x128xf32>, vector<5x128xf32> -> vector<5x128xf32>
    %90 = vector.extract_strided_slice %89 {offsets = [0, 0], sizes = [1, 128], strides = [1, 1]} : vector<5x128xf32> to vector<1x128xf32>
    %c0_50 = arith.constant 0 : index
    %c0_51 = arith.constant 0 : index
    %c0_52 = arith.constant 0 : index
    %91 = vector.load %arg6[%c0_50, %c0_51, %c0_52] : memref<5x128x128xf32, #tpu.memory_space<vmem>>, vector<1x128x128xf32>
    %92 = vector.shape_cast %91 : vector<1x128x128xf32> to vector<128x128xf32>
    %cst_53 = arith.constant dense<0.000000e+00> : vector<1x128xf32>
    %93 = tpu.matmul %90, %92, %cst_53 {dimension_numbers = #tpu.dot_dimension_numbers<[1], [0], [0], [1], [0, 0, 1, 1], [], []>} : vector<1x128xf32>, vector<128x128xf32>, vector<1x128xf32> -> vector<1x128xf32>
    %94 = vector.extract_strided_slice %89 {offsets = [1, 0], sizes = [1, 128], strides = [1, 1]} : vector<5x128xf32> to vector<1x128xf32>
    %c1_54 = arith.constant 1 : index
    %c0_55 = arith.constant 0 : index
    %c0_56 = arith.constant 0 : index
    %95 = vector.load %arg6[%c1_54, %c0_55, %c0_56] : memref<5x128x128xf32, #tpu.memory_space<vmem>>, vector<1x128x128xf32>
    %96 = vector.shape_cast %95 : vector<1x128x128xf32> to vector<128x128xf32>
    %cst_57 = arith.constant dense<0.000000e+00> : vector<1x128xf32>
    %97 = tpu.matmul %94, %96, %cst_57 {dimension_numbers = #tpu.dot_dimension_numbers<[1], [0], [0], [1], [0, 0, 1, 1], [], []>} : vector<1x128xf32>, vector<128x128xf32>, vector<1x128xf32> -> vector<1x128xf32>
    %98 = arith.addf %93, %97 : vector<1x128xf32>
    %99 = vector.extract_strided_slice %89 {offsets = [2, 0], sizes = [1, 128], strides = [1, 1]} : vector<5x128xf32> to vector<1x128xf32>
    %c2_58 = arith.constant 2 : index
    %c0_59 = arith.constant 0 : index
    %c0_60 = arith.constant 0 : index
    %100 = vector.load %arg6[%c2_58, %c0_59, %c0_60] : memref<5x128x128xf32, #tpu.memory_space<vmem>>, vector<1x128x128xf32>
    %101 = vector.shape_cast %100 : vector<1x128x128xf32> to vector<128x128xf32>
    %cst_61 = arith.constant dense<0.000000e+00> : vector<1x128xf32>
    %102 = tpu.matmul %99, %101, %cst_61 {dimension_numbers = #tpu.dot_dimension_numbers<[1], [0], [0], [1], [0, 0, 1, 1], [], []>} : vector<1x128xf32>, vector<128x128xf32>, vector<1x128xf32> -> vector<1x128xf32>
    %103 = arith.addf %98, %102 : vector<1x128xf32>
    %104 = vector.extract_strided_slice %89 {offsets = [3, 0], sizes = [1, 128], strides = [1, 1]} : vector<5x128xf32> to vector<1x128xf32>
    %c3_62 = arith.constant 3 : index
    %c0_63 = arith.constant 0 : index
    %c0_64 = arith.constant 0 : index
    %105 = vector.load %arg6[%c3_62, %c0_63, %c0_64] : memref<5x128x128xf32, #tpu.memory_space<vmem>>, vector<1x128x128xf32>
    %106 = vector.shape_cast %105 : vector<1x128x128xf32> to vector<128x128xf32>
    %cst_65 = arith.constant dense<0.000000e+00> : vector<1x128xf32>
    %107 = tpu.matmul %104, %106, %cst_65 {dimension_numbers = #tpu.dot_dimension_numbers<[1], [0], [0], [1], [0, 0, 1, 1], [], []>} : vector<1x128xf32>, vector<128x128xf32>, vector<1x128xf32> -> vector<1x128xf32>
    %108 = arith.addf %103, %107 : vector<1x128xf32>
    %109 = vector.extract_strided_slice %89 {offsets = [4, 0], sizes = [1, 128], strides = [1, 1]} : vector<5x128xf32> to vector<1x128xf32>
    %c4_66 = arith.constant 4 : index
    %c0_67 = arith.constant 0 : index
    %c0_68 = arith.constant 0 : index
    %110 = vector.load %arg6[%c4_66, %c0_67, %c0_68] : memref<5x128x128xf32, #tpu.memory_space<vmem>>, vector<1x128x128xf32>
    %111 = vector.shape_cast %110 : vector<1x128x128xf32> to vector<128x128xf32>
    %cst_69 = arith.constant dense<0.000000e+00> : vector<1x128xf32>
    %112 = tpu.matmul %109, %111, %cst_69 {dimension_numbers = #tpu.dot_dimension_numbers<[1], [0], [0], [1], [0, 0, 1, 1], [], []>} : vector<1x128xf32>, vector<128x128xf32>, vector<1x128xf32> -> vector<1x128xf32>
    %113 = arith.addf %108, %112 : vector<1x128xf32>
    %c0_70 = arith.constant 0 : index
    %c0_71 = arith.constant 0 : index
    %114 = vector.load %arg7[%c0_70, %c0_71] : memref<1x128xf32, #tpu.memory_space<vmem>>, vector<1x128xf32>
    %115 = arith.addf %113, %114 : vector<1x128xf32>
    %cst_72 = arith.constant 0.000000e+00 : f32
    %116 = vector.broadcast %cst_72 : f32 to vector<1x128xf32>
    %117 = arith.maximumf %115, %116 : vector<1x128xf32>
    %c0_73 = arith.constant 0 : index
    %c0_74 = arith.constant 0 : index
    %118 = vector.load %arg8[%c0_73, %c0_74] : memref<128x128xf32, #tpu.memory_space<vmem>>, vector<128x128xf32>
    %cst_75 = arith.constant dense<0.000000e+00> : vector<1x128xf32>
    %119 = tpu.matmul %117, %118, %cst_75 {dimension_numbers = #tpu.dot_dimension_numbers<[1], [0], [0], [1], [0, 0, 1, 1], [], []>} : vector<1x128xf32>, vector<128x128xf32>, vector<1x128xf32> -> vector<1x128xf32>
    %c0_76 = arith.constant 0 : index
    %c0_77 = arith.constant 0 : index
    %120 = vector.load %arg9[%c0_76, %c0_77] : memref<1x128xf32, #tpu.memory_space<vmem>>, vector<1x128xf32>
    %121 = arith.addf %119, %120 : vector<1x128xf32>
    %cst_78 = arith.constant 0.000000e+00 : f32
    %122 = vector.broadcast %cst_78 : f32 to vector<1x128xf32>
    %123 = arith.maximumf %121, %122 : vector<1x128xf32>
    %c0_79 = arith.constant 0 : index
    %c0_80 = arith.constant 0 : index
    %124 = vector.load %arg10[%c0_79, %c0_80] : memref<128x128xf32, #tpu.memory_space<vmem>>, vector<128x128xf32>
    %cst_81 = arith.constant dense<0.000000e+00> : vector<1x128xf32>
    %125 = tpu.matmul %123, %124, %cst_81 {dimension_numbers = #tpu.dot_dimension_numbers<[1], [0], [0], [1], [0, 0, 1, 1], [], []>} : vector<1x128xf32>, vector<128x128xf32>, vector<1x128xf32> -> vector<1x128xf32>
    %c0_82 = arith.constant 0 : index
    %c0_83 = arith.constant 0 : index
    %126 = vector.load %arg11[%c0_82, %c0_83] : memref<1x128xf32, #tpu.memory_space<vmem>>, vector<1x128xf32>
    %127 = arith.addf %125, %126 : vector<1x128xf32>
    %c0_84 = arith.constant 0 : index
    %c0_85 = arith.constant 0 : index
    %c0_86 = arith.constant 0 : index
    %128 = vector.load %arg12[%c0_84, %c0_85, %c0_86] : memref<1x1x128xf32, #tpu.memory_space<vmem>>, vector<1x1x128xf32>
    %129 = vector.shape_cast %128 : vector<1x1x128xf32> to vector<1x128xf32>
    %130 = vector.shape_cast %127 : vector<1x128xf32> to vector<1x1x128xf32>
    tpu.vector_store %arg12[%c0_84, %c0_85, %c0_86], %130 {strides = array<i32>} : memref<1x1x128xf32, #tpu.memory_space<vmem>>, vector<1x1x128xf32>,
    return
  }
  func.func @transform_0(%arg0: i32) -> (i32, i32, i32) {
    %c0_i32 = arith.constant 0 : i32
    %c0_i32_0 = arith.constant 0 : i32
    %c0_i32_1 = arith.constant 0 : i32
    return %arg0, %c0_i32, %c0_i32_0 : i32, i32, i32
  }
  func.func @transform_1(%arg0: i32) -> (i32, i32, i32) {
    %c0_i32 = arith.constant 0 : i32
    %c0_i32_0 = arith.constant 0 : i32
    %c0_i32_1 = arith.constant 0 : i32
    %c0_i32_2 = arith.constant 0 : i32
    return %c0_i32, %c0_i32_0, %c0_i32_1 : i32, i32, i32
  }
  func.func @transform_2(%arg0: i32) -> (i32, i32) {
    %c0_i32 = arith.constant 0 : i32
    %c0_i32_0 = arith.constant 0 : i32
    %c0_i32_1 = arith.constant 0 : i32
    return %c0_i32, %c0_i32_0 : i32, i32
  }
  func.func @transform_3(%arg0: i32) -> (i32, i32, i32) {
    %c0_i32 = arith.constant 0 : i32
    %c0_i32_0 = arith.constant 0 : i32
    %c0_i32_1 = arith.constant 0 : i32
    %c0_i32_2 = arith.constant 0 : i32
    return %c0_i32, %c0_i32_0, %c0_i32_1 : i32, i32, i32
  }
  func.func @transform_4(%arg0: i32) -> (i32, i32) {
    %c0_i32 = arith.constant 0 : i32
    %c0_i32_0 = arith.constant 0 : i32
    %c0_i32_1 = arith.constant 0 : i32
    return %c0_i32, %c0_i32_0 : i32, i32
  }
  func.func @transform_5(%arg0: i32) -> (i32, i32, i32) {
    %c0_i32 = arith.constant 0 : i32
    %c0_i32_0 = arith.constant 0 : i32
    %c0_i32_1 = arith.constant 0 : i32
    %c0_i32_2 = arith.constant 0 : i32
    return %c0_i32, %c0_i32_0, %c0_i32_1 : i32, i32, i32
  }
  func.func @transform_6(%arg0: i32) -> (i32, i32) {
    %c0_i32 = arith.constant 0 : i32
    %c0_i32_0 = arith.constant 0 : i32
    %c0_i32_1 = arith.constant 0 : i32
    return %c0_i32, %c0_i32_0 : i32, i32
  }
  func.func @transform_7(%arg0: i32) -> (i32, i32) {
    %c0_i32 = arith.constant 0 : i32
    %c0_i32_0 = arith.constant 0 : i32
    %c0_i32_1 = arith.constant 0 : i32
    return %c0_i32, %c0_i32_0 : i32, i32
  }
  func.func @transform_8(%arg0: i32) -> (i32, i32) {
    %c0_i32 = arith.constant 0 : i32
    %c0_i32_0 = arith.constant 0 : i32
    %c0_i32_1 = arith.constant 0 : i32
    return %c0_i32, %c0_i32_0 : i32, i32
  }
  func.func @transform_9(%arg0: i32) -> (i32, i32) {
    %c0_i32 = arith.constant 0 : i32
    %c0_i32_0 = arith.constant 0 : i32
    %c0_i32_1 = arith.constant 0 : i32
    return %c0_i32, %c0_i32_0 : i32, i32
  }
  func.func @transform_10(%arg0: i32) -> (i32, i32) {
    %c0_i32 = arith.constant 0 : i32
    %c0_i32_0 = arith.constant 0 : i32
    %c0_i32_1 = arith.constant 0 : i32
    return %c0_i32, %c0_i32_0 : i32, i32
  }
  func.func @transform_11(%arg0: i32) -> (i32, i32, i32) {
    %c0_i32 = arith.constant 0 : i32
    %c0_i32_0 = arith.constant 0 : i32
    %c0_i32_1 = arith.constant 0 : i32
    return %arg0, %c0_i32, %c0_i32_0 : i32, i32, i32
  }
}

</mosaic_0001>

<llo_original>
// kernel: convnet_forward.1
$region0: #{convnet_forward.1}
  #allocation0 [shape = 'u32[]', space=smem, size = 0x4, offset = 0x4, fixed_abs, tag = 'smem constant byte address 0x4 - core index']
  #allocation1 [shape = 'u32[144,128]{1,0:T(1,128)}', space=vmem, size = 0x12000, scoped, tag = 'internal scratch']
  %s0 = inlined_call_operand.vmem [shape: f32[2,32,128], index: 0, kind: input, shape index: {}]
  %s1 = inlined_call_operand.hbm [shape: f32[5,128,256], index: 1, kind: input, shape index: {}]
  %s2 = inlined_call_operand.vmem [shape: f32[1,256], index: 2, kind: input, shape index: {}]
  %s3 = inlined_call_operand.hbm [shape: f32[5,128,256], index: 3, kind: input, shape index: {}]
  %s4 = inlined_call_operand.vmem [shape: f32[1,256], index: 4, kind: input, shape index: {}]
  %s5 = inlined_call_operand.vmem [shape: f32[5,128,128], index: 5, kind: input, shape index: {}]
  %s6 = inlined_call_operand.vmem [shape: f32[1,128], index: 6, kind: input, shape index: {}]
  %s7 = inlined_call_operand.vmem [shape: f32[128,128], index: 7, kind: input, shape index: {}]
  %s8 = inlined_call_operand.vmem [shape: f32[1,128], index: 8, kind: input, shape index: {}]
  %s9 = inlined_call_operand.vmem [shape: f32[128,128], index: 9, kind: input, shape index: {}]
  %s10 = inlined_call_operand.vmem [shape: f32[1,128], index: 10, kind: input, shape index: {}]
  %s11 = inlined_call_operand.hbm [shape: f32[2,1,128], index: 11, kind: output, shape index: {}]
  %s12 = sld [smem:[#allocation0]]
  $region85: #{convnet_forward.1} parent=0
    _
  %s14 = ssub.s32 1, %s12
  %s15 = scalar_select 0, %s14, %s12
  $region1: #{convnet_forward.1} parent=0
    #allocation2 [shape = 'u8[655360]{0}', space=vmem, size = 0xa0000, scoped, tag = 'input window, operand 1, single buffered']
    #allocation3 [shape = 's32[2]{0}', space=sflag, size = 0x8, scoped, tag = 'scoped memory for convnet_forward.1']
    #allocation4 [shape = 's32[2]{0}', space=sflag, size = 0x8, scoped, tag = 'scoped memory for convnet_forward.1']
    #allocation5 [shape = 'u8[655360]{0}', space=vmem, size = 0xa0000, scoped, tag = 'input window, operand 3, single buffered']
    #allocation6 [shape = 's32[1]{0}', space=sflag, size = 0x4, scoped, tag = 'scoped memory for convnet_forward.1']
    #allocation7 [shape = 'u8[1024]{0}', space=vmem, size = 0x400, scoped, tag = 'output window, operand 0']
    %16 = vsyncpa [#allocation3], 0
    %17 = vsyncpa [#allocation6], 0
    %18 = vsyncpa [#allocation4], 0
    %s19 = scalar_lea.sflag [#allocation4], 1
    %20 = vsyncpa %s19, 0
    loop: start=0, step=1, limit=4
    $region2: #{convnet_forward.1} parent=1 // loop_pre_header
      _
    $region3: #{convnet_forward.1} parent=1 // loop_header
      %s22 = sphi 0, %s26
      %p23 = scmp.ge.s32.totalorder %s22, 4
      %s32 = sphi 0, %s34
      %s35 = sphi 0, %s32
      %s36 = sphi 0, %s35
      %s52 = sphi 0, %s36
      %s56 = sphi 0, %s56
      %s58 = sphi 0, %s56
      %s59 = sphi 0, %s58
      %s73 = sphi 0, %s59
      %s77 = sphi 0, %s77
      %s79 = sphi 0, %s77
      %s80 = sphi 0, %s79
      %s94 = sphi 0, %s80
      %s98 = sphi 0, %s98
      %s100 = sphi 0, %s98
      %s101 = sphi 0, %s100
      %s115 = sphi 0, %s101
      %s119 = sphi 0, %s119
      %s121 = sphi 0, %s119
      %s122 = sphi 0, %s121
      %s136 = sphi 0, %s122
      %s140 = sphi 0, %s140
      %s142 = sphi 0, %s140
      %s143 = sphi 0, %s142
      %s157 = sphi 0, %s143
      %s161 = sphi 0, %s161
      %s163 = sphi 0, %s161
      %s164 = sphi 0, %s163
      %s178 = sphi 0, %s164
      %s182 = sphi 0, %s182
      %s184 = sphi 0, %s182
      %s185 = sphi 0, %s184
      %s199 = sphi 0, %s185
      %s203 = sphi 0, %s203
      %s205 = sphi 0, %s203
      %s206 = sphi 0, %s205
      %s220 = sphi 0, %s206
      %s224 = sphi 0, %s224
      %s226 = sphi 0, %s224
      %s227 = sphi 0, %s226
      %s241 = sphi 0, %s227
      %s245 = sphi 0, %s245
      %s247 = sphi 0, %s245
      %s248 = sphi 0, %s247
      %s262 = sphi 0, %s248
      %s268 = sphi 0, %s270
      %s271 = sphi 0, %s268
      %s272 = sphi 0, %s271
      %s288 = sphi 0, %s272
    $region4: #{convnet_forward.1} parent=1 // loop_header_branch
      %25 = sbr.rel (%p23) target = $region8
    $region5: #{convnet_forward.1} parent=1 // loop_body
      %s27 = ssub.s32 %s22, 1
      %s28 = ssub.s32 %s22, 2
      %s29 = sadd.s32 %s22, 1
      %s30 = ssub.s32 %s22, %s29
      %p31 = scmp.eq.s32.totalorder %s30, 0
      %s33 = sadd.s32 %s32, 1
      %s34 = scalar_select %p31, %s32, %s33
      %p37 = pneg %p31
      %p38 = scmp.eq.s32.totalorder %s22, 1
      %p39 = por %p37, %p38
      %p40 = scmp.ne.s32.totalorder %s32, %s35
      %p41 = scmp.eq.s32.totalorder %s22, 0
      %p42 = por %p40, %p41
      %p43 = scmp.ne.s32.totalorder %s32, %s35
      %p44 = scmp.eq.s32.totalorder %s27, 1
      %p45 = por %p43, %p44
      %p46 = scmp.ne.s32.totalorder %s35, %s36
      %p47 = scmp.eq.s32.totalorder %s27, 0
      %p48 = por %p46, %p47
      %p49 = scmp.ne.s32.totalorder %s35, %s36
      %p50 = scmp.eq.s32.totalorder %s28, 1
      %p51 = por %p49, %p50
      %p53 = scmp.ne.s32.totalorder %s36, %s52
      %p54 = scmp.eq.s32.totalorder %s28, 0
      %p55 = por %p53, %p54
      %s57 = sadd.s32 %s56, 1
      %p60 = scmp.eq.s32.totalorder %s22, 1
      %p61 = scmp.ne.s32.totalorder %s56, %s58
      %p62 = scmp.eq.s32.totalorder %s22, 0
      %p63 = por %p61, %p62
      %p64 = scmp.ne.s32.totalorder %s56, %s58
      %p65 = scmp.eq.s32.totalorder %s27, 1
      %p66 = por %p64, %p65
      %p67 = scmp.ne.s32.totalorder %s58, %s59
      %p68 = scmp.eq.s32.totalorder %s27, 0
      %p69 = por %p67, %p68
      %p70 = scmp.ne.s32.totalorder %s58, %s59
      %p71 = scmp.eq.s32.totalorder %s28, 1
      %p72 = por %p70, %p71
      %p74 = scmp.ne.s32.totalorder %s59, %s73
      %p75 = scmp.eq.s32.totalorder %s28, 0
      %p76 = por %p74, %p75
      %s78 = sadd.s32 %s77, 1
      %p81 = scmp.eq.s32.totalorder %s22, 1
      %p82 = scmp.ne.s32.totalorder %s77, %s79
      %p83 = scmp.eq.s32.totalorder %s22, 0
      %p84 = por %p82, %p83
      %p85 = scmp.ne.s32.totalorder %s77, %s79
      %p86 = scmp.eq.s32.totalorder %s27, 1
      %p87 = por %p85, %p86
      %p88 = scmp.ne.s32.totalorder %s79, %s80
      %p89 = scmp.eq.s32.totalorder %s27, 0
      %p90 = por %p88, %p89
      %p91 = scmp.ne.s32.totalorder %s79, %s80
      %p92 = scmp.eq.s32.totalorder %s28, 1
      %p93 = por %p91, %p92
      %p95 = scmp.ne.s32.totalorder %s80, %s94
      %p96 = scmp.eq.s32.totalorder %s28, 0
      %p97 = por %p95, %p96
      %s99 = sadd.s32 %s98, 1
      %p102 = scmp.eq.s32.totalorder %s22, 1
      %p103 = scmp.ne.s32.totalorder %s98, %s100
      %p104 = scmp.eq.s32.totalorder %s22, 0
      %p105 = por %p103, %p104
      %p106 = scmp.ne.s32.totalorder %s98, %s100
      %p107 = scmp.eq.s32.totalorder %s27, 1
      %p108 = por %p106, %p107
      %p109 = scmp.ne.s32.totalorder %s100, %s101
      %p110 = scmp.eq.s32.totalorder %s27, 0
      %p111 = por %p109, %p110
      %p112 = scmp.ne.s32.totalorder %s100, %s101
      %p113 = scmp.eq.s32.totalorder %s28, 1
      %p114 = por %p112, %p113
      %p116 = scmp.ne.s32.totalorder %s101, %s115
      %p117 = scmp.eq.s32.totalorder %s28, 0
      %p118 = por %p116, %p117
      %s120 = sadd.s32 %s119, 1
      %p123 = scmp.eq.s32.totalorder %s22, 1
      %p124 = scmp.ne.s32.totalorder %s119, %s121
      %p125 = scmp.eq.s32.totalorder %s22, 0
      %p126 = por %p124, %p125
      %p127 = scmp.ne.s32.totalorder %s119, %s121
      %p128 = scmp.eq.s32.totalorder %s27, 1
      %p129 = por %p127, %p128
      %p130 = scmp.ne.s32.totalorder %s121, %s122
      %p131 = scmp.eq.s32.totalorder %s27, 0
      %p132 = por %p130, %p131
      %p133 = scmp.ne.s32.totalorder %s121, %s122
      %p134 = scmp.eq.s32.totalorder %s28, 1
      %p135 = por %p133, %p134
      %p137 = scmp.ne.s32.totalorder %s122, %s136
      %p138 = scmp.eq.s32.totalorder %s28, 0
      %p139 = por %p137, %p138
      %s141 = sadd.s32 %s140, 1
      %p144 = scmp.eq.s32.totalorder %s22, 1
      %p145 = scmp.ne.s32.totalorder %s140, %s142
      %p146 = scmp.eq.s32.totalorder %s22, 0
      %p147 = por %p145, %p146
      %p148 = scmp.ne.s32.totalorder %s140, %s142
      %p149 = scmp.eq.s32.totalorder %s27, 1
      %p150 = por %p148, %p149
      %p151 = scmp.ne.s32.totalorder %s142, %s143
      %p152 = scmp.eq.s32.totalorder %s27, 0
      %p153 = por %p151, %p152
      %p154 = scmp.ne.s32.totalorder %s142, %s143
      %p155 = scmp.eq.s32.totalorder %s28, 1
      %p156 = por %p154, %p155
      %p158 = scmp.ne.s32.totalorder %s143, %s157
      %p159 = scmp.eq.s32.totalorder %s28, 0
      %p160 = por %p158, %p159
      %s162 = sadd.s32 %s161, 1
      %p165 = scmp.eq.s32.totalorder %s22, 1
      %p166 = scmp.ne.s32.totalorder %s161, %s163
      %p167 = scmp.eq.s32.totalorder %s22, 0
      %p168 = por %p166, %p167
      %p169 = scmp.ne.s32.totalorder %s161, %s163
      %p170 = scmp.eq.s32.totalorder %s27, 1
      %p171 = por %p169, %p170
      %p172 = scmp.ne.s32.totalorder %s163, %s164
      %p173 = scmp.eq.s32.totalorder %s27, 0
      %p174 = por %p172, %p173
      %p175 = scmp.ne.s32.totalorder %s163, %s164
      %p176 = scmp.eq.s32.totalorder %s28, 1
      %p177 = por %p175, %p176
      %p179 = scmp.ne.s32.totalorder %s164, %s178
      %p180 = scmp.eq.s32.totalorder %s28, 0
      %p181 = por %p179, %p180
      %s183 = sadd.s32 %s182, 1
      %p186 = scmp.eq.s32.totalorder %s22, 1
      %p187 = scmp.ne.s32.totalorder %s182, %s184
      %p188 = scmp.eq.s32.totalorder %s22, 0
      %p189 = por %p187, %p188
      %p190 = scmp.ne.s32.totalorder %s182, %s184
      %p191 = scmp.eq.s32.totalorder %s27, 1
      %p192 = por %p190, %p191
      %p193 = scmp.ne.s32.totalorder %s184, %s185
      %p194 = scmp.eq.s32.totalorder %s27, 0
      %p195 = por %p193, %p194
      %p196 = scmp.ne.s32.totalorder %s184, %s185
      %p197 = scmp.eq.s32.totalorder %s28, 1
      %p198 = por %p196, %p197
      %p200 = scmp.ne.s32.totalorder %s185, %s199
      %p201 = scmp.eq.s32.totalorder %s28, 0
      %p202 = por %p200, %p201
      %s204 = sadd.s32 %s203, 1
      %p207 = scmp.eq.s32.totalorder %s22, 1
      %p208 = scmp.ne.s32.totalorder %s203, %s205
      %p209 = scmp.eq.s32.totalorder %s22, 0
      %p210 = por %p208, %p209
      %p211 = scmp.ne.s32.totalorder %s203, %s205
      %p212 = scmp.eq.s32.totalorder %s27, 1
      %p213 = por %p211, %p212
      %p214 = scmp.ne.s32.totalorder %s205, %s206
      %p215 = scmp.eq.s32.totalorder %s27, 0
      %p216 = por %p214, %p215
      %p217 = scmp.ne.s32.totalorder %s205, %s206
      %p218 = scmp.eq.s32.totalorder %s28, 1
      %p219 = por %p217, %p218
      %p221 = scmp.ne.s32.totalorder %s206, %s220
      %p222 = scmp.eq.s32.totalorder %s28, 0
      %p223 = por %p221, %p222
      %s225 = sadd.s32 %s224, 1
      %p228 = scmp.eq.s32.totalorder %s22, 1
      %p229 = scmp.ne.s32.totalorder %s224, %s226
      %p230 = scmp.eq.s32.totalorder %s22, 0
      %p231 = por %p229, %p230
      %p232 = scmp.ne.s32.totalorder %s224, %s226
      %p233 = scmp.eq.s32.totalorder %s27, 1
      %p234 = por %p232, %p233
      %p235 = scmp.ne.s32.totalorder %s226, %s227
      %p236 = scmp.eq.s32.totalorder %s27, 0
      %p237 = por %p235, %p236
      %p238 = scmp.ne.s32.totalorder %s226, %s227
      %p239 = scmp.eq.s32.totalorder %s28, 1
      %p240 = por %p238, %p239
      %p242 = scmp.ne.s32.totalorder %s227, %s241
      %p243 = scmp.eq.s32.totalorder %s28, 0
      %p244 = por %p242, %p243
      %s246 = sadd.s32 %s245, 1
      %p249 = scmp.eq.s32.totalorder %s22, 1
      %p250 = scmp.ne.s32.totalorder %s245, %s247
      %p251 = scmp.eq.s32.totalorder %s22, 0
      %p252 = por %p250, %p251
      %p253 = scmp.ne.s32.totalorder %s245, %s247
      %p254 = scmp.eq.s32.totalorder %s27, 1
      %p255 = por %p253, %p254
      %p256 = scmp.ne.s32.totalorder %s247, %s248
      %p257 = scmp.eq.s32.totalorder %s27, 0
      %p258 = por %p256, %p257
      %p259 = scmp.ne.s32.totalorder %s247, %s248
      %p260 = scmp.eq.s32.totalorder %s28, 1
      %p261 = por %p259, %p260
      %p263 = scmp.ne.s32.totalorder %s248, %s262
      %p264 = scmp.eq.s32.totalorder %s28, 0
      %p265 = por %p263, %p264
      %s266 = ssub.s32 %s22, %s29
      %p267 = scmp.eq.s32.totalorder %s266, 0
      %s269 = sadd.s32 %s268, 1
      %s270 = scalar_select %p267, %s268, %s269
      %p273 = pneg %p267
      %p274 = scmp.eq.s32.totalorder %s22, 1
      %p275 = por %p273, %p274
      %p276 = scmp.ne.s32.totalorder %s268, %s271
      %p277 = scmp.eq.s32.totalorder %s22, 0
      %p278 = por %p276, %p277
      %p279 = scmp.ne.s32.totalorder %s268, %s271
      %p280 = scmp.eq.s32.totalorder %s27, 1
      %p281 = por %p279, %p280
      %p282 = scmp.ne.s32.totalorder %s271, %s272
      %p283 = scmp.eq.s32.totalorder %s27, 0
      %p284 = por %p282, %p283
      %p285 = scmp.ne.s32.totalorder %s271, %s272
      %p286 = scmp.eq.s32.totalorder %s28, 1
      %p287 = por %p285, %p286
      %p289 = scmp.ne.s32.totalorder %s272, %s288
      %p290 = scmp.eq.s32.totalorder %s28, 0
      %p291 = por %p289, %p290
      %p292 = scmp.le.s32.totalorder 1, %s22
      %p293 = scmp.lt.s32.totalorder %s22, 3
      %p294 = pnand %p292, %p293
      %p295 = pneg %p294
      // Predicated region
      $region9: #{convnet_forward.1} parent=5 // pred_check
        _
      $region10: #{convnet_forward.1} parent=5 // pred_check_branch
        %297 = sbr.rel (%p294) target = $region12
      $region11: #{convnet_forward.1} parent=5 // pred_region
        %s298 = ssub.s32 %s22, 1
        // Predicated region
        $region13: #{convnet_forward.1} parent=11 // pred_check
          %p299 = pneg %p69
        $region14: #{convnet_forward.1} parent=11 // pred_check_branch
          %301 = sbr.rel (%p299) target = $region16
        $region15: #{convnet_forward.1} parent=11 // pred_region
          %s303 = ssub.s32 20480, 20480
          %304 = vsyncadd [#allocation3], %s303
          %s305 = sshll.u32 [#allocation2], 4
          %s306 = int_to_ptr.vmem [resolvable:$true] %s305
          %311 = dma.hbm_to_vmem [thread:$0]  %s1, 20480, %s306, [#allocation3], 256, 256, 16
        $region16: #{convnet_forward.1} parent=11 // pred_fallthru
          _
        // Predicated region
        $region17: #{convnet_forward.1} parent=11 // pred_check
          %p312 = pneg %p90
        $region18: #{convnet_forward.1} parent=11 // pred_check_branch
          %314 = sbr.rel (%p312) target = $region20
        $region19: #{convnet_forward.1} parent=11 // pred_region
          _
        $region20: #{convnet_forward.1} parent=11 // pred_fallthru
          _
        // Predicated region
        $region21: #{convnet_forward.1} parent=11 // pred_check
          %p315 = pneg %p111
        $region22: #{convnet_forward.1} parent=11 // pred_check_branch
          %317 = sbr.rel (%p315) target = $region24
        $region23: #{convnet_forward.1} parent=11 // pred_region
          %s319 = ssub.s32 20480, 20480
          %320 = vsyncadd [#allocation6], %s319
          %s321 = sshll.u32 [#allocation5], 4
          %s322 = int_to_ptr.vmem [resolvable:$true] %s321
          %327 = dma.hbm_to_vmem [thread:$0]  %s3, 20480, %s322, [#allocation6], 256, 256, 16
        $region24: #{convnet_forward.1} parent=11 // pred_fallthru
          _
        // Predicated region
        $region25: #{convnet_forward.1} parent=11 // pred_check
          %p328 = pneg %p132
        $region26: #{convnet_forward.1} parent=11 // pred_check_branch
          %330 = sbr.rel (%p328) target = $region28
        $region27: #{convnet_forward.1} parent=11 // pred_region
          _
        $region28: #{convnet_forward.1} parent=11 // pred_fallthru
          _
        // Predicated region
        $region29: #{convnet_forward.1} parent=11 // pred_check
          %p331 = pneg %p153
        $region30: #{convnet_forward.1} parent=11 // pred_check_branch
          %333 = sbr.rel (%p331) target = $region32
        $region31: #{convnet_forward.1} parent=11 // pred_region
          _
        $region32: #{convnet_forward.1} parent=11 // pred_fallthru
          _
        // Predicated region
        $region33: #{convnet_forward.1} parent=11 // pred_check
          %p334 = pneg %p174
        $region34: #{convnet_forward.1} parent=11 // pred_check_branch
          %336 = sbr.rel (%p334) target = $region36
        $region35: #{convnet_forward.1} parent=11 // pred_region
          _
        $region36: #{convnet_forward.1} parent=11 // pred_fallthru
          _
        // Predicated region
        $region37: #{convnet_forward.1} parent=11 // pred_check
          %p337 = pneg %p195
        $region38: #{convnet_forward.1} parent=11 // pred_check_branch
          %339 = sbr.rel (%p337) target = $region40
        $region39: #{convnet_forward.1} parent=11 // pred_region
          _
        $region40: #{convnet_forward.1} parent=11 // pred_fallthru
          _
        // Predicated region
        $region41: #{convnet_forward.1} parent=11 // pred_check
          %p340 = pneg %p216
        $region42: #{convnet_forward.1} parent=11 // pred_check_branch
          %342 = sbr.rel (%p340) target = $region44
        $region43: #{convnet_forward.1} parent=11 // pred_region
          _
        $region44: #{convnet_forward.1} parent=11 // pred_fallthru
          _
        // Predicated region
        $region45: #{convnet_forward.1} parent=11 // pred_check
          %p343 = pneg %p237
        $region46: #{convnet_forward.1} parent=11 // pred_check_branch
          %345 = sbr.rel (%p343) target = $region48
        $region47: #{convnet_forward.1} parent=11 // pred_region
          _
        $region48: #{convnet_forward.1} parent=11 // pred_fallthru
          _
        // Predicated region
        $region49: #{convnet_forward.1} parent=11 // pred_check
          %p346 = pneg %p258
        $region50: #{convnet_forward.1} parent=11 // pred_check_branch
          %348 = sbr.rel (%p346) target = $region52
        $region51: #{convnet_forward.1} parent=11 // pred_region
          _
        $region52: #{convnet_forward.1} parent=11 // pred_fallthru
          _
      $region12: #{convnet_forward.1} parent=5 // pred_fallthru
        _
      %p349 = scmp.lt.s32.totalorder %s22, 2
      // Predicated region
      $region53: #{convnet_forward.1} parent=5 // pred_check
        %p350 = pneg %p349
      $region54: #{convnet_forward.1} parent=5 // pred_check_branch
        %352 = sbr.rel (%p350) target = $region56
      $region55: #{convnet_forward.1} parent=5 // pred_region
        // Predicated region
        $region57: #{convnet_forward.1} parent=55 // pred_check
          %p353 = pneg %p42
        $region58: #{convnet_forward.1} parent=55 // pred_check_branch
          %355 = sbr.rel (%p353) target = $region60
        $region59: #{convnet_forward.1} parent=55 // pred_region
          %p356 = scmp.lt.s32.totalorder %s22, 1
          %s357 = scalar_select %p356, %s22, 1
          %s358 = smul.addr %s357, 4
          %s359 = smul.addr %s358, 8
          %s360 = scalar_lea.vmem %s0, %s359
        $region60: #{convnet_forward.1} parent=55 // pred_fallthru
          _
      $region56: #{convnet_forward.1} parent=5 // pred_fallthru
        _
      %p361 = scmp.le.s32.totalorder 1, %s22
      %p362 = scmp.lt.s32.totalorder %s22, 3
      %p363 = pnand %p361, %p362
      %p364 = pneg %p363
      // Predicated region
      $region61: #{convnet_forward.1} parent=5 // pred_check
        _
      $region62: #{convnet_forward.1} parent=5 // pred_check_branch
        %366 = sbr.rel (%p363) target = $region64
      $region63: #{convnet_forward.1} parent=5 // pred_region
        %s367 = ssub.s32 %s22, 1
        // Predicated region
        $region65: #{convnet_forward.1} parent=63 // pred_check
          %p368 = pneg %p69
        $region66: #{convnet_forward.1} parent=63 // pred_check_branch
          %370 = sbr.rel (%p368) target = $region68
        $region67: #{convnet_forward.1} parent=63 // pred_region
          %371 = dma.done [#allocation3], 20480
        $region68: #{convnet_forward.1} parent=63 // pred_fallthru
          _
        // Predicated region
        $region69: #{convnet_forward.1} parent=63 // pred_check
          %p372 = pneg %p111
        $region70: #{convnet_forward.1} parent=63 // pred_check_branch
          %374 = sbr.rel (%p372) target = $region72
        $region71: #{convnet_forward.1} parent=63 // pred_region
          %375 = dma.done [#allocation6], 20480
        $region72: #{convnet_forward.1} parent=63 // pred_fallthru
          _
        %p376 = scmp.lt.s32.totalorder %s27, 1
        %s377 = scalar_select %p376, %s27, 1
        %s378 = smul.addr %s377, 4
        %s379 = smul.addr %s378, 8
        %s380 = scalar_lea.vmem %s0, %s379
        %p381 = pneg %p48
        %p382 = pneg %p45
        %p383 = pneg %p69
        %p384 = pneg %p66
        %p385 = pneg %p90
        %p386 = pneg %p87
        %p387 = pneg %p111
        %p388 = pneg %p108
        %p389 = pneg %p132
        %p390 = pneg %p129
        %p391 = pneg %p153
        %p392 = pneg %p150
        %p393 = pneg %p174
        %p394 = pneg %p171
        %p395 = pneg %p195
        %p396 = pneg %p192
        %p397 = pneg %p216
        %p398 = pneg %p213
        %p399 = pneg %p237
        %p400 = pneg %p234
        %p401 = pneg %p258
        %p402 = pneg %p255
        %p403 = pneg %p284
        %p404 = pneg %p281
        %s405 = sand.u32 %s271, 1
        %s406 = scalar_lea.sflag [#allocation4], %s405
        %s407 = sand.u32 %s271, 1
        %s408 = scalar_lea.vmem [#allocation7], %s407
        %p409 = scmp.lt.s32.totalorder %s27, 1
        %s410 = scalar_select %p409, %s27, 1
        %s411 = smul.addr %s410, 4
        %s412 = smul.addr %s411, 8
        %s413 = scalar_lea.vmem %s0, %s412
        %v414 = vld [vmem:[%s413] sm:$0xff]
        %v415 = vld [vmem:[%s413 + $0x8] sm:$0xff]
        %v416 = vld [vmem:[%s413 + $0x10] sm:$0xff]
        %v417 = vld [vmem:[%s413 + $0x18] sm:$0xff]
        %v418 = vld [vmem:[#allocation2] sm:$0xff]
        %v419 = vld [vmem:[#allocation2 + $0x8] sm:$0xff]
        %v420 = vld [vmem:[#allocation2 + $0x10] sm:$0xff]
        %v421 = vld [vmem:[#allocation2 + $0x18] sm:$0xff]
        %v422 = vld [vmem:[#allocation2 + $0x20] sm:$0xff]
        %v423 = vld [vmem:[#allocation2 + $0x28] sm:$0xff]
        %v424 = vld [vmem:[#allocation2 + $0x30] sm:$0xff]
        %v425 = vld [vmem:[#allocation2 + $0x38] sm:$0xff]
        %v426 = vld [vmem:[#allocation2 + $0x40] sm:$0xff]
        %v427 = vld [vmem:[#allocation2 + $0x48] sm:$0xff]
        %v428 = vld [vmem:[#allocation2 + $0x50] sm:$0xff]
        %v429 = vld [vmem:[#allocation2 + $0x58] sm:$0xff]
        %v430 = vld [vmem:[#allocation2 + $0x60] sm:$0xff]
        %v431 = vld [vmem:[#allocation2 + $0x68] sm:$0xff]
        %v432 = vld [vmem:[#allocation2 + $0x70] sm:$0xff]
        %v433 = vld [vmem:[#allocation2 + $0x78] sm:$0xff]
        %v434 = vld [vmem:[#allocation2 + $0x80] sm:$0xff]
        %v435 = vld [vmem:[#allocation2 + $0x88] sm:$0xff]
        %v436 = vld [vmem:[#allocation2 + $0x90] sm:$0xff]
        %v437 = vld [vmem:[#allocation2 + $0x98] sm:$0xff]
        %v438 = vld [vmem:[#allocation2 + $0xa0] sm:$0xff]
        %v439 = vld [vmem:[#allocation2 + $0xa8] sm:$0xff]
        %v440 = vld [vmem:[#allocation2 + $0xb0] sm:$0xff]
        %v441 = vld [vmem:[#allocation2 + $0xb8] sm:$0xff]
        %v442 = vld [vmem:[#allocation2 + $0xc0] sm:$0xff]
        %v443 = vld [vmem:[#allocation2 + $0xc8] sm:$0xff]
        %v444 = vld [vmem:[#allocation2 + $0xd0] sm:$0xff]
        %v445 = vld [vmem:[#allocation2 + $0xd8] sm:$0xff]
        %v446 = vld [vmem:[#allocation2 + $0xe0] sm:$0xff]
        %v447 = vld [vmem:[#allocation2 + $0xe8] sm:$0xff]
        %v448 = vld [vmem:[#allocation2 + $0xf0] sm:$0xff]
        %v449 = vld [vmem:[#allocation2 + $0xf8] sm:$0xff]
        %s450 = scalar_lea.vmem [#allocation2], 256
        %v451 = vld [vmem:[%s450] sm:$0xff]
        %v452 = vld [vmem:[%s450 + $0x8] sm:$0xff]
        %v453 = vld [vmem:[%s450 + $0x10] sm:$0xff]
        %v454 = vld [vmem:[%s450 + $0x18] sm:$0xff]
        %v455 = vld [vmem:[%s450 + $0x20] sm:$0xff]
        %v456 = vld [vmem:[%s450 + $0x28] sm:$0xff]
        %v457 = vld [vmem:[%s450 + $0x30] sm:$0xff]
        %v458 = vld [vmem:[%s450 + $0x38] sm:$0xff]
        %v459 = vld [vmem:[%s450 + $0x40] sm:$0xff]
        %v460 = vld [vmem:[%s450 + $0x48] sm:$0xff]
        %v461 = vld [vmem:[%s450 + $0x50] sm:$0xff]
        %v462 = vld [vmem:[%s450 + $0x58] sm:$0xff]
        %v463 = vld [vmem:[%s450 + $0x60] sm:$0xff]
        %v464 = vld [vmem:[%s450 + $0x68] sm:$0xff]
        %v465 = vld [vmem:[%s450 + $0x70] sm:$0xff]
        %v466 = vld [vmem:[%s450 + $0x78] sm:$0xff]
        %v467 = vld [vmem:[%s450 + $0x80] sm:$0xff]
        %v468 = vld [vmem:[%s450 + $0x88] sm:$0xff]
        %v469 = vld [vmem:[%s450 + $0x90] sm:$0xff]
        %v470 = vld [vmem:[%s450 + $0x98] sm:$0xff]
        %v471 = vld [vmem:[%s450 + $0xa0] sm:$0xff]
        %v472 = vld [vmem:[%s450 + $0xa8] sm:$0xff]
        %v473 = vld [vmem:[%s450 + $0xb0] sm:$0xff]
        %v474 = vld [vmem:[%s450 + $0xb8] sm:$0xff]
        %v475 = vld [vmem:[%s450 + $0xc0] sm:$0xff]
        %v476 = vld [vmem:[%s450 + $0xc8] sm:$0xff]
        %v477 = vld [vmem:[%s450 + $0xd0] sm:$0xff]
        %v478 = vld [vmem:[%s450 + $0xd8] sm:$0xff]
        %v479 = vld [vmem:[%s450 + $0xe0] sm:$0xff]
        %v480 = vld [vmem:[%s450 + $0xe8] sm:$0xff]
        %v481 = vld [vmem:[%s450 + $0xf0] sm:$0xff]
        %v482 = vld [vmem:[%s450 + $0xf8] sm:$0xff]
        %vm487 = vcmask 1046528
        %v488 = vrot.slane %v414, 1
        %v489 = vrot.slane %v415, 1
        %v490 = vsel %vm487, %v488, %v489
        %v491 = vrot.slane %v416, 1
        %v492 = vsel %vm487, %v489, %v491
        %v493 = vrot.slane %v417, 1
        %v494 = vsel %vm487, %v491, %v493
        %499 = vmatprep.subr.mxu0 %v452
        %500 = vmatpush1.msra.mxu0 %v451
        %501 = vmatprep.subr.mxu0 %v454
        %502 = vmatpush1.msra.mxu0 %v453
        %503 = vmatprep.subr.mxu0 %v456
        %504 = vmatpush1.msra.mxu0 %v455
        %505 = vmatprep.subr.mxu0 %v458
        %506 = vmatpush1.msra.mxu0 %v457
        %507 = vmatprep.subr.mxu0 %v460
        %508 = vmatpush1.msra.mxu0 %v459
        %509 = vmatprep.subr.mxu0 %v462
        %510 = vmatpush1.msra.mxu0 %v461
        %511 = vmatprep.subr.mxu0 %v464
        %512 = vmatpush1.msra.mxu0 %v463
        %513 = vmatprep.subr.mxu0 %v466
        %514 = vmatpush1.msra.mxu0 %v465
        %515 = vmatprep.subr.mxu0 %v468
        %516 = vmatpush1.msra.mxu0 %v467
        %517 = vmatprep.subr.mxu0 %v470
        %518 = vmatpush1.msra.mxu0 %v469
        %519 = vmatprep.subr.mxu0 %v472
        %520 = vmatpush1.msra.mxu0 %v471
        %521 = vmatprep.subr.mxu0 %v474
        %522 = vmatpush1.msra.mxu0 %v473
        %523 = vmatprep.subr.mxu0 %v476
        %524 = vmatpush1.msra.mxu0 %v475
        %525 = vmatprep.subr.mxu0 %v478
        %526 = vmatpush1.msra.mxu0 %v477
        %527 = vmatprep.subr.mxu0 %v480
        %528 = vmatpush1.msra.mxu0 %v479
        %529 = vmatprep.subr.mxu0 %v482
        %530 = vmatpush1.msra.mxu0 %v481
        %531 = vmatprep.subr.mxu0 0.0
        %532 = vmatpush1.msra.mxu0 0.0
        %533 = vmatprep.subr.mxu0 0.0
        %534 = vmatpush1.msra.mxu0 0.0
        %535 = vmatprep.subr.mxu0 0.0
        %536 = vmatpush1.msra.mxu0 0.0
        %537 = vmatprep.subr.mxu0 0.0
        %538 = vmatpush1.msra.mxu0 0.0
        %539 = vmatprep.subr.mxu0 0.0
        %540 = vmatpush1.msra.mxu0 0.0
        %541 = vmatprep.subr.mxu0 0.0
        %542 = vmatpush1.msra.mxu0 0.0
        %543 = vmatprep.subr.mxu0 0.0
        %544 = vmatpush1.msra.mxu0 0.0
        %545 = vmatprep.subr.mxu0 0.0
        %546 = vmatpush1.msra.mxu0 0.0
        %547 = vmatprep.subr.mxu0 0.0
        %548 = vmatpush1.msra.mxu0 0.0
        %549 = vmatprep.subr.mxu0 0.0
        %550 = vmatpush1.msra.mxu0 0.0
        %551 = vmatprep.subr.mxu0 0.0
        %552 = vmatpush1.msra.mxu0 0.0
        %553 = vmatprep.subr.mxu0 0.0
        %554 = vmatpush1.msra.mxu0 0.0
        %555 = vmatprep.subr.mxu0 0.0
        %556 = vmatpush1.msra.mxu0 0.0
        %557 = vmatprep.subr.mxu0 0.0
        %558 = vmatpush1.msra.mxu0 0.0
        %559 = vmatprep.subr.mxu0 0.0
        %560 = vmatpush1.msra.mxu0 0.0
        %561 = vmatprep.subr.mxu0 0.0
        %562 = vmatpush1.msra.mxu0 0.0
        %563 = vmatprep.mubr.f32.mxu0 0.0
        %564 = vmatmul.mubr.f32.gmra.mrb[0].mxu0 %v490
        %v565 = vpop.f32.mrb[0].mxu0
        %v566 = vadd.f32 0.0, %v565
        %v567 = vpop.f32.mrb[0].mxu0
        %v568 = vadd.f32 0.0, %v567
        %569 = vmatprep.mubr.f32.mxu0 0.0
        %570 = vmatmul.mubr.f32.gmra.mrb[0].mxu0 %v492
        %v571 = vpop.f32.mrb[0].mxu0
        %v572 = vadd.f32 0.0, %v571
        %v573 = vpop.f32.mrb[0].mxu0
        %v574 = vadd.f32 0.0, %v573
        %575 = vmatprep.mubr.f32.mxu0 0.0
        %576 = vmatmul.mubr.f32.gmra.mrb[0].mxu0 %v494
        %v577 = vpop.f32.mrb[0].mxu0
        %v578 = vadd.f32 0.0, %v577
        %v579 = vpop.f32.mrb[0].mxu0
        %v580 = vadd.f32 0.0, %v579
        %581 = vmatprep.mubr.f32.mxu0 0.0
        %582 = vmatmul.mubr.f32.gmra.mrb[0].mxu0 %v493
        %v583 = vpop.f32.mrb[0].mxu0
        %v584 = vadd.f32 0.0, %v583
        %v585 = vpop.f32.mrb[0].mxu0
        %v586 = vadd.f32 0.0, %v585
        %587 = vdwg.mxu0
        %588 = vmatprep.subr.mxu0 %v419
        %589 = vmatpush1.msra.mxu0 %v418
        %590 = vmatprep.subr.mxu0 %v421
        %591 = vmatpush1.msra.mxu0 %v420
        %592 = vmatprep.subr.mxu0 %v423
        %593 = vmatpush1.msra.mxu0 %v422
        %594 = vmatprep.subr.mxu0 %v425
        %595 = vmatpush1.msra.mxu0 %v424
        %596 = vmatprep.subr.mxu0 %v427
        %597 = vmatpush1.msra.mxu0 %v426
        %598 = vmatprep.subr.mxu0 %v429
        %599 = vmatpush1.msra.mxu0 %v428
        %600 = vmatprep.subr.mxu0 %v431
        %601 = vmatpush1.msra.mxu0 %v430
        %602 = vmatprep.subr.mxu0 %v433
        %603 = vmatpush1.msra.mxu0 %v432
        %604 = vmatprep.subr.mxu0 %v435
        %605 = vmatpush1.msra.mxu0 %v434
        %606 = vmatprep.subr.mxu0 %v437
        %607 = vmatpush1.msra.mxu0 %v436
        %608 = vmatprep.subr.mxu0 %v439
        %609 = vmatpush1.msra.mxu0 %v438
        %610 = vmatprep.subr.mxu0 %v441
        %611 = vmatpush1.msra.mxu0 %v440
        %612 = vmatprep.subr.mxu0 %v443
        %613 = vmatpush1.msra.mxu0 %v442
        %614 = vmatprep.subr.mxu0 %v445
        %615 = vmatpush1.msra.mxu0 %v444
        %616 = vmatprep.subr.mxu0 %v447
        %617 = vmatpush1.msra.mxu0 %v446
        %618 = vmatprep.subr.mxu0 %v449
        %619 = vmatpush1.msra.mxu0 %v448
        %620 = vmatprep.subr.mxu0 0.0
        %621 = vmatpush1.msra.mxu0 0.0
        %622 = vmatprep.subr.mxu0 0.0
        %623 = vmatpush1.msra.mxu0 0.0
        %624 = vmatprep.subr.mxu0 0.0
        %625 = vmatpush1.msra.mxu0 0.0
        %626 = vmatprep.subr.mxu0 0.0
        %627 = vmatpush1.msra.mxu0 0.0
        %628 = vmatprep.subr.mxu0 0.0
        %629 = vmatpush1.msra.mxu0 0.0
        %630 = vmatprep.subr.mxu0 0.0
        %631 = vmatpush1.msra.mxu0 0.0
        %632 = vmatprep.subr.mxu0 0.0
        %633 = vmatpush1.msra.mxu0 0.0
        %634 = vmatprep.subr.mxu0 0.0
        %635 = vmatpush1.msra.mxu0 0.0
        %636 = vmatprep.subr.mxu0 0.0
        %637 = vmatpush1.msra.mxu0 0.0
        %638 = vmatprep.subr.mxu0 0.0
        %639 = vmatpush1.msra.mxu0 0.0
        %640 = vmatprep.subr.mxu0 0.0
        %641 = vmatpush1.msra.mxu0 0.0
        %642 = vmatprep.subr.mxu0 0.0
        %643 = vmatpush1.msra.mxu0 0.0
        %644 = vmatprep.subr.mxu0 0.0
        %645 = vmatpush1.msra.mxu0 0.0
        %646 = vmatprep.subr.mxu0 0.0
        %647 = vmatpush1.msra.mxu0 0.0
        %648 = vmatprep.subr.mxu0 0.0
        %649 = vmatpush1.msra.mxu0 0.0
        %650 = vmatprep.subr.mxu0 0.0
        %651 = vmatpush1.msra.mxu0 0.0
        %652 = vmatprep.mubr.f32.mxu0 0.0
        %653 = vmatmul.mubr.f32.gmra.mrb[0].mxu0 %v414
        %v654 = vpop.f32.mrb[0].mxu0
        %v655 = vadd.f32 %v566, %v654
        %v656 = vpop.f32.mrb[0].mxu0
        %v657 = vadd.f32 %v568, %v656
        %658 = vmatprep.mubr.f32.mxu0 0.0
        %659 = vmatmul.mubr.f32.gmra.mrb[0].mxu0 %v415
        %v660 = vpop.f32.mrb[0].mxu0
        %v661 = vadd.f32 %v572, %v660
        %v662 = vpop.f32.mrb[0].mxu0
        %v663 = vadd.f32 %v574, %v662
        %664 = vmatprep.mubr.f32.mxu0 0.0
        %665 = vmatmul.mubr.f32.gmra.mrb[0].mxu0 %v416
        %v666 = vpop.f32.mrb[0].mxu0
        %v667 = vadd.f32 %v578, %v666
        %v668 = vpop.f32.mrb[0].mxu0
        %v669 = vadd.f32 %v580, %v668
        %670 = vmatprep.mubr.f32.mxu0 0.0
        %671 = vmatmul.mubr.f32.gmra.mrb[0].mxu0 %v417
        %v672 = vpop.f32.mrb[0].mxu0
        %v673 = vadd.f32 %v584, %v672
        %v674 = vpop.f32.mrb[0].mxu0
        %v675 = vadd.f32 %v586, %v674
        %676 = vdwg.mxu0
        %s677 = scalar_lea.vmem [#allocation2], 512
        %v678 = vld [vmem:[%s677] sm:$0xff]
        %v679 = vld [vmem:[%s677 + $0x8] sm:$0xff]
        %v680 = vld [vmem:[%s677 + $0x10] sm:$0xff]
        %v681 = vld [vmem:[%s677 + $0x18] sm:$0xff]
        %v682 = vld [vmem:[%s677 + $0x20] sm:$0xff]
        %v683 = vld [vmem:[%s677 + $0x28] sm:$0xff]
        %v684 = vld [vmem:[%s677 + $0x30] sm:$0xff]
        %v685 = vld [vmem:[%s677 + $0x38] sm:$0xff]
        %v686 = vld [vmem:[%s677 + $0x40] sm:$0xff]
        %v687 = vld [vmem:[%s677 + $0x48] sm:$0xff]
        %v688 = vld [vmem:[%s677 + $0x50] sm:$0xff]
        %v689 = vld [vmem:[%s677 + $0x58] sm:$0xff]
        %v690 = vld [vmem:[%s677 + $0x60] sm:$0xff]
        %v691 = vld [vmem:[%s677 + $0x68] sm:$0xff]
        %v692 = vld [vmem:[%s677 + $0x70] sm:$0xff]
        %v693 = vld [vmem:[%s677 + $0x78] sm:$0xff]
        %v694 = vld [vmem:[%s677 + $0x80] sm:$0xff]
        %v695 = vld [vmem:[%s677 + $0x88] sm:$0xff]
        %v696 = vld [vmem:[%s677 + $0x90] sm:$0xff]
        %v697 = vld [vmem:[%s677 + $0x98] sm:$0xff]
        %v698 = vld [vmem:[%s677 + $0xa0] sm:$0xff]
        %v699 = vld [vmem:[%s677 + $0xa8] sm:$0xff]
        %v700 = vld [vmem:[%s677 + $0xb0] sm:$0xff]
        %v701 = vld [vmem:[%s677 + $0xb8] sm:$0xff]
        %v702 = vld [vmem:[%s677 + $0xc0] sm:$0xff]
        %v703 = vld [vmem:[%s677 + $0xc8] sm:$0xff]
        %v704 = vld [vmem:[%s677 + $0xd0] sm:$0xff]
        %v705 = vld [vmem:[%s677 + $0xd8] sm:$0xff]
        %v706 = vld [vmem:[%s677 + $0xe0] sm:$0xff]
        %v707 = vld [vmem:[%s677 + $0xe8] sm:$0xff]
        %v708 = vld [vmem:[%s677 + $0xf0] sm:$0xff]
        %v709 = vld [vmem:[%s677 + $0xf8] sm:$0xff]
        %vm710 = vcmask 1045504
        %v711 = vrot.slane %v414, 2
        %v712 = vrot.slane %v415, 2
        %v713 = vsel %vm710, %v711, %v712
        %v714 = vrot.slane %v416, 2
        %v715 = vsel %vm710, %v712, %v714
        %v716 = vrot.slane %v417, 2
        %v717 = vsel %vm710, %v714, %v716
        %722 = vmatprep.subr.mxu0 %v679
        %723 = vmatpush1.msra.mxu0 %v678
        %724 = vmatprep.subr.mxu0 %v681
        %725 = vmatpush1.msra.mxu0 %v680
        %726 = vmatprep.subr.mxu0 %v683
        %727 = vmatpush1.msra.mxu0 %v682
        %728 = vmatprep.subr.mxu0 %v685
        %729 = vmatpush1.msra.mxu0 %v684
        %730 = vmatprep.subr.mxu0 %v687
        %731 = vmatpush1.msra.mxu0 %v686
        %732 = vmatprep.subr.mxu0 %v689
        %733 = vmatpush1.msra.mxu0 %v688
        %734 = vmatprep.subr.mxu0 %v691
        %735 = vmatpush1.msra.mxu0 %v690
        %736 = vmatprep.subr.mxu0 %v693
        %737 = vmatpush1.msra.mxu0 %v692
        %738 = vmatprep.subr.mxu0 %v695
        %739 = vmatpush1.msra.mxu0 %v694
        %740 = vmatprep.subr.mxu0 %v697
        %741 = vmatpush1.msra.mxu0 %v696
        %742 = vmatprep.subr.mxu0 %v699
        %743 = vmatpush1.msra.mxu0 %v698
        %744 = vmatprep.subr.mxu0 %v701
        %745 = vmatpush1.msra.mxu0 %v700
        %746 = vmatprep.subr.mxu0 %v703
        %747 = vmatpush1.msra.mxu0 %v702
        %748 = vmatprep.subr.mxu0 %v705
        %749 = vmatpush1.msra.mxu0 %v704
        %750 = vmatprep.subr.mxu0 %v707
        %751 = vmatpush1.msra.mxu0 %v706
        %752 = vmatprep.subr.mxu0 %v709
        %753 = vmatpush1.msra.mxu0 %v708
        %754 = vmatprep.subr.mxu0 0.0
        %755 = vmatpush1.msra.mxu0 0.0
        %756 = vmatprep.subr.mxu0 0.0
        %757 = vmatpush1.msra.mxu0 0.0
        %758 = vmatprep.subr.mxu0 0.0
        %759 = vmatpush1.msra.mxu0 0.0
        %760 = vmatprep.subr.mxu0 0.0
        %761 = vmatpush1.msra.mxu0 0.0
        %762 = vmatprep.subr.mxu0 0.0
        %763 = vmatpush1.msra.mxu0 0.0
        %764 = vmatprep.subr.mxu0 0.0
        %765 = vmatpush1.msra.mxu0 0.0
        %766 = vmatprep.subr.mxu0 0.0
        %767 = vmatpush1.msra.mxu0 0.0
        %768 = vmatprep.subr.mxu0 0.0
        %769 = vmatpush1.msra.mxu0 0.0
        %770 = vmatprep.subr.mxu0 0.0
        %771 = vmatpush1.msra.mxu0 0.0
        %772 = vmatprep.subr.mxu0 0.0
        %773 = vmatpush1.msra.mxu0 0.0
        %774 = vmatprep.subr.mxu0 0.0
        %775 = vmatpush1.msra.mxu0 0.0
        %776 = vmatprep.subr.mxu0 0.0
        %777 = vmatpush1.msra.mxu0 0.0
        %778 = vmatprep.subr.mxu0 0.0
        %779 = vmatpush1.msra.mxu0 0.0
        %780 = vmatprep.subr.mxu0 0.0
        %781 = vmatpush1.msra.mxu0 0.0
        %782 = vmatprep.subr.mxu0 0.0
        %783 = vmatpush1.msra.mxu0 0.0
        %784 = vmatprep.subr.mxu0 0.0
        %785 = vmatpush1.msra.mxu0 0.0
        %786 = vmatprep.mubr.f32.mxu0 0.0
        %787 = vmatmul.mubr.f32.gmra.mrb[0].mxu0 %v713
        %v788 = vpop.f32.mrb[0].mxu0
        %v789 = vadd.f32 0.0, %v788
        %v790 = vpop.f32.mrb[0].mxu0
        %v791 = vadd.f32 0.0, %v790
        %792 = vmatprep.mubr.f32.mxu0 0.0
        %793 = vmatmul.mubr.f32.gmra.mrb[0].mxu0 %v715
        %v794 = vpop.f32.mrb[0].mxu0
        %v795 = vadd.f32 0.0, %v794
        %v796 = vpop.f32.mrb[0].mxu0
        %v797 = vadd.f32 0.0, %v796
        %798 = vmatprep.mubr.f32.mxu0 0.0
        %799 = vmatmul.mubr.f32.gmra.mrb[0].mxu0 %v717
        %v800 = vpop.f32.mrb[0].mxu0
        %v801 = vadd.f32 0.0, %v800
        %v802 = vpop.f32.mrb[0].mxu0
        %v803 = vadd.f32 0.0, %v802
        %804 = vmatprep.mubr.f32.mxu0 0.0
        %805 = vmatmul.mubr.f32.gmra.mrb[0].mxu0 %v716
        %v806 = vpop.f32.mrb[0].mxu0
        %v807 = vadd.f32 0.0, %v806
        %v808 = vpop.f32.mrb[0].mxu0
        %v809 = vadd.f32 0.0, %v808
        %810 = vdwg.mxu0
        %v811 = vadd.f32 %v655, %v789
        %v812 = vadd.f32 %v657, %v791
        %v813 = vadd.f32 %v661, %v795
        %v814 = vadd.f32 %v663, %v797
        %v815 = vadd.f32 %v667, %v801
        %v816 = vadd.f32 %v669, %v803
        %v817 = vadd.f32 %v673, %v807
        %v818 = vadd.f32 %v675, %v809
        %s819 = scalar_lea.vmem [#allocation2], 768
        %v820 = vld [vmem:[%s819] sm:$0xff]
        %v821 = vld [vmem:[%s819 + $0x8] sm:$0xff]
        %v822 = vld [vmem:[%s819 + $0x10] sm:$0xff]
        %v823 = vld [vmem:[%s819 + $0x18] sm:$0xff]
        %v824 = vld [vmem:[%s819 + $0x20] sm:$0xff]
        %v825 = vld [vmem:[%s819 + $0x28] sm:$0xff]
        %v826 = vld [vmem:[%s819 + $0x30] sm:$0xff]
        %v827 = vld [vmem:[%s819 + $0x38] sm:$0xff]
        %v828 = vld [vmem:[%s819 + $0x40] sm:$0xff]
        %v829 = vld [vmem:[%s819 + $0x48] sm:$0xff]
        %v830 = vld [vmem:[%s819 + $0x50] sm:$0xff]
        %v831 = vld [vmem:[%s819 + $0x58] sm:$0xff]
        %v832 = vld [vmem:[%s819 + $0x60] sm:$0xff]
        %v833 = vld [vmem:[%s819 + $0x68] sm:$0xff]
        %v834 = vld [vmem:[%s819 + $0x70] sm:$0xff]
        %v835 = vld [vmem:[%s819 + $0x78] sm:$0xff]
        %v836 = vld [vmem:[%s819 + $0x80] sm:$0xff]
        %v837 = vld [vmem:[%s819 + $0x88] sm:$0xff]
        %v838 = vld [vmem:[%s819 + $0x90] sm:$0xff]
        %v839 = vld [vmem:[%s819 + $0x98] sm:$0xff]
        %v840 = vld [vmem:[%s819 + $0xa0] sm:$0xff]
        %v841 = vld [vmem:[%s819 + $0xa8] sm:$0xff]
        %v842 = vld [vmem:[%s819 + $0xb0] sm:$0xff]
        %v843 = vld [vmem:[%s819 + $0xb8] sm:$0xff]
        %v844 = vld [vmem:[%s819 + $0xc0] sm:$0xff]
        %v845 = vld [vmem:[%s819 + $0xc8] sm:$0xff]
        %v846 = vld [vmem:[%s819 + $0xd0] sm:$0xff]
        %v847 = vld [vmem:[%s819 + $0xd8] sm:$0xff]
        %v848 = vld [vmem:[%s819 + $0xe0] sm:$0xff]
        %v849 = vld [vmem:[%s819 + $0xe8] sm:$0xff]
        %v850 = vld [vmem:[%s819 + $0xf0] sm:$0xff]
        %v851 = vld [vmem:[%s819 + $0xf8] sm:$0xff]
        %vm852 = vcmask 1044480
        %v853 = vrot.slane %v414, 3
        %v854 = vrot.slane %v415, 3
        %v855 = vsel %vm852, %v853, %v854
        %v856 = vrot.slane %v416, 3
        %v857 = vsel %vm852, %v854, %v856
        %v858 = vrot.slane %v417, 3
        %v859 = vsel %vm852, %v856, %v858
        %864 = vmatprep.subr.mxu0 %v821
        %865 = vmatpush1.msra.mxu0 %v820
        %866 = vmatprep.subr.mxu0 %v823
        %867 = vmatpush1.msra.mxu0 %v822
        %868 = vmatprep.subr.mxu0 %v825
        %869 = vmatpush1.msra.mxu0 %v824
        %870 = vmatprep.subr.mxu0 %v827
        %871 = vmatpush1.msra.mxu0 %v826
        %872 = vmatprep.subr.mxu0 %v829
        %873 = vmatpush1.msra.mxu0 %v828
        %874 = vmatprep.subr.mxu0 %v831
        %875 = vmatpush1.msra.mxu0 %v830
        %876 = vmatprep.subr.mxu0 %v833
        %877 = vmatpush1.msra.mxu0 %v832
        %878 = vmatprep.subr.mxu0 %v835
        %879 = vmatpush1.msra.mxu0 %v834
        %880 = vmatprep.subr.mxu0 %v837
        %881 = vmatpush1.msra.mxu0 %v836
        %882 = vmatprep.subr.mxu0 %v839
        %883 = vmatpush1.msra.mxu0 %v838
        %884 = vmatprep.subr.mxu0 %v841
        %885 = vmatpush1.msra.mxu0 %v840
        %886 = vmatprep.subr.mxu0 %v843
        %887 = vmatpush1.msra.mxu0 %v842
        %888 = vmatprep.subr.mxu0 %v845
        %889 = vmatpush1.msra.mxu0 %v844
        %890 = vmatprep.subr.mxu0 %v847
        %891 = vmatpush1.msra.mxu0 %v846
        %892 = vmatprep.subr.mxu0 %v849
        %893 = vmatpush1.msra.mxu0 %v848
        %894 = vmatprep.subr.mxu0 %v851
        %895 = vmatpush1.msra.mxu0 %v850
        %896 = vmatprep.subr.mxu0 0.0
        %897 = vmatpush1.msra.mxu0 0.0
        %898 = vmatprep.subr.mxu0 0.0
        %899 = vmatpush1.msra.mxu0 0.0
        %900 = vmatprep.subr.mxu0 0.0
        %901 = vmatpush1.msra.mxu0 0.0
        %902 = vmatprep.subr.mxu0 0.0
        %903 = vmatpush1.msra.mxu0 0.0
        %904 = vmatprep.subr.mxu0 0.0
        %905 = vmatpush1.msra.mxu0 0.0
        %906 = vmatprep.subr.mxu0 0.0
        %907 = vmatpush1.msra.mxu0 0.0
        %908 = vmatprep.subr.mxu0 0.0
        %909 = vmatpush1.msra.mxu0 0.0
        %910 = vmatprep.subr.mxu0 0.0
        %911 = vmatpush1.msra.mxu0 0.0
        %912 = vmatprep.subr.mxu0 0.0
        %913 = vmatpush1.msra.mxu0 0.0
        %914 = vmatprep.subr.mxu0 0.0
        %915 = vmatpush1.msra.mxu0 0.0
        %916 = vmatprep.subr.mxu0 0.0
        %917 = vmatpush1.msra.mxu0 0.0
        %918 = vmatprep.subr.mxu0 0.0
        %919 = vmatpush1.msra.mxu0 0.0
        %920 = vmatprep.subr.mxu0 0.0
        %921 = vmatpush1.msra.mxu0 0.0
        %922 = vmatprep.subr.mxu0 0.0
        %923 = vmatpush1.msra.mxu0 0.0
        %924 = vmatprep.subr.mxu0 0.0
        %925 = vmatpush1.msra.mxu0 0.0
        %926 = vmatprep.subr.mxu0 0.0
        %927 = vmatpush1.msra.mxu0 0.0
        %928 = vmatprep.mubr.f32.mxu0 0.0
        %929 = vmatmul.mubr.f32.gmra.mrb[0].mxu0 %v855
        %v930 = vpop.f32.mrb[0].mxu0
        %v931 = vadd.f32 0.0, %v930
        %v932 = vpop.f32.mrb[0].mxu0
        %v933 = vadd.f32 0.0, %v932
        %934 = vmatprep.mubr.f32.mxu0 0.0
        %935 = vmatmul.mubr.f32.gmra.mrb[0].mxu0 %v857
        %v936 = vpop.f32.mrb[0].mxu0
        %v937 = vadd.f32 0.0, %v936
        %v938 = vpop.f32.mrb[0].mxu0
        %v939 = vadd.f32 0.0, %v938
        %940 = vmatprep.mubr.f32.mxu0 0.0
        %941 = vmatmul.mubr.f32.gmra.mrb[0].mxu0 %v859
        %v942 = vpop.f32.mrb[0].mxu0
        %v943 = vadd.f32 0.0, %v942
        %v944 = vpop.f32.mrb[0].mxu0
        %v945 = vadd.f32 0.0, %v944
        %946 = vmatprep.mubr.f32.mxu0 0.0
        %947 = vmatmul.mubr.f32.gmra.mrb[0].mxu0 %v858
        %v948 = vpop.f32.mrb[0].mxu0
        %v949 = vadd.f32 0.0, %v948
        %v950 = vpop.f32.mrb[0].mxu0
        %v951 = vadd.f32 0.0, %v950
        %952 = vdwg.mxu0
        %v953 = vadd.f32 %v811, %v931
        %v954 = vadd.f32 %v812, %v933
        %v955 = vadd.f32 %v813, %v937
        %v956 = vadd.f32 %v814, %v939
        %v957 = vadd.f32 %v815, %v943
        %v958 = vadd.f32 %v816, %v945
        %v959 = vadd.f32 %v817, %v949
        %v960 = vadd.f32 %v818, %v951
        %s961 = scalar_lea.vmem [#allocation2], 1024
        %v962 = vld [vmem:[%s961] sm:$0xff]
        %v963 = vld [vmem:[%s961 + $0x8] sm:$0xff]
        %v964 = vld [vmem:[%s961 + $0x10] sm:$0xff]
        %v965 = vld [vmem:[%s961 + $0x18] sm:$0xff]
        %v966 = vld [vmem:[%s961 + $0x20] sm:$0xff]
        %v967 = vld [vmem:[%s961 + $0x28] sm:$0xff]
        %v968 = vld [vmem:[%s961 + $0x30] sm:$0xff]
        %v969 = vld [vmem:[%s961 + $0x38] sm:$0xff]
        %v970 = vld [vmem:[%s961 + $0x40] sm:$0xff]
        %v971 = vld [vmem:[%s961 + $0x48] sm:$0xff]
        %v972 = vld [vmem:[%s961 + $0x50] sm:$0xff]
        %v973 = vld [vmem:[%s961 + $0x58] sm:$0xff]
        %v974 = vld [vmem:[%s961 + $0x60] sm:$0xff]
        %v975 = vld [vmem:[%s961 + $0x68] sm:$0xff]
        %v976 = vld [vmem:[%s961 + $0x70] sm:$0xff]
        %v977 = vld [vmem:[%s961 + $0x78] sm:$0xff]
        %v978 = vld [vmem:[%s961 + $0x80] sm:$0xff]
        %v979 = vld [vmem:[%s961 + $0x88] sm:$0xff]
        %v980 = vld [vmem:[%s961 + $0x90] sm:$0xff]
        %v981 = vld [vmem:[%s961 + $0x98] sm:$0xff]
        %v982 = vld [vmem:[%s961 + $0xa0] sm:$0xff]
        %v983 = vld [vmem:[%s961 + $0xa8] sm:$0xff]
        %v984 = vld [vmem:[%s961 + $0xb0] sm:$0xff]
        %v985 = vld [vmem:[%s961 + $0xb8] sm:$0xff]
        %v986 = vld [vmem:[%s961 + $0xc0] sm:$0xff]
        %v987 = vld [vmem:[%s961 + $0xc8] sm:$0xff]
        %v988 = vld [vmem:[%s961 + $0xd0] sm:$0xff]
        %v989 = vld [vmem:[%s961 + $0xd8] sm:$0xff]
        %v990 = vld [vmem:[%s961 + $0xe0] sm:$0xff]
        %v991 = vld [vmem:[%s961 + $0xe8] sm:$0xff]
        %v992 = vld [vmem:[%s961 + $0xf0] sm:$0xff]
        %v993 = vld [vmem:[%s961 + $0xf8] sm:$0xff]
        %vm994 = vcmask 1043456
        %v995 = vrot.slane %v414, 4
        %v996 = vrot.slane %v415, 4
        %v997 = vsel %vm994, %v995, %v996
        %v998 = vrot.slane %v416, 4
        %v999 = vsel %vm994, %v996, %v998
        %v1000 = vrot.slane %v417, 4
        %v1001 = vsel %vm994, %v998, %v1000
        %1006 = vmatprep.subr.mxu0 %v963
        %1007 = vmatpush1.msra.mxu0 %v962
        %1008 = vmatprep.subr.mxu0 %v965
        %1009 = vmatpush1.msra.mxu0 %v964
        %1010 = vmatprep.subr.mxu0 %v967
        %1011 = vmatpush1.msra.mxu0 %v966
        %1012 = vmatprep.subr.mxu0 %v969
        %1013 = vmatpush1.msra.mxu0 %v968
        %1014 = vmatprep.subr.mxu0 %v971
        %1015 = vmatpush1.msra.mxu0 %v970
        %1016 = vmatprep.subr.mxu0 %v973
        %1017 = vmatpush1.msra.mxu0 %v972
        %1018 = vmatprep.subr.mxu0 %v975
        %1019 = vmatpush1.msra.mxu0 %v974
        %1020 = vmatprep.subr.mxu0 %v977
        %1021 = vmatpush1.msra.mxu0 %v976
        %1022 = vmatprep.subr.mxu0 %v979
        %1023 = vmatpush1.msra.mxu0 %v978
        %1024 = vmatprep.subr.mxu0 %v981
        %1025 = vmatpush1.msra.mxu0 %v980
        %1026 = vmatprep.subr.mxu0 %v983
        %1027 = vmatpush1.msra.mxu0 %v982
        %1028 = vmatprep.subr.mxu0 %v985
        %1029 = vmatpush1.msra.mxu0 %v984
        %1030 = vmatprep.subr.mxu0 %v987
        %1031 = vmatpush1.msra.mxu0 %v986
        %1032 = vmatprep.subr.mxu0 %v989
        %1033 = vmatpush1.msra.mxu0 %v988
        %1034 = vmatprep.subr.mxu0 %v991
        %1035 = vmatpush1.msra.mxu0 %v990
        %1036 = vmatprep.subr.mxu0 %v993
        %1037 = vmatpush1.msra.mxu0 %v992
        %1038 = vmatprep.subr.mxu0 0.0
        %1039 = vmatpush1.msra.mxu0 0.0
        %1040 = vmatprep.subr.mxu0 0.0
        %1041 = vmatpush1.msra.mxu0 0.0
        %1042 = vmatprep.subr.mxu0 0.0
        %1043 = vmatpush1.msra.mxu0 0.0
        %1044 = vmatprep.subr.mxu0 0.0
        %1045 = vmatpush1.msra.mxu0 0.0
        %1046 = vmatprep.subr.mxu0 0.0
        %1047 = vmatpush1.msra.mxu0 0.0
        %1048 = vmatprep.subr.mxu0 0.0
        %1049 = vmatpush1.msra.mxu0 0.0
        %1050 = vmatprep.subr.mxu0 0.0
        %1051 = vmatpush1.msra.mxu0 0.0
        %1052 = vmatprep.subr.mxu0 0.0
        %1053 = vmatpush1.msra.mxu0 0.0
        %1054 = vmatprep.subr.mxu0 0.0
        %1055 = vmatpush1.msra.mxu0 0.0
        %1056 = vmatprep.subr.mxu0 0.0
        %1057 = vmatpush1.msra.mxu0 0.0
        %1058 = vmatprep.subr.mxu0 0.0
        %1059 = vmatpush1.msra.mxu0 0.0
        %1060 = vmatprep.subr.mxu0 0.0
        %1061 = vmatpush1.msra.mxu0 0.0
        %1062 = vmatprep.subr.mxu0 0.0
        %1063 = vmatpush1.msra.mxu0 0.0
        %1064 = vmatprep.subr.mxu0 0.0
        %1065 = vmatpush1.msra.mxu0 0.0
        %1066 = vmatprep.subr.mxu0 0.0
        %1067 = vmatpush1.msra.mxu0 0.0
        %1068 = vmatprep.subr.mxu0 0.0
        %1069 = vmatpush1.msra.mxu0 0.0
        %1070 = vmatprep.mubr.f32.mxu0 0.0
        %1071 = vmatmul.mubr.f32.gmra.mrb[0].mxu0 %v997
        %v1072 = vpop.f32.mrb[0].mxu0
        %v1073 = vadd.f32 0.0, %v1072
        %v1074 = vpop.f32.mrb[0].mxu0
        %v1075 = vadd.f32 0.0, %v1074
        %1076 = vmatprep.mubr.f32.mxu0 0.0
        %1077 = vmatmul.mubr.f32.gmra.mrb[0].mxu0 %v999
        %v1078 = vpop.f32.mrb[0].mxu0
        %v1079 = vadd.f32 0.0, %v1078
        %v1080 = vpop.f32.mrb[0].mxu0
        %v1081 = vadd.f32 0.0, %v1080
        %1082 = vmatprep.mubr.f32.mxu0 0.0
        %1083 = vmatmul.mubr.f32.gmra.mrb[0].mxu0 %v1001
        %v1084 = vpop.f32.mrb[0].mxu0
        %v1085 = vadd.f32 0.0, %v1084
        %v1086 = vpop.f32.mrb[0].mxu0
        %v1087 = vadd.f32 0.0, %v1086
        %1088 = vmatprep.mubr.f32.mxu0 0.0
        %1089 = vmatmul.mubr.f32.gmra.mrb[0].mxu0 %v1000
        %v1090 = vpop.f32.mrb[0].mxu0
        %v1091 = vadd.f32 0.0, %v1090
        %v1092 = vpop.f32.mrb[0].mxu0
        %v1093 = vadd.f32 0.0, %v1092
        %1094 = vdwg.mxu0
        %v1095 = vadd.f32 %v953, %v1073
        %v1096 = vadd.f32 %v954, %v1075
        %v1097 = vadd.f32 %v955, %v1079
        %v1098 = vadd.f32 %v956, %v1081
        %v1099 = vadd.f32 %v957, %v1085
        %v1100 = vadd.f32 %v958, %v1087
        %v1101 = vadd.f32 %v959, %v1091
        %v1102 = vadd.f32 %v960, %v1093
        %v1103 = vld [vmem:[%s2] sm:$0x3]
        %v1105 = vlaneseq
        %v1106 = vshrl.u32 %v1105, 7
        %v1107 = vsub.s32 0, %v1106
        %v1108 = vrot.slane %v1103, %v1107
        %v1109 = vlaneseq
        %v1110 = vshrl.u32 %v1109, 7
        %v1111 = vsub.s32 1, %v1110
        %v1112 = vrot.slane %v1103, %v1111
        %v1115 = vadd.f32 %v1095, %v1108
        %v1116 = vadd.f32 %v1096, %v1112
        %v1117 = vadd.f32 %v1097, %v1108
        %v1118 = vadd.f32 %v1098, %v1112
        %v1119 = vadd.f32 %v1099, %v1108
        %v1120 = vadd.f32 %v1100, %v1112
        %v1121 = vadd.f32 %v1101, %v1108
        %v1122 = vadd.f32 %v1102, %v1112
        %v1123 = vmax.f32 %v1115, 0.0
        %v1124 = vmax.f32 %v1116, 0.0
        %v1125 = vmax.f32 %v1117, 0.0
        %v1126 = vmax.f32 %v1118, 0.0
        %v1127 = vmax.f32 %v1119, 0.0
        %v1128 = vmax.f32 %v1120, 0.0
        %v1129 = vmax.f32 %v1121, 0.0
        %v1130 = vmax.f32 %v1122, 0.0
        %v1131 = vmax.f32 %v1123, %v1124
        %v1132 = vmax.f32 %v1125, %v1126
        %v1133 = vmax.f32 %v1127, %v1128
        %v1134 = vmax.f32 %v1129, %v1130
        %v1139 = vrot.slane %v1131, 1
        %v1140 = vrot.slane %v1132, 1
        %v1141 = vsel %vm487, %v1139, %v1140
        %v1142 = vrot.slane %v1133, 1
        %v1143 = vsel %vm487, %v1140, %v1142
        %v1144 = vrot.slane %v1134, 1
        %v1145 = vsel %vm487, %v1142, %v1144
        %v1150 = vmax.f32 %v1131, %v1141
        %v1151 = vmax.f32 %v1132, %v1143
        %v1152 = vmax.f32 %v1133, %v1145
        %v1153 = vmax.f32 %v1134, %v1144
        %v1154 = vlaneseq
        %v1155 = vshrl.u32 %v1154, 7
        %v1156 = vadd.s32 %v1155, 8
        %v1157 = vlaneseq
        %v1158 = vand.u32 %v1157, 127
        %v1159 = vmul.u32 %v1155, 2
        %v1160 = vmul.u32 %v1156, 2
        %vm1161 = vcmp.eq.s32.totalorder %v1158, %v1159
        %vm1162 = vcmp.eq.s32.totalorder %v1158, %v1160
        %v1163 = vsel %vm1161, 1.0, 0.0
        %v1164 = vsel %vm1162, 1.0, 0.0
        %vm1165 = vcmask 220160
        %v1167 = vsel %vm1165, %v1163, 0
        %v1170 = vsel %vm1165, %v1164, 0
        %vm1172 = vcmask 1042432
        %v1174 = vsel %vm1172, %v1153, 0
        %1176 = vmatprep.subr.mxu0 0.0
        %1177 = vmatpush1.msra.mxu0 %v1150
        %1178 = vmatprep.subr.mxu0 0.0
        %1179 = vmatpush1.msra.mxu0 %v1151
        %1180 = vmatprep.subr.mxu0 0.0
        %1181 = vmatpush1.msra.mxu0 %v1152
        %1182 = vmatprep.subr.mxu0 0.0
        %1183 = vmatpush1.msra.mxu0 %v1174
        %1184 = vmatprep.subr.mxu0 0.0
        %1185 = vmatpush1.msra.mxu0 0.0
        %1186 = vmatprep.subr.mxu0 0.0
        %1187 = vmatpush1.msra.mxu0 0.0
        %1188 = vmatprep.subr.mxu0 0.0
        %1189 = vmatpush1.msra.mxu0 0.0
        %1190 = vmatprep.subr.mxu0 0.0
        %1191 = vmatpush1.msra.mxu0 0.0
        %1192 = vmatprep.subr.mxu0 0.0
        %1193 = vmatpush1.msra.mxu0 0.0
        %1194 = vmatprep.subr.mxu0 0.0
        %1195 = vmatpush1.msra.mxu0 0.0
        %1196 = vmatprep.subr.mxu0 0.0
        %1197 = vmatpush1.msra.mxu0 0.0
        %1198 = vmatprep.subr.mxu0 0.0
        %1199 = vmatpush1.msra.mxu0 0.0
        %1200 = vmatprep.subr.mxu0 0.0
        %1201 = vmatpush1.msra.mxu0 0.0
        %1202 = vmatprep.subr.mxu0 0.0
        %1203 = vmatpush1.msra.mxu0 0.0
        %1204 = vmatprep.subr.mxu0 0.0
        %1205 = vmatpush1.msra.mxu0 0.0
        %1206 = vmatprep.subr.mxu0 0.0
        %1207 = vmatpush1.msra.mxu0 0.0
        %1208 = vmatprep.subr.mxu0 0.0
        %1209 = vmatpush1.msra.mxu0 0.0
        %1210 = vmatprep.subr.mxu0 0.0
        %1211 = vmatpush1.msra.mxu0 0.0
        %1212 = vmatprep.subr.mxu0 0.0
        %1213 = vmatpush1.msra.mxu0 0.0
        %1214 = vmatprep.subr.mxu0 0.0
        %1215 = vmatpush1.msra.mxu0 0.0
        %1216 = vmatprep.subr.mxu0 0.0
        %1217 = vmatpush1.msra.mxu0 0.0
        %1218 = vmatprep.subr.mxu0 0.0
        %1219 = vmatpush1.msra.mxu0 0.0
        %1220 = vmatprep.subr.mxu0 0.0
        %1221 = vmatpush1.msra.mxu0 0.0
        %1222 = vmatprep.subr.mxu0 0.0
        %1223 = vmatpush1.msra.mxu0 0.0
        %1224 = vmatprep.subr.mxu0 0.0
        %1225 = vmatpush1.msra.mxu0 0.0
        %1226 = vmatprep.subr.mxu0 0.0
        %1227 = vmatpush1.msra.mxu0 0.0
        %1228 = vmatprep.subr.mxu0 0.0
        %1229 = vmatpush1.msra.mxu0 0.0
        %1230 = vmatprep.subr.mxu0 0.0
        %1231 = vmatpush1.msra.mxu0 0.0
        %1232 = vmatprep.subr.mxu0 0.0
        %1233 = vmatpush1.msra.mxu0 0.0
        %1234 = vmatprep.subr.mxu0 0.0
        %1235 = vmatpush1.msra.mxu0 0.0
        %1236 = vmatprep.subr.mxu0 0.0
        %1237 = vmatpush1.msra.mxu0 0.0
        %1238 = vmatprep.subr.mxu0 0.0
        %1239 = vmatpush1.msra.mxu0 0.0
        %1240 = vmatprep.mubr.f32.mxu0 0.0
        %1241 = vmatmul.mubr.f32.gmra.mrb[0].mxu0 %v1167
        %v1242 = vpop.f32.mrb[0].mxu0
        %v1243 = vadd.f32 0.0, %v1242
        %v1244 = vpop.f32.mrb[0].mxu0
        %1245 = vmatprep.mubr.f32.mxu0 0.0
        %1246 = vmatmul.mubr.f32.gmra.mrb[0].mxu0 %v1170
        %v1247 = vpop.f32.mrb[0].mxu0
        %v1248 = vadd.f32 0.0, %v1247
        %v1249 = vpop.f32.mrb[0].mxu0
        %1250 = vdwg.mxu0
        %v1251 = vld [vmem:[#allocation5] sm:$0xff]
        %v1252 = vld [vmem:[#allocation5 + $0x8] sm:$0xff]
        %v1253 = vld [vmem:[#allocation5 + $0x10] sm:$0xff]
        %v1254 = vld [vmem:[#allocation5 + $0x18] sm:$0xff]
        %v1255 = vld [vmem:[#allocation5 + $0x20] sm:$0xff]
        %v1256 = vld [vmem:[#allocation5 + $0x28] sm:$0xff]
        %v1257 = vld [vmem:[#allocation5 + $0x30] sm:$0xff]
        %v1258 = vld [vmem:[#allocation5 + $0x38] sm:$0xff]
        %v1259 = vld [vmem:[#allocation5 + $0x40] sm:$0xff]
        %v1260 = vld [vmem:[#allocation5 + $0x48] sm:$0xff]
        %v1261 = vld [vmem:[#allocation5 + $0x50] sm:$0xff]
        %v1262 = vld [vmem:[#allocation5 + $0x58] sm:$0xff]
        %v1263 = vld [vmem:[#allocation5 + $0x60] sm:$0xff]
        %v1264 = vld [vmem:[#allocation5 + $0x68] sm:$0xff]
        %v1265 = vld [vmem:[#allocation5 + $0x70] sm:$0xff]
        %v1266 = vld [vmem:[#allocation5 + $0x78] sm:$0xff]
        %v1267 = vld [vmem:[#allocation5 + $0x80] sm:$0xff]
        %v1268 = vld [vmem:[#allocation5 + $0x88] sm:$0xff]
        %v1269 = vld [vmem:[#allocation5 + $0x90] sm:$0xff]
        %v1270 = vld [vmem:[#allocation5 + $0x98] sm:$0xff]
        %v1271 = vld [vmem:[#allocation5 + $0xa0] sm:$0xff]
        %v1272 = vld [vmem:[#allocation5 + $0xa8] sm:$0xff]
        %v1273 = vld [vmem:[#allocation5 + $0xb0] sm:$0xff]
        %v1274 = vld [vmem:[#allocation5 + $0xb8] sm:$0xff]
        %v1275 = vld [vmem:[#allocation5 + $0xc0] sm:$0xff]
        %v1276 = vld [vmem:[#allocation5 + $0xc8] sm:$0xff]
        %v1277 = vld [vmem:[#allocation5 + $0xd0] sm:$0xff]
        %v1278 = vld [vmem:[#allocation5 + $0xd8] sm:$0xff]
        %v1279 = vld [vmem:[#allocation5 + $0xe0] sm:$0xff]
        %v1280 = vld [vmem:[#allocation5 + $0xe8] sm:$0xff]
        %v1281 = vld [vmem:[#allocation5 + $0xf0] sm:$0xff]
        %v1282 = vld [vmem:[#allocation5 + $0xf8] sm:$0xff]
        %s1283 = scalar_lea.vmem [#allocation5], 256
        %v1284 = vld [vmem:[%s1283] sm:$0xff]
        %v1285 = vld [vmem:[%s1283 + $0x8] sm:$0xff]
        %v1286 = vld [vmem:[%s1283 + $0x10] sm:$0xff]
        %v1287 = vld [vmem:[%s1283 + $0x18] sm:$0xff]
        %v1288 = vld [vmem:[%s1283 + $0x20] sm:$0xff]
        %v1289 = vld [vmem:[%s1283 + $0x28] sm:$0xff]
        %v1290 = vld [vmem:[%s1283 + $0x30] sm:$0xff]
        %v1291 = vld [vmem:[%s1283 + $0x38] sm:$0xff]
        %v1292 = vld [vmem:[%s1283 + $0x40] sm:$0xff]
        %v1293 = vld [vmem:[%s1283 + $0x48] sm:$0xff]
        %v1294 = vld [vmem:[%s1283 + $0x50] sm:$0xff]
        %v1295 = vld [vmem:[%s1283 + $0x58] sm:$0xff]
        %v1296 = vld [vmem:[%s1283 + $0x60] sm:$0xff]
        %v1297 = vld [vmem:[%s1283 + $0x68] sm:$0xff]
        %v1298 = vld [vmem:[%s1283 + $0x70] sm:$0xff]
        %v1299 = vld [vmem:[%s1283 + $0x78] sm:$0xff]
        %v1300 = vld [vmem:[%s1283 + $0x80] sm:$0xff]
        %v1301 = vld [vmem:[%s1283 + $0x88] sm:$0xff]
        %v1302 = vld [vmem:[%s1283 + $0x90] sm:$0xff]
        %v1303 = vld [vmem:[%s1283 + $0x98] sm:$0xff]
        %v1304 = vld [vmem:[%s1283 + $0xa0] sm:$0xff]
        %v1305 = vld [vmem:[%s1283 + $0xa8] sm:$0xff]
        %v1306 = vld [vmem:[%s1283 + $0xb0] sm:$0xff]
        %v1307 = vld [vmem:[%s1283 + $0xb8] sm:$0xff]
        %v1308 = vld [vmem:[%s1283 + $0xc0] sm:$0xff]
        %v1309 = vld [vmem:[%s1283 + $0xc8] sm:$0xff]
        %v1310 = vld [vmem:[%s1283 + $0xd0] sm:$0xff]
        %v1311 = vld [vmem:[%s1283 + $0xd8] sm:$0xff]
        %v1312 = vld [vmem:[%s1283 + $0xe0] sm:$0xff]
        %v1313 = vld [vmem:[%s1283 + $0xe8] sm:$0xff]
        %v1314 = vld [vmem:[%s1283 + $0xf0] sm:$0xff]
        %v1315 = vld [vmem:[%s1283 + $0xf8] sm:$0xff]
        %v1318 = vrot.slane %v1243, 1
        %v1319 = vrot.slane %v1248, 1
        %v1320 = vsel %vm487, %v1318, %v1319
        %1323 = vmatprep.subr.mxu0 %v1285
        %1324 = vmatpush1.msra.mxu0 %v1284
        %1325 = vmatprep.subr.mxu0 %v1287
        %1326 = vmatpush1.msra.mxu0 %v1286
        %1327 = vmatprep.subr.mxu0 %v1289
        %1328 = vmatpush1.msra.mxu0 %v1288
        %1329 = vmatprep.subr.mxu0 %v1291
        %1330 = vmatpush1.msra.mxu0 %v1290
        %1331 = vmatprep.subr.mxu0 %v1293
        %1332 = vmatpush1.msra.mxu0 %v1292
        %1333 = vmatprep.subr.mxu0 %v1295
        %1334 = vmatpush1.msra.mxu0 %v1294
        %1335 = vmatprep.subr.mxu0 %v1297
        %1336 = vmatpush1.msra.mxu0 %v1296
        %1337 = vmatprep.subr.mxu0 %v1299
        %1338 = vmatpush1.msra.mxu0 %v1298
        %1339 = vmatprep.subr.mxu0 %v1301
        %1340 = vmatpush1.msra.mxu0 %v1300
        %1341 = vmatprep.subr.mxu0 %v1303
        %1342 = vmatpush1.msra.mxu0 %v1302
        %1343 = vmatprep.subr.mxu0 %v1305
        %1344 = vmatpush1.msra.mxu0 %v1304
        %1345 = vmatprep.subr.mxu0 %v1307
        %1346 = vmatpush1.msra.mxu0 %v1306
        %1347 = vmatprep.subr.mxu0 %v1309
        %1348 = vmatpush1.msra.mxu0 %v1308
        %1349 = vmatprep.subr.mxu0 %v1311
        %1350 = vmatpush1.msra.mxu0 %v1310
        %1351 = vmatprep.subr.mxu0 %v1313
        %1352 = vmatpush1.msra.mxu0 %v1312
        %1353 = vmatprep.subr.mxu0 %v1315
        %1354 = vmatpush1.msra.mxu0 %v1314
        %1355 = vmatprep.subr.mxu0 0.0
        %1356 = vmatpush1.msra.mxu0 0.0
        %1357 = vmatprep.subr.mxu0 0.0
        %1358 = vmatpush1.msra.mxu0 0.0
        %1359 = vmatprep.subr.mxu0 0.0
        %1360 = vmatpush1.msra.mxu0 0.0
        %1361 = vmatprep.subr.mxu0 0.0
        %1362 = vmatpush1.msra.mxu0 0.0
        %1363 = vmatprep.subr.mxu0 0.0
        %1364 = vmatpush1.msra.mxu0 0.0
        %1365 = vmatprep.subr.mxu0 0.0
        %1366 = vmatpush1.msra.mxu0 0.0
        %1367 = vmatprep.subr.mxu0 0.0
        %1368 = vmatpush1.msra.mxu0 0.0
        %1369 = vmatprep.subr.mxu0 0.0
        %1370 = vmatpush1.msra.mxu0 0.0
        %1371 = vmatprep.subr.mxu0 0.0
        %1372 = vmatpush1.msra.mxu0 0.0
        %1373 = vmatprep.subr.mxu0 0.0
        %1374 = vmatpush1.msra.mxu0 0.0
        %1375 = vmatprep.subr.mxu0 0.0
        %1376 = vmatpush1.msra.mxu0 0.0
        %1377 = vmatprep.subr.mxu0 0.0
        %1378 = vmatpush1.msra.mxu0 0.0
        %1379 = vmatprep.subr.mxu0 0.0
        %1380 = vmatpush1.msra.mxu0 0.0
        %1381 = vmatprep.subr.mxu0 0.0
        %1382 = vmatpush1.msra.mxu0 0.0
        %1383 = vmatprep.subr.mxu0 0.0
        %1384 = vmatpush1.msra.mxu0 0.0
        %1385 = vmatprep.subr.mxu0 0.0
        %1386 = vmatpush1.msra.mxu0 0.0
        %1387 = vmatprep.mubr.f32.mxu0 0.0
        %1388 = vmatmul.mubr.f32.gmra.mrb[0].mxu0 %v1320
        %v1389 = vpop.f32.mrb[0].mxu0
        %v1390 = vadd.f32 0.0, %v1389
        %v1391 = vpop.f32.mrb[0].mxu0
        %v1392 = vadd.f32 0.0, %v1391
        %1393 = vmatprep.mubr.f32.mxu0 0.0
        %1394 = vmatmul.mubr.f32.gmra.mrb[0].mxu0 %v1319
        %v1395 = vpop.f32.mrb[0].mxu0
        %v1396 = vadd.f32 0.0, %v1395
        %v1397 = vpop.f32.mrb[0].mxu0
        %v1398 = vadd.f32 0.0, %v1397
        %1399 = vdwg.mxu0
        %1400 = vmatprep.subr.mxu0 %v1252
        %1401 = vmatpush1.msra.mxu0 %v1251
        %1402 = vmatprep.subr.mxu0 %v1254
        %1403 = vmatpush1.msra.mxu0 %v1253
        %1404 = vmatprep.subr.mxu0 %v1256
        %1405 = vmatpush1.msra.mxu0 %v1255
        %1406 = vmatprep.subr.mxu0 %v1258
        %1407 = vmatpush1.msra.mxu0 %v1257
        %1408 = vmatprep.subr.mxu0 %v1260
        %1409 = vmatpush1.msra.mxu0 %v1259
        %1410 = vmatprep.subr.mxu0 %v1262
        %1411 = vmatpush1.msra.mxu0 %v1261
        %1412 = vmatprep.subr.mxu0 %v1264
        %1413 = vmatpush1.msra.mxu0 %v1263
        %1414 = vmatprep.subr.mxu0 %v1266
        %1415 = vmatpush1.msra.mxu0 %v1265
        %1416 = vmatprep.subr.mxu0 %v1268
        %1417 = vmatpush1.msra.mxu0 %v1267
        %1418 = vmatprep.subr.mxu0 %v1270
        %1419 = vmatpush1.msra.mxu0 %v1269
        %1420 = vmatprep.subr.mxu0 %v1272
        %1421 = vmatpush1.msra.mxu0 %v1271
        %1422 = vmatprep.subr.mxu0 %v1274
        %1423 = vmatpush1.msra.mxu0 %v1273
        %1424 = vmatprep.subr.mxu0 %v1276
        %1425 = vmatpush1.msra.mxu0 %v1275
        %1426 = vmatprep.subr.mxu0 %v1278
        %1427 = vmatpush1.msra.mxu0 %v1277
        %1428 = vmatprep.subr.mxu0 %v1280
        %1429 = vmatpush1.msra.mxu0 %v1279
        %1430 = vmatprep.subr.mxu0 %v1282
        %1431 = vmatpush1.msra.mxu0 %v1281
        %1432 = vmatprep.subr.mxu0 0.0
        %1433 = vmatpush1.msra.mxu0 0.0
        %1434 = vmatprep.subr.mxu0 0.0
        %1435 = vmatpush1.msra.mxu0 0.0
        %1436 = vmatprep.subr.mxu0 0.0
        %1437 = vmatpush1.msra.mxu0 0.0
        %1438 = vmatprep.subr.mxu0 0.0
        %1439 = vmatpush1.msra.mxu0 0.0
        %1440 = vmatprep.subr.mxu0 0.0
        %1441 = vmatpush1.msra.mxu0 0.0
        %1442 = vmatprep.subr.mxu0 0.0
        %1443 = vmatpush1.msra.mxu0 0.0
        %1444 = vmatprep.subr.mxu0 0.0
        %1445 = vmatpush1.msra.mxu0 0.0
        %1446 = vmatprep.subr.mxu0 0.0
        %1447 = vmatpush1.msra.mxu0 0.0
        %1448 = vmatprep.subr.mxu0 0.0
        %1449 = vmatpush1.msra.mxu0 0.0
        %1450 = vmatprep.subr.mxu0 0.0
        %1451 = vmatpush1.msra.mxu0 0.0
        %1452 = vmatprep.subr.mxu0 0.0
        %1453 = vmatpush1.msra.mxu0 0.0
        %1454 = vmatprep.subr.mxu0 0.0
        %1455 = vmatpush1.msra.mxu0 0.0
        %1456 = vmatprep.subr.mxu0 0.0
        %1457 = vmatpush1.msra.mxu0 0.0
        %1458 = vmatprep.subr.mxu0 0.0
        %1459 = vmatpush1.msra.mxu0 0.0
        %1460 = vmatprep.subr.mxu0 0.0
        %1461 = vmatpush1.msra.mxu0 0.0
        %1462 = vmatprep.subr.mxu0 0.0
        %1463 = vmatpush1.msra.mxu0 0.0
        %1464 = vmatprep.mubr.f32.mxu0 0.0
        %1465 = vmatmul.mubr.f32.gmra.mrb[0].mxu0 %v1243
        %v1466 = vpop.f32.mrb[0].mxu0
        %v1467 = vadd.f32 %v1390, %v1466
        %v1468 = vpop.f32.mrb[0].mxu0
        %v1469 = vadd.f32 %v1392, %v1468
        %1470 = vmatprep.mubr.f32.mxu0 0.0
        %1471 = vmatmul.mubr.f32.gmra.mrb[0].mxu0 %v1248
        %v1472 = vpop.f32.mrb[0].mxu0
        %v1473 = vadd.f32 %v1396, %v1472
        %v1474 = vpop.f32.mrb[0].mxu0
        %v1475 = vadd.f32 %v1398, %v1474
        %1476 = vdwg.mxu0
        %s1477 = scalar_lea.vmem [#allocation5], 512
        %v1478 = vld [vmem:[%s1477] sm:$0xff]
        %v1479 = vld [vmem:[%s1477 + $0x8] sm:$0xff]
        %v1480 = vld [vmem:[%s1477 + $0x10] sm:$0xff]
        %v1481 = vld [vmem:[%s1477 + $0x18] sm:$0xff]
        %v1482 = vld [vmem:[%s1477 + $0x20] sm:$0xff]
        %v1483 = vld [vmem:[%s1477 + $0x28] sm:$0xff]
        %v1484 = vld [vmem:[%s1477 + $0x30] sm:$0xff]
        %v1485 = vld [vmem:[%s1477 + $0x38] sm:$0xff]
        %v1486 = vld [vmem:[%s1477 + $0x40] sm:$0xff]
        %v1487 = vld [vmem:[%s1477 + $0x48] sm:$0xff]
        %v1488 = vld [vmem:[%s1477 + $0x50] sm:$0xff]
        %v1489 = vld [vmem:[%s1477 + $0x58] sm:$0xff]
        %v1490 = vld [vmem:[%s1477 + $0x60] sm:$0xff]
        %v1491 = vld [vmem:[%s1477 + $0x68] sm:$0xff]
        %v1492 = vld [vmem:[%s1477 + $0x70] sm:$0xff]
        %v1493 = vld [vmem:[%s1477 + $0x78] sm:$0xff]
        %v1494 = vld [vmem:[%s1477 + $0x80] sm:$0xff]
        %v1495 = vld [vmem:[%s1477 + $0x88] sm:$0xff]
        %v1496 = vld [vmem:[%s1477 + $0x90] sm:$0xff]
        %v1497 = vld [vmem:[%s1477 + $0x98] sm:$0xff]
        %v1498 = vld [vmem:[%s1477 + $0xa0] sm:$0xff]
        %v1499 = vld [vmem:[%s1477 + $0xa8] sm:$0xff]
        %v1500 = vld [vmem:[%s1477 + $0xb0] sm:$0xff]
        %v1501 = vld [vmem:[%s1477 + $0xb8] sm:$0xff]
        %v1502 = vld [vmem:[%s1477 + $0xc0] sm:$0xff]
        %v1503 = vld [vmem:[%s1477 + $0xc8] sm:$0xff]
        %v1504 = vld [vmem:[%s1477 + $0xd0] sm:$0xff]
        %v1505 = vld [vmem:[%s1477 + $0xd8] sm:$0xff]
        %v1506 = vld [vmem:[%s1477 + $0xe0] sm:$0xff]
        %v1507 = vld [vmem:[%s1477 + $0xe8] sm:$0xff]
        %v1508 = vld [vmem:[%s1477 + $0xf0] sm:$0xff]
        %v1509 = vld [vmem:[%s1477 + $0xf8] sm:$0xff]
        %v1510 = vrot.slane %v1243, 2
        %v1511 = vrot.slane %v1248, 2
        %v1512 = vsel %vm710, %v1510, %v1511
        %1515 = vmatprep.subr.mxu0 %v1479
        %1516 = vmatpush1.msra.mxu0 %v1478
        %1517 = vmatprep.subr.mxu0 %v1481
        %1518 = vmatpush1.msra.mxu0 %v1480
        %1519 = vmatprep.subr.mxu0 %v1483
        %1520 = vmatpush1.msra.mxu0 %v1482
        %1521 = vmatprep.subr.mxu0 %v1485
        %1522 = vmatpush1.msra.mxu0 %v1484
        %1523 = vmatprep.subr.mxu0 %v1487
        %1524 = vmatpush1.msra.mxu0 %v1486
        %1525 = vmatprep.subr.mxu0 %v1489
        %1526 = vmatpush1.msra.mxu0 %v1488
        %1527 = vmatprep.subr.mxu0 %v1491
        %1528 = vmatpush1.msra.mxu0 %v1490
        %1529 = vmatprep.subr.mxu0 %v1493
        %1530 = vmatpush1.msra.mxu0 %v1492
        %1531 = vmatprep.subr.mxu0 %v1495
        %1532 = vmatpush1.msra.mxu0 %v1494
        %1533 = vmatprep.subr.mxu0 %v1497
        %1534 = vmatpush1.msra.mxu0 %v1496
        %1535 = vmatprep.subr.mxu0 %v1499
        %1536 = vmatpush1.msra.mxu0 %v1498
        %1537 = vmatprep.subr.mxu0 %v1501
        %1538 = vmatpush1.msra.mxu0 %v1500
        %1539 = vmatprep.subr.mxu0 %v1503
        %1540 = vmatpush1.msra.mxu0 %v1502
        %1541 = vmatprep.subr.mxu0 %v1505
        %1542 = vmatpush1.msra.mxu0 %v1504
        %1543 = vmatprep.subr.mxu0 %v1507
        %1544 = vmatpush1.msra.mxu0 %v1506
        %1545 = vmatprep.subr.mxu0 %v1509
        %1546 = vmatpush1.msra.mxu0 %v1508
        %1547 = vmatprep.subr.mxu0 0.0
        %1548 = vmatpush1.msra.mxu0 0.0
        %1549 = vmatprep.subr.mxu0 0.0
        %1550 = vmatpush1.msra.mxu0 0.0
        %1551 = vmatprep.subr.mxu0 0.0
        %1552 = vmatpush1.msra.mxu0 0.0
        %1553 = vmatprep.subr.mxu0 0.0
        %1554 = vmatpush1.msra.mxu0 0.0
        %1555 = vmatprep.subr.mxu0 0.0
        %1556 = vmatpush1.msra.mxu0 0.0
        %1557 = vmatprep.subr.mxu0 0.0
        %1558 = vmatpush1.msra.mxu0 0.0
        %1559 = vmatprep.subr.mxu0 0.0
        %1560 = vmatpush1.msra.mxu0 0.0
        %1561 = vmatprep.subr.mxu0 0.0
        %1562 = vmatpush1.msra.mxu0 0.0
        %1563 = vmatprep.subr.mxu0 0.0
        %1564 = vmatpush1.msra.mxu0 0.0
        %1565 = vmatprep.subr.mxu0 0.0
        %1566 = vmatpush1.msra.mxu0 0.0
        %1567 = vmatprep.subr.mxu0 0.0
        %1568 = vmatpush1.msra.mxu0 0.0
        %1569 = vmatprep.subr.mxu0 0.0
        %1570 = vmatpush1.msra.mxu0 0.0
        %1571 = vmatprep.subr.mxu0 0.0
        %1572 = vmatpush1.msra.mxu0 0.0
        %1573 = vmatprep.subr.mxu0 0.0
        %1574 = vmatpush1.msra.mxu0 0.0
        %1575 = vmatprep.subr.mxu0 0.0
        %1576 = vmatpush1.msra.mxu0 0.0
        %1577 = vmatprep.subr.mxu0 0.0
        %1578 = vmatpush1.msra.mxu0 0.0
        %1579 = vmatprep.mubr.f32.mxu0 0.0
        %1580 = vmatmul.mubr.f32.gmra.mrb[0].mxu0 %v1512
        %v1581 = vpop.f32.mrb[0].mxu0
        %v1582 = vadd.f32 0.0, %v1581
        %v1583 = vpop.f32.mrb[0].mxu0
        %v1584 = vadd.f32 0.0, %v1583
        %1585 = vmatprep.mubr.f32.mxu0 0.0
        %1586 = vmatmul.mubr.f32.gmra.mrb[0].mxu0 %v1511
        %v1587 = vpop.f32.mrb[0].mxu0
        %v1588 = vadd.f32 0.0, %v1587
        %v1589 = vpop.f32.mrb[0].mxu0
        %v1590 = vadd.f32 0.0, %v1589
        %1591 = vdwg.mxu0
        %v1592 = vadd.f32 %v1467, %v1582
        %v1593 = vadd.f32 %v1469, %v1584
        %v1594 = vadd.f32 %v1473, %v1588
        %v1595 = vadd.f32 %v1475, %v1590
        %s1596 = scalar_lea.vmem [#allocation5], 768
        %v1597 = vld [vmem:[%s1596] sm:$0xff]
        %v1598 = vld [vmem:[%s1596 + $0x8] sm:$0xff]
        %v1599 = vld [vmem:[%s1596 + $0x10] sm:$0xff]
        %v1600 = vld [vmem:[%s1596 + $0x18] sm:$0xff]
        %v1601 = vld [vmem:[%s1596 + $0x20] sm:$0xff]
        %v1602 = vld [vmem:[%s1596 + $0x28] sm:$0xff]
        %v1603 = vld [vmem:[%s1596 + $0x30] sm:$0xff]
        %v1604 = vld [vmem:[%s1596 + $0x38] sm:$0xff]
        %v1605 = vld [vmem:[%s1596 + $0x40] sm:$0xff]
        %v1606 = vld [vmem:[%s1596 + $0x48] sm:$0xff]
        %v1607 = vld [vmem:[%s1596 + $0x50] sm:$0xff]
        %v1608 = vld [vmem:[%s1596 + $0x58] sm:$0xff]
        %v1609 = vld [vmem:[%s1596 + $0x60] sm:$0xff]
        %v1610 = vld [vmem:[%s1596 + $0x68] sm:$0xff]
        %v1611 = vld [vmem:[%s1596 + $0x70] sm:$0xff]
        %v1612 = vld [vmem:[%s1596 + $0x78] sm:$0xff]
        %v1613 = vld [vmem:[%s1596 + $0x80] sm:$0xff]
        %v1614 = vld [vmem:[%s1596 + $0x88] sm:$0xff]
        %v1615 = vld [vmem:[%s1596 + $0x90] sm:$0xff]
        %v1616 = vld [vmem:[%s1596 + $0x98] sm:$0xff]
        %v1617 = vld [vmem:[%s1596 + $0xa0] sm:$0xff]
        %v1618 = vld [vmem:[%s1596 + $0xa8] sm:$0xff]
        %v1619 = vld [vmem:[%s1596 + $0xb0] sm:$0xff]
        %v1620 = vld [vmem:[%s1596 + $0xb8] sm:$0xff]
        %v1621 = vld [vmem:[%s1596 + $0xc0] sm:$0xff]
        %v1622 = vld [vmem:[%s1596 + $0xc8] sm:$0xff]
        %v1623 = vld [vmem:[%s1596 + $0xd0] sm:$0xff]
        %v1624 = vld [vmem:[%s1596 + $0xd8] sm:$0xff]
        %v1625 = vld [vmem:[%s1596 + $0xe0] sm:$0xff]
        %v1626 = vld [vmem:[%s1596 + $0xe8] sm:$0xff]
        %v1627 = vld [vmem:[%s1596 + $0xf0] sm:$0xff]
        %v1628 = vld [vmem:[%s1596 + $0xf8] sm:$0xff]
        %v1629 = vrot.slane %v1243, 3
        %v1630 = vrot.slane %v1248, 3
        %v1631 = vsel %vm852, %v1629, %v1630
        %1634 = vmatprep.subr.mxu0 %v1598
        %1635 = vmatpush1.msra.mxu0 %v1597
        %1636 = vmatprep.subr.mxu0 %v1600
        %1637 = vmatpush1.msra.mxu0 %v1599
        %1638 = vmatprep.subr.mxu0 %v1602
        %1639 = vmatpush1.msra.mxu0 %v1601
        %1640 = vmatprep.subr.mxu0 %v1604
        %1641 = vmatpush1.msra.mxu0 %v1603
        %1642 = vmatprep.subr.mxu0 %v1606
        %1643 = vmatpush1.msra.mxu0 %v1605
        %1644 = vmatprep.subr.mxu0 %v1608
        %1645 = vmatpush1.msra.mxu0 %v1607
        %1646 = vmatprep.subr.mxu0 %v1610
        %1647 = vmatpush1.msra.mxu0 %v1609
        %1648 = vmatprep.subr.mxu0 %v1612
        %1649 = vmatpush1.msra.mxu0 %v1611
        %1650 = vmatprep.subr.mxu0 %v1614
        %1651 = vmatpush1.msra.mxu0 %v1613
        %1652 = vmatprep.subr.mxu0 %v1616
        %1653 = vmatpush1.msra.mxu0 %v1615
        %1654 = vmatprep.subr.mxu0 %v1618
        %1655 = vmatpush1.msra.mxu0 %v1617
        %1656 = vmatprep.subr.mxu0 %v1620
        %1657 = vmatpush1.msra.mxu0 %v1619
        %1658 = vmatprep.subr.mxu0 %v1622
        %1659 = vmatpush1.msra.mxu0 %v1621
        %1660 = vmatprep.subr.mxu0 %v1624
        %1661 = vmatpush1.msra.mxu0 %v1623
        %1662 = vmatprep.subr.mxu0 %v1626
        %1663 = vmatpush1.msra.mxu0 %v1625
        %1664 = vmatprep.subr.mxu0 %v1628
        %1665 = vmatpush1.msra.mxu0 %v1627
        %1666 = vmatprep.subr.mxu0 0.0
        %1667 = vmatpush1.msra.mxu0 0.0
        %1668 = vmatprep.subr.mxu0 0.0
        %1669 = vmatpush1.msra.mxu0 0.0
        %1670 = vmatprep.subr.mxu0 0.0
        %1671 = vmatpush1.msra.mxu0 0.0
        %1672 = vmatprep.subr.mxu0 0.0
        %1673 = vmatpush1.msra.mxu0 0.0
        %1674 = vmatprep.subr.mxu0 0.0
        %1675 = vmatpush1.msra.mxu0 0.0
        %1676 = vmatprep.subr.mxu0 0.0
        %1677 = vmatpush1.msra.mxu0 0.0
        %1678 = vmatprep.subr.mxu0 0.0
        %1679 = vmatpush1.msra.mxu0 0.0
        %1680 = vmatprep.subr.mxu0 0.0
        %1681 = vmatpush1.msra.mxu0 0.0
        %1682 = vmatprep.subr.mxu0 0.0
        %1683 = vmatpush1.msra.mxu0 0.0
        %1684 = vmatprep.subr.mxu0 0.0
        %1685 = vmatpush1.msra.mxu0 0.0
        %1686 = vmatprep.subr.mxu0 0.0
        %1687 = vmatpush1.msra.mxu0 0.0
        %1688 = vmatprep.subr.mxu0 0.0
        %1689 = vmatpush1.msra.mxu0 0.0
        %1690 = vmatprep.subr.mxu0 0.0
        %1691 = vmatpush1.msra.mxu0 0.0
        %1692 = vmatprep.subr.mxu0 0.0
        %1693 = vmatpush1.msra.mxu0 0.0
        %1694 = vmatprep.subr.mxu0 0.0
        %1695 = vmatpush1.msra.mxu0 0.0
        %1696 = vmatprep.subr.mxu0 0.0
        %1697 = vmatpush1.msra.mxu0 0.0
        %1698 = vmatprep.mubr.f32.mxu0 0.0
        %1699 = vmatmul.mubr.f32.gmra.mrb[0].mxu0 %v1631
        %v1700 = vpop.f32.mrb[0].mxu0
        %v1701 = vadd.f32 0.0, %v1700
        %v1702 = vpop.f32.mrb[0].mxu0
        %v1703 = vadd.f32 0.0, %v1702
        %1704 = vmatprep.mubr.f32.mxu0 0.0
        %1705 = vmatmul.mubr.f32.gmra.mrb[0].mxu0 %v1630
        %v1706 = vpop.f32.mrb[0].mxu0
        %v1707 = vadd.f32 0.0, %v1706
        %v1708 = vpop.f32.mrb[0].mxu0
        %v1709 = vadd.f32 0.0, %v1708
        %1710 = vdwg.mxu0
        %v1711 = vadd.f32 %v1592, %v1701
        %v1712 = vadd.f32 %v1593, %v1703
        %v1713 = vadd.f32 %v1594, %v1707
        %v1714 = vadd.f32 %v1595, %v1709
        %s1715 = scalar_lea.vmem [#allocation5], 1024
        %v1716 = vld [vmem:[%s1715] sm:$0xff]
        %v1717 = vld [vmem:[%s1715 + $0x8] sm:$0xff]
        %v1718 = vld [vmem:[%s1715 + $0x10] sm:$0xff]
        %v1719 = vld [vmem:[%s1715 + $0x18] sm:$0xff]
        %v1720 = vld [vmem:[%s1715 + $0x20] sm:$0xff]
        %v1721 = vld [vmem:[%s1715 + $0x28] sm:$0xff]
        %v1722 = vld [vmem:[%s1715 + $0x30] sm:$0xff]
        %v1723 = vld [vmem:[%s1715 + $0x38] sm:$0xff]
        %v1724 = vld [vmem:[%s1715 + $0x40] sm:$0xff]
        %v1725 = vld [vmem:[%s1715 + $0x48] sm:$0xff]
        %v1726 = vld [vmem:[%s1715 + $0x50] sm:$0xff]
        %v1727 = vld [vmem:[%s1715 + $0x58] sm:$0xff]
        %v1728 = vld [vmem:[%s1715 + $0x60] sm:$0xff]
        %v1729 = vld [vmem:[%s1715 + $0x68] sm:$0xff]
        %v1730 = vld [vmem:[%s1715 + $0x70] sm:$0xff]
        %v1731 = vld [vmem:[%s1715 + $0x78] sm:$0xff]
        %v1732 = vld [vmem:[%s1715 + $0x80] sm:$0xff]
        %v1733 = vld [vmem:[%s1715 + $0x88] sm:$0xff]
        %v1734 = vld [vmem:[%s1715 + $0x90] sm:$0xff]
        %v1735 = vld [vmem:[%s1715 + $0x98] sm:$0xff]
        %v1736 = vld [vmem:[%s1715 + $0xa0] sm:$0xff]
        %v1737 = vld [vmem:[%s1715 + $0xa8] sm:$0xff]
        %v1738 = vld [vmem:[%s1715 + $0xb0] sm:$0xff]
        %v1739 = vld [vmem:[%s1715 + $0xb8] sm:$0xff]
        %v1740 = vld [vmem:[%s1715 + $0xc0] sm:$0xff]
        %v1741 = vld [vmem:[%s1715 + $0xc8] sm:$0xff]
        %v1742 = vld [vmem:[%s1715 + $0xd0] sm:$0xff]
        %v1743 = vld [vmem:[%s1715 + $0xd8] sm:$0xff]
        %v1744 = vld [vmem:[%s1715 + $0xe0] sm:$0xff]
        %v1745 = vld [vmem:[%s1715 + $0xe8] sm:$0xff]
        %v1746 = vld [vmem:[%s1715 + $0xf0] sm:$0xff]
        %v1747 = vld [vmem:[%s1715 + $0xf8] sm:$0xff]
        %v1748 = vrot.slane %v1243, 4
        %v1749 = vrot.slane %v1248, 4
        %v1750 = vsel %vm994, %v1748, %v1749
        %1753 = vmatprep.subr.mxu0 %v1717
        %1754 = vmatpush1.msra.mxu0 %v1716
        %1755 = vmatprep.subr.mxu0 %v1719
        %1756 = vmatpush1.msra.mxu0 %v1718
        %1757 = vmatprep.subr.mxu0 %v1721
        %1758 = vmatpush1.msra.mxu0 %v1720
        %1759 = vmatprep.subr.mxu0 %v1723
        %1760 = vmatpush1.msra.mxu0 %v1722
        %1761 = vmatprep.subr.mxu0 %v1725
        %1762 = vmatpush1.msra.mxu0 %v1724
        %1763 = vmatprep.subr.mxu0 %v1727
        %1764 = vmatpush1.msra.mxu0 %v1726
        %1765 = vmatprep.subr.mxu0 %v1729
        %1766 = vmatpush1.msra.mxu0 %v1728
        %1767 = vmatprep.subr.mxu0 %v1731
        %1768 = vmatpush1.msra.mxu0 %v1730
        %1769 = vmatprep.subr.mxu0 %v1733
        %1770 = vmatpush1.msra.mxu0 %v1732
        %1771 = vmatprep.subr.mxu0 %v1735
        %1772 = vmatpush1.msra.mxu0 %v1734
        %1773 = vmatprep.subr.mxu0 %v1737
        %1774 = vmatpush1.msra.mxu0 %v1736
        %1775 = vmatprep.subr.mxu0 %v1739
        %1776 = vmatpush1.msra.mxu0 %v1738
        %1777 = vmatprep.subr.mxu0 %v1741
        %1778 = vmatpush1.msra.mxu0 %v1740
        %1779 = vmatprep.subr.mxu0 %v1743
        %1780 = vmatpush1.msra.mxu0 %v1742
        %1781 = vmatprep.subr.mxu0 %v1745
        %1782 = vmatpush1.msra.mxu0 %v1744
        %1783 = vmatprep.subr.mxu0 %v1747
        %1784 = vmatpush1.msra.mxu0 %v1746
        %1785 = vmatprep.subr.mxu0 0.0
        %1786 = vmatpush1.msra.mxu0 0.0
        %1787 = vmatprep.subr.mxu0 0.0
        %1788 = vmatpush1.msra.mxu0 0.0
        %1789 = vmatprep.subr.mxu0 0.0
        %1790 = vmatpush1.msra.mxu0 0.0
        %1791 = vmatprep.subr.mxu0 0.0
        %1792 = vmatpush1.msra.mxu0 0.0
        %1793 = vmatprep.subr.mxu0 0.0
        %1794 = vmatpush1.msra.mxu0 0.0
        %1795 = vmatprep.subr.mxu0 0.0
        %1796 = vmatpush1.msra.mxu0 0.0
        %1797 = vmatprep.subr.mxu0 0.0
        %1798 = vmatpush1.msra.mxu0 0.0
        %1799 = vmatprep.subr.mxu0 0.0
        %1800 = vmatpush1.msra.mxu0 0.0
        %1801 = vmatprep.subr.mxu0 0.0
        %1802 = vmatpush1.msra.mxu0 0.0
        %1803 = vmatprep.subr.mxu0 0.0
        %1804 = vmatpush1.msra.mxu0 0.0
        %1805 = vmatprep.subr.mxu0 0.0
        %1806 = vmatpush1.msra.mxu0 0.0
        %1807 = vmatprep.subr.mxu0 0.0
        %1808 = vmatpush1.msra.mxu0 0.0
        %1809 = vmatprep.subr.mxu0 0.0
        %1810 = vmatpush1.msra.mxu0 0.0
        %1811 = vmatprep.subr.mxu0 0.0
        %1812 = vmatpush1.msra.mxu0 0.0
        %1813 = vmatprep.subr.mxu0 0.0
        %1814 = vmatpush1.msra.mxu0 0.0
        %1815 = vmatprep.subr.mxu0 0.0
        %1816 = vmatpush1.msra.mxu0 0.0
        %1817 = vmatprep.mubr.f32.mxu0 0.0
        %1818 = vmatmul.mubr.f32.gmra.mrb[0].mxu0 %v1750
        %v1819 = vpop.f32.mrb[0].mxu0
        %v1820 = vadd.f32 0.0, %v1819
        %v1821 = vpop.f32.mrb[0].mxu0
        %v1822 = vadd.f32 0.0, %v1821
        %1823 = vmatprep.mubr.f32.mxu0 0.0
        %1824 = vmatmul.mubr.f32.gmra.mrb[0].mxu0 %v1749
        %v1825 = vpop.f32.mrb[0].mxu0
        %v1826 = vadd.f32 0.0, %v1825
        %v1827 = vpop.f32.mrb[0].mxu0
        %v1828 = vadd.f32 0.0, %v1827
        %1829 = vdwg.mxu0
        %v1830 = vadd.f32 %v1711, %v1820
        %v1831 = vadd.f32 %v1712, %v1822
        %v1832 = vadd.f32 %v1713, %v1826
        %v1833 = vadd.f32 %v1714, %v1828
        %v1834 = vld [vmem:[%s4] sm:$0x3]
        %v1836 = vlaneseq
        %v1837 = vshrl.u32 %v1836, 7
        %v1838 = vsub.s32 0, %v1837
        %v1839 = vrot.slane %v1834, %v1838
        %v1840 = vlaneseq
        %v1841 = vshrl.u32 %v1840, 7
        %v1842 = vsub.s32 1, %v1841
        %v1843 = vrot.slane %v1834, %v1842
        %v1846 = vadd.f32 %v1830, %v1839
        %v1847 = vadd.f32 %v1831, %v1843
        %v1848 = vadd.f32 %v1832, %v1839
        %v1849 = vadd.f32 %v1833, %v1843
        %v1850 = vmax.f32 %v1846, 0.0
        %v1851 = vmax.f32 %v1847, 0.0
        %v1852 = vmax.f32 %v1848, 0.0
        %v1853 = vmax.f32 %v1849, 0.0
        %v1854 = vmax.f32 %v1850, %v1851
        %v1855 = vmax.f32 %v1852, %v1853
        %v1858 = vrot.slane %v1854, 1
        %v1859 = vrot.slane %v1855, 1
        %v1860 = vsel %vm487, %v1858, %v1859
        %v1863 = vmax.f32 %v1854, %v1860
        %v1864 = vmax.f32 %v1855, %v1859
        %vm1865 = vcmask 72704
        %v1866 = vsel %vm1865, %v1163, 0
        %vm1868 = vcmask 1040384
        %v1870 = vsel %vm1868, %v1864, 0
        %1872 = vmatprep.subr.mxu0 0.0
        %1873 = vmatpush1.msra.mxu0 %v1863
        %1874 = vmatprep.subr.mxu0 0.0
        %1875 = vmatpush1.msra.mxu0 %v1870
        %1876 = vmatprep.subr.mxu0 0.0
        %1877 = vmatpush1.msra.mxu0 0.0
        %1878 = vmatprep.subr.mxu0 0.0
        %1879 = vmatpush1.msra.mxu0 0.0
        %1880 = vmatprep.subr.mxu0 0.0
        %1881 = vmatpush1.msra.mxu0 0.0
        %1882 = vmatprep.subr.mxu0 0.0
        %1883 = vmatpush1.msra.mxu0 0.0
        %1884 = vmatprep.subr.mxu0 0.0
        %1885 = vmatpush1.msra.mxu0 0.0
        %1886 = vmatprep.subr.mxu0 0.0
        %1887 = vmatpush1.msra.mxu0 0.0
        %1888 = vmatprep.subr.mxu0 0.0
        %1889 = vmatpush1.msra.mxu0 0.0
        %1890 = vmatprep.subr.mxu0 0.0
        %1891 = vmatpush1.msra.mxu0 0.0
        %1892 = vmatprep.subr.mxu0 0.0
        %1893 = vmatpush1.msra.mxu0 0.0
        %1894 = vmatprep.subr.mxu0 0.0
        %1895 = vmatpush1.msra.mxu0 0.0
        %1896 = vmatprep.subr.mxu0 0.0
        %1897 = vmatpush1.msra.mxu0 0.0
        %1898 = vmatprep.subr.mxu0 0.0
        %1899 = vmatpush1.msra.mxu0 0.0
        %1900 = vmatprep.subr.mxu0 0.0
        %1901 = vmatpush1.msra.mxu0 0.0
        %1902 = vmatprep.subr.mxu0 0.0
        %1903 = vmatpush1.msra.mxu0 0.0
        %1904 = vmatprep.subr.mxu0 0.0
        %1905 = vmatpush1.msra.mxu0 0.0
        %1906 = vmatprep.subr.mxu0 0.0
        %1907 = vmatpush1.msra.mxu0 0.0
        %1908 = vmatprep.subr.mxu0 0.0
        %1909 = vmatpush1.msra.mxu0 0.0
        %1910 = vmatprep.subr.mxu0 0.0
        %1911 = vmatpush1.msra.mxu0 0.0
        %1912 = vmatprep.subr.mxu0 0.0
        %1913 = vmatpush1.msra.mxu0 0.0
        %1914 = vmatprep.subr.mxu0 0.0
        %1915 = vmatpush1.msra.mxu0 0.0
        %1916 = vmatprep.subr.mxu0 0.0
        %1917 = vmatpush1.msra.mxu0 0.0
        %1918 = vmatprep.subr.mxu0 0.0
        %1919 = vmatpush1.msra.mxu0 0.0
        %1920 = vmatprep.subr.mxu0 0.0
        %1921 = vmatpush1.msra.mxu0 0.0
        %1922 = vmatprep.subr.mxu0 0.0
        %1923 = vmatpush1.msra.mxu0 0.0
        %1924 = vmatprep.subr.mxu0 0.0
        %1925 = vmatpush1.msra.mxu0 0.0
        %1926 = vmatprep.subr.mxu0 0.0
        %1927 = vmatpush1.msra.mxu0 0.0
        %1928 = vmatprep.subr.mxu0 0.0
        %1929 = vmatpush1.msra.mxu0 0.0
        %1930 = vmatprep.subr.mxu0 0.0
        %1931 = vmatpush1.msra.mxu0 0.0
        %1932 = vmatprep.subr.mxu0 0.0
        %1933 = vmatpush1.msra.mxu0 0.0
        %1934 = vmatprep.subr.mxu0 0.0
        %1935 = vmatpush1.msra.mxu0 0.0
        %1936 = vmatprep.mubr.f32.mxu0 0.0
        %1937 = vmatmul.mubr.f32.gmra.mrb[0].mxu0 %v1866
        %v1938 = vpop.f32.mrb[0].mxu0
        %v1939 = vadd.f32 0.0, %v1938
        %v1940 = vpop.f32.mrb[0].mxu0
        %1941 = vdwg.mxu0
        %v1942 = vld [vmem:[%s5] sm:$0xff]
        %v1943 = vld [vmem:[%s5 + $0x8] sm:$0xff]
        %v1944 = vld [vmem:[%s5 + $0x10] sm:$0xff]
        %v1945 = vld [vmem:[%s5 + $0x18] sm:$0xff]
        %v1946 = vld [vmem:[%s5 + $0x20] sm:$0xff]
        %v1947 = vld [vmem:[%s5 + $0x28] sm:$0xff]
        %v1948 = vld [vmem:[%s5 + $0x30] sm:$0xff]
        %v1949 = vld [vmem:[%s5 + $0x38] sm:$0xff]
        %v1950 = vld [vmem:[%s5 + $0x40] sm:$0xff]
        %v1951 = vld [vmem:[%s5 + $0x48] sm:$0xff]
        %v1952 = vld [vmem:[%s5 + $0x50] sm:$0xff]
        %v1953 = vld [vmem:[%s5 + $0x58] sm:$0xff]
        %v1954 = vld [vmem:[%s5 + $0x60] sm:$0xff]
        %v1955 = vld [vmem:[%s5 + $0x68] sm:$0xff]
        %v1956 = vld [vmem:[%s5 + $0x70] sm:$0xff]
        %v1957 = vld [vmem:[%s5 + $0x78] sm:$0xff]
        %s1958 = scalar_lea.vmem %s5, 128
        %v1959 = vld [vmem:[%s1958] sm:$0xff]
        %v1960 = vld [vmem:[%s1958 + $0x8] sm:$0xff]
        %v1961 = vld [vmem:[%s1958 + $0x10] sm:$0xff]
        %v1962 = vld [vmem:[%s1958 + $0x18] sm:$0xff]
        %v1963 = vld [vmem:[%s1958 + $0x20] sm:$0xff]
        %v1964 = vld [vmem:[%s1958 + $0x28] sm:$0xff]
        %v1965 = vld [vmem:[%s1958 + $0x30] sm:$0xff]
        %v1966 = vld [vmem:[%s1958 + $0x38] sm:$0xff]
        %v1967 = vld [vmem:[%s1958 + $0x40] sm:$0xff]
        %v1968 = vld [vmem:[%s1958 + $0x48] sm:$0xff]
        %v1969 = vld [vmem:[%s1958 + $0x50] sm:$0xff]
        %v1970 = vld [vmem:[%s1958 + $0x58] sm:$0xff]
        %v1971 = vld [vmem:[%s1958 + $0x60] sm:$0xff]
        %v1972 = vld [vmem:[%s1958 + $0x68] sm:$0xff]
        %v1973 = vld [vmem:[%s1958 + $0x70] sm:$0xff]
        %v1974 = vld [vmem:[%s1958 + $0x78] sm:$0xff]
        %v1976 = vrot.slane %v1939, 1
        %1978 = vmatprep.subr.mxu0 0.0
        %1979 = vmatpush1.msra.mxu0 %v1959
        %1980 = vmatprep.subr.mxu0 0.0
        %1981 = vmatpush1.msra.mxu0 %v1960
        %1982 = vmatprep.subr.mxu0 0.0
        %1983 = vmatpush1.msra.mxu0 %v1961
        %1984 = vmatprep.subr.mxu0 0.0
        %1985 = vmatpush1.msra.mxu0 %v1962
        %1986 = vmatprep.subr.mxu0 0.0
        %1987 = vmatpush1.msra.mxu0 %v1963
        %1988 = vmatprep.subr.mxu0 0.0
        %1989 = vmatpush1.msra.mxu0 %v1964
        %1990 = vmatprep.subr.mxu0 0.0
        %1991 = vmatpush1.msra.mxu0 %v1965
        %1992 = vmatprep.subr.mxu0 0.0
        %1993 = vmatpush1.msra.mxu0 %v1966
        %1994 = vmatprep.subr.mxu0 0.0
        %1995 = vmatpush1.msra.mxu0 %v1967
        %1996 = vmatprep.subr.mxu0 0.0
        %1997 = vmatpush1.msra.mxu0 %v1968
        %1998 = vmatprep.subr.mxu0 0.0
        %1999 = vmatpush1.msra.mxu0 %v1969
        %2000 = vmatprep.subr.mxu0 0.0
        %2001 = vmatpush1.msra.mxu0 %v1970
        %2002 = vmatprep.subr.mxu0 0.0
        %2003 = vmatpush1.msra.mxu0 %v1971
        %2004 = vmatprep.subr.mxu0 0.0
        %2005 = vmatpush1.msra.mxu0 %v1972
        %2006 = vmatprep.subr.mxu0 0.0
        %2007 = vmatpush1.msra.mxu0 %v1973
        %2008 = vmatprep.subr.mxu0 0.0
        %2009 = vmatpush1.msra.mxu0 %v1974
        %2010 = vmatprep.subr.mxu0 0.0
        %2011 = vmatpush1.msra.mxu0 0.0
        %2012 = vmatprep.subr.mxu0 0.0
        %2013 = vmatpush1.msra.mxu0 0.0
        %2014 = vmatprep.subr.mxu0 0.0
        %2015 = vmatpush1.msra.mxu0 0.0
        %2016 = vmatprep.subr.mxu0 0.0
        %2017 = vmatpush1.msra.mxu0 0.0
        %2018 = vmatprep.subr.mxu0 0.0
        %2019 = vmatpush1.msra.mxu0 0.0
        %2020 = vmatprep.subr.mxu0 0.0
        %2021 = vmatpush1.msra.mxu0 0.0
        %2022 = vmatprep.subr.mxu0 0.0
        %2023 = vmatpush1.msra.mxu0 0.0
        %2024 = vmatprep.subr.mxu0 0.0
        %2025 = vmatpush1.msra.mxu0 0.0
        %2026 = vmatprep.subr.mxu0 0.0
        %2027 = vmatpush1.msra.mxu0 0.0
        %2028 = vmatprep.subr.mxu0 0.0
        %2029 = vmatpush1.msra.mxu0 0.0
        %2030 = vmatprep.subr.mxu0 0.0
        %2031 = vmatpush1.msra.mxu0 0.0
        %2032 = vmatprep.subr.mxu0 0.0
        %2033 = vmatpush1.msra.mxu0 0.0
        %2034 = vmatprep.subr.mxu0 0.0
        %2035 = vmatpush1.msra.mxu0 0.0
        %2036 = vmatprep.subr.mxu0 0.0
        %2037 = vmatpush1.msra.mxu0 0.0
        %2038 = vmatprep.subr.mxu0 0.0
        %2039 = vmatpush1.msra.mxu0 0.0
        %2040 = vmatprep.subr.mxu0 0.0
        %2041 = vmatpush1.msra.mxu0 0.0
        %2042 = vmatprep.mubr.f32.mxu0 0.0
        %2043 = vmatmul.mubr.f32.gmra.mrb[0].mxu0 %v1976
        %v2044 = vpop.f32.mrb[0].mxu0
        %v2045 = vadd.f32 0.0, %v2044
        %v2046 = vpop.f32.mrb[0].mxu0
        %2047 = vdwg.mxu0
        %2048 = vmatprep.subr.mxu0 0.0
        %2049 = vmatpush1.msra.mxu0 %v1942
        %2050 = vmatprep.subr.mxu0 0.0
        %2051 = vmatpush1.msra.mxu0 %v1943
        %2052 = vmatprep.subr.mxu0 0.0
        %2053 = vmatpush1.msra.mxu0 %v1944
        %2054 = vmatprep.subr.mxu0 0.0
        %2055 = vmatpush1.msra.mxu0 %v1945
        %2056 = vmatprep.subr.mxu0 0.0
        %2057 = vmatpush1.msra.mxu0 %v1946
        %2058 = vmatprep.subr.mxu0 0.0
        %2059 = vmatpush1.msra.mxu0 %v1947
        %2060 = vmatprep.subr.mxu0 0.0
        %2061 = vmatpush1.msra.mxu0 %v1948
        %2062 = vmatprep.subr.mxu0 0.0
        %2063 = vmatpush1.msra.mxu0 %v1949
        %2064 = vmatprep.subr.mxu0 0.0
        %2065 = vmatpush1.msra.mxu0 %v1950
        %2066 = vmatprep.subr.mxu0 0.0
        %2067 = vmatpush1.msra.mxu0 %v1951
        %2068 = vmatprep.subr.mxu0 0.0
        %2069 = vmatpush1.msra.mxu0 %v1952
        %2070 = vmatprep.subr.mxu0 0.0
        %2071 = vmatpush1.msra.mxu0 %v1953
        %2072 = vmatprep.subr.mxu0 0.0
        %2073 = vmatpush1.msra.mxu0 %v1954
        %2074 = vmatprep.subr.mxu0 0.0
        %2075 = vmatpush1.msra.mxu0 %v1955
        %2076 = vmatprep.subr.mxu0 0.0
        %2077 = vmatpush1.msra.mxu0 %v1956
        %2078 = vmatprep.subr.mxu0 0.0
        %2079 = vmatpush1.msra.mxu0 %v1957
        %2080 = vmatprep.subr.mxu0 0.0
        %2081 = vmatpush1.msra.mxu0 0.0
        %2082 = vmatprep.subr.mxu0 0.0
        %2083 = vmatpush1.msra.mxu0 0.0
        %2084 = vmatprep.subr.mxu0 0.0
        %2085 = vmatpush1.msra.mxu0 0.0
        %2086 = vmatprep.subr.mxu0 0.0
        %2087 = vmatpush1.msra.mxu0 0.0
        %2088 = vmatprep.subr.mxu0 0.0
        %2089 = vmatpush1.msra.mxu0 0.0
        %2090 = vmatprep.subr.mxu0 0.0
        %2091 = vmatpush1.msra.mxu0 0.0
        %2092 = vmatprep.subr.mxu0 0.0
        %2093 = vmatpush1.msra.mxu0 0.0
        %2094 = vmatprep.subr.mxu0 0.0
        %2095 = vmatpush1.msra.mxu0 0.0
        %2096 = vmatprep.subr.mxu0 0.0
        %2097 = vmatpush1.msra.mxu0 0.0
        %2098 = vmatprep.subr.mxu0 0.0
        %2099 = vmatpush1.msra.mxu0 0.0
        %2100 = vmatprep.subr.mxu0 0.0
        %2101 = vmatpush1.msra.mxu0 0.0
        %2102 = vmatprep.subr.mxu0 0.0
        %2103 = vmatpush1.msra.mxu0 0.0
        %2104 = vmatprep.subr.mxu0 0.0
        %2105 = vmatpush1.msra.mxu0 0.0
        %2106 = vmatprep.subr.mxu0 0.0
        %2107 = vmatpush1.msra.mxu0 0.0
        %2108 = vmatprep.subr.mxu0 0.0
        %2109 = vmatpush1.msra.mxu0 0.0
        %2110 = vmatprep.subr.mxu0 0.0
        %2111 = vmatpush1.msra.mxu0 0.0
        %2112 = vmatprep.mubr.f32.mxu0 0.0
        %2113 = vmatmul.mubr.f32.gmra.mrb[0].mxu0 %v1939
        %v2114 = vpop.f32.mrb[0].mxu0
        %v2115 = vadd.f32 %v2045, %v2114
        %v2116 = vpop.f32.mrb[0].mxu0
        %2117 = vdwg.mxu0
        %s2118 = scalar_lea.vmem %s5, 256
        %v2119 = vld [vmem:[%s2118] sm:$0xff]
        %v2120 = vld [vmem:[%s2118 + $0x8] sm:$0xff]
        %v2121 = vld [vmem:[%s2118 + $0x10] sm:$0xff]
        %v2122 = vld [vmem:[%s2118 + $0x18] sm:$0xff]
        %v2123 = vld [vmem:[%s2118 + $0x20] sm:$0xff]
        %v2124 = vld [vmem:[%s2118 + $0x28] sm:$0xff]
        %v2125 = vld [vmem:[%s2118 + $0x30] sm:$0xff]
        %v2126 = vld [vmem:[%s2118 + $0x38] sm:$0xff]
        %v2127 = vld [vmem:[%s2118 + $0x40] sm:$0xff]
        %v2128 = vld [vmem:[%s2118 + $0x48] sm:$0xff]
        %v2129 = vld [vmem:[%s2118 + $0x50] sm:$0xff]
        %v2130 = vld [vmem:[%s2118 + $0x58] sm:$0xff]
        %v2131 = vld [vmem:[%s2118 + $0x60] sm:$0xff]
        %v2132 = vld [vmem:[%s2118 + $0x68] sm:$0xff]
        %v2133 = vld [vmem:[%s2118 + $0x70] sm:$0xff]
        %v2134 = vld [vmem:[%s2118 + $0x78] sm:$0xff]
        %v2135 = vrot.slane %v1939, 2
        %2137 = vmatprep.subr.mxu0 0.0
        %2138 = vmatpush1.msra.mxu0 %v2119
        %2139 = vmatprep.subr.mxu0 0.0
        %2140 = vmatpush1.msra.mxu0 %v2120
        %2141 = vmatprep.subr.mxu0 0.0
        %2142 = vmatpush1.msra.mxu0 %v2121
        %2143 = vmatprep.subr.mxu0 0.0
        %2144 = vmatpush1.msra.mxu0 %v2122
        %2145 = vmatprep.subr.mxu0 0.0
        %2146 = vmatpush1.msra.mxu0 %v2123
        %2147 = vmatprep.subr.mxu0 0.0
        %2148 = vmatpush1.msra.mxu0 %v2124
        %2149 = vmatprep.subr.mxu0 0.0
        %2150 = vmatpush1.msra.mxu0 %v2125
        %2151 = vmatprep.subr.mxu0 0.0
        %2152 = vmatpush1.msra.mxu0 %v2126
        %2153 = vmatprep.subr.mxu0 0.0
        %2154 = vmatpush1.msra.mxu0 %v2127
        %2155 = vmatprep.subr.mxu0 0.0
        %2156 = vmatpush1.msra.mxu0 %v2128
        %2157 = vmatprep.subr.mxu0 0.0
        %2158 = vmatpush1.msra.mxu0 %v2129
        %2159 = vmatprep.subr.mxu0 0.0
        %2160 = vmatpush1.msra.mxu0 %v2130
        %2161 = vmatprep.subr.mxu0 0.0
        %2162 = vmatpush1.msra.mxu0 %v2131
        %2163 = vmatprep.subr.mxu0 0.0
        %2164 = vmatpush1.msra.mxu0 %v2132
        %2165 = vmatprep.subr.mxu0 0.0
        %2166 = vmatpush1.msra.mxu0 %v2133
        %2167 = vmatprep.subr.mxu0 0.0
        %2168 = vmatpush1.msra.mxu0 %v2134
        %2169 = vmatprep.subr.mxu0 0.0
        %2170 = vmatpush1.msra.mxu0 0.0
        %2171 = vmatprep.subr.mxu0 0.0
        %2172 = vmatpush1.msra.mxu0 0.0
        %2173 = vmatprep.subr.mxu0 0.0
        %2174 = vmatpush1.msra.mxu0 0.0
        %2175 = vmatprep.subr.mxu0 0.0
        %2176 = vmatpush1.msra.mxu0 0.0
        %2177 = vmatprep.subr.mxu0 0.0
        %2178 = vmatpush1.msra.mxu0 0.0
        %2179 = vmatprep.subr.mxu0 0.0
        %2180 = vmatpush1.msra.mxu0 0.0
        %2181 = vmatprep.subr.mxu0 0.0
        %2182 = vmatpush1.msra.mxu0 0.0
        %2183 = vmatprep.subr.mxu0 0.0
        %2184 = vmatpush1.msra.mxu0 0.0
        %2185 = vmatprep.subr.mxu0 0.0
        %2186 = vmatpush1.msra.mxu0 0.0
        %2187 = vmatprep.subr.mxu0 0.0
        %2188 = vmatpush1.msra.mxu0 0.0
        %2189 = vmatprep.subr.mxu0 0.0
        %2190 = vmatpush1.msra.mxu0 0.0
        %2191 = vmatprep.subr.mxu0 0.0
        %2192 = vmatpush1.msra.mxu0 0.0
        %2193 = vmatprep.subr.mxu0 0.0
        %2194 = vmatpush1.msra.mxu0 0.0
        %2195 = vmatprep.subr.mxu0 0.0
        %2196 = vmatpush1.msra.mxu0 0.0
        %2197 = vmatprep.subr.mxu0 0.0
        %2198 = vmatpush1.msra.mxu0 0.0
        %2199 = vmatprep.subr.mxu0 0.0
        %2200 = vmatpush1.msra.mxu0 0.0
        %2201 = vmatprep.mubr.f32.mxu0 0.0
        %2202 = vmatmul.mubr.f32.gmra.mrb[0].mxu0 %v2135
        %v2203 = vpop.f32.mrb[0].mxu0
        %v2204 = vadd.f32 0.0, %v2203
        %v2205 = vpop.f32.mrb[0].mxu0
        %2206 = vdwg.mxu0
        %v2207 = vadd.f32 %v2115, %v2204
        %s2208 = scalar_lea.vmem %s5, 384
        %v2209 = vld [vmem:[%s2208] sm:$0xff]
        %v2210 = vld [vmem:[%s2208 + $0x8] sm:$0xff]
        %v2211 = vld [vmem:[%s2208 + $0x10] sm:$0xff]
        %v2212 = vld [vmem:[%s2208 + $0x18] sm:$0xff]
        %v2213 = vld [vmem:[%s2208 + $0x20] sm:$0xff]
        %v2214 = vld [vmem:[%s2208 + $0x28] sm:$0xff]
        %v2215 = vld [vmem:[%s2208 + $0x30] sm:$0xff]
        %v2216 = vld [vmem:[%s2208 + $0x38] sm:$0xff]
        %v2217 = vld [vmem:[%s2208 + $0x40] sm:$0xff]
        %v2218 = vld [vmem:[%s2208 + $0x48] sm:$0xff]
        %v2219 = vld [vmem:[%s2208 + $0x50] sm:$0xff]
        %v2220 = vld [vmem:[%s2208 + $0x58] sm:$0xff]
        %v2221 = vld [vmem:[%s2208 + $0x60] sm:$0xff]
        %v2222 = vld [vmem:[%s2208 + $0x68] sm:$0xff]
        %v2223 = vld [vmem:[%s2208 + $0x70] sm:$0xff]
        %v2224 = vld [vmem:[%s2208 + $0x78] sm:$0xff]
        %v2225 = vrot.slane %v1939, 3
        %2227 = vmatprep.subr.mxu0 0.0
        %2228 = vmatpush1.msra.mxu0 %v2209
        %2229 = vmatprep.subr.mxu0 0.0
        %2230 = vmatpush1.msra.mxu0 %v2210
        %2231 = vmatprep.subr.mxu0 0.0
        %2232 = vmatpush1.msra.mxu0 %v2211
        %2233 = vmatprep.subr.mxu0 0.0
        %2234 = vmatpush1.msra.mxu0 %v2212
        %2235 = vmatprep.subr.mxu0 0.0
        %2236 = vmatpush1.msra.mxu0 %v2213
        %2237 = vmatprep.subr.mxu0 0.0
        %2238 = vmatpush1.msra.mxu0 %v2214
        %2239 = vmatprep.subr.mxu0 0.0
        %2240 = vmatpush1.msra.mxu0 %v2215
        %2241 = vmatprep.subr.mxu0 0.0
        %2242 = vmatpush1.msra.mxu0 %v2216
        %2243 = vmatprep.subr.mxu0 0.0
        %2244 = vmatpush1.msra.mxu0 %v2217
        %2245 = vmatprep.subr.mxu0 0.0
        %2246 = vmatpush1.msra.mxu0 %v2218
        %2247 = vmatprep.subr.mxu0 0.0
        %2248 = vmatpush1.msra.mxu0 %v2219
        %2249 = vmatprep.subr.mxu0 0.0
        %2250 = vmatpush1.msra.mxu0 %v2220
        %2251 = vmatprep.subr.mxu0 0.0
        %2252 = vmatpush1.msra.mxu0 %v2221
        %2253 = vmatprep.subr.mxu0 0.0
        %2254 = vmatpush1.msra.mxu0 %v2222
        %2255 = vmatprep.subr.mxu0 0.0
        %2256 = vmatpush1.msra.mxu0 %v2223
        %2257 = vmatprep.subr.mxu0 0.0
        %2258 = vmatpush1.msra.mxu0 %v2224
        %2259 = vmatprep.subr.mxu0 0.0
        %2260 = vmatpush1.msra.mxu0 0.0
        %2261 = vmatprep.subr.mxu0 0.0
        %2262 = vmatpush1.msra.mxu0 0.0
        %2263 = vmatprep.subr.mxu0 0.0
        %2264 = vmatpush1.msra.mxu0 0.0
        %2265 = vmatprep.subr.mxu0 0.0
        %2266 = vmatpush1.msra.mxu0 0.0
        %2267 = vmatprep.subr.mxu0 0.0
        %2268 = vmatpush1.msra.mxu0 0.0
        %2269 = vmatprep.subr.mxu0 0.0
        %2270 = vmatpush1.msra.mxu0 0.0
        %2271 = vmatprep.subr.mxu0 0.0
        %2272 = vmatpush1.msra.mxu0 0.0
        %2273 = vmatprep.subr.mxu0 0.0
        %2274 = vmatpush1.msra.mxu0 0.0
        %2275 = vmatprep.subr.mxu0 0.0
        %2276 = vmatpush1.msra.mxu0 0.0
        %2277 = vmatprep.subr.mxu0 0.0
        %2278 = vmatpush1.msra.mxu0 0.0
        %2279 = vmatprep.subr.mxu0 0.0
        %2280 = vmatpush1.msra.mxu0 0.0
        %2281 = vmatprep.subr.mxu0 0.0
        %2282 = vmatpush1.msra.mxu0 0.0
        %2283 = vmatprep.subr.mxu0 0.0
        %2284 = vmatpush1.msra.mxu0 0.0
        %2285 = vmatprep.subr.mxu0 0.0
        %2286 = vmatpush1.msra.mxu0 0.0
        %2287 = vmatprep.subr.mxu0 0.0
        %2288 = vmatpush1.msra.mxu0 0.0
        %2289 = vmatprep.subr.mxu0 0.0
        %2290 = vmatpush1.msra.mxu0 0.0
        %2291 = vmatprep.mubr.f32.mxu0 0.0
        %2292 = vmatmul.mubr.f32.gmra.mrb[0].mxu0 %v2225
        %v2293 = vpop.f32.mrb[0].mxu0
        %v2294 = vadd.f32 0.0, %v2293
        %v2295 = vpop.f32.mrb[0].mxu0
        %2296 = vdwg.mxu0
        %v2297 = vadd.f32 %v2207, %v2294
        %s2298 = scalar_lea.vmem %s5, 512
        %v2299 = vld [vmem:[%s2298] sm:$0xff]
        %v2300 = vld [vmem:[%s2298 + $0x8] sm:$0xff]
        %v2301 = vld [vmem:[%s2298 + $0x10] sm:$0xff]
        %v2302 = vld [vmem:[%s2298 + $0x18] sm:$0xff]
        %v2303 = vld [vmem:[%s2298 + $0x20] sm:$0xff]
        %v2304 = vld [vmem:[%s2298 + $0x28] sm:$0xff]
        %v2305 = vld [vmem:[%s2298 + $0x30] sm:$0xff]
        %v2306 = vld [vmem:[%s2298 + $0x38] sm:$0xff]
        %v2307 = vld [vmem:[%s2298 + $0x40] sm:$0xff]
        %v2308 = vld [vmem:[%s2298 + $0x48] sm:$0xff]
        %v2309 = vld [vmem:[%s2298 + $0x50] sm:$0xff]
        %v2310 = vld [vmem:[%s2298 + $0x58] sm:$0xff]
        %v2311 = vld [vmem:[%s2298 + $0x60] sm:$0xff]
        %v2312 = vld [vmem:[%s2298 + $0x68] sm:$0xff]
        %v2313 = vld [vmem:[%s2298 + $0x70] sm:$0xff]
        %v2314 = vld [vmem:[%s2298 + $0x78] sm:$0xff]
        %v2315 = vrot.slane %v1939, 4
        %2317 = vmatprep.subr.mxu0 0.0
        %2318 = vmatpush1.msra.mxu0 %v2299
        %2319 = vmatprep.subr.mxu0 0.0
        %2320 = vmatpush1.msra.mxu0 %v2300
        %2321 = vmatprep.subr.mxu0 0.0
        %2322 = vmatpush1.msra.mxu0 %v2301
        %2323 = vmatprep.subr.mxu0 0.0
        %2324 = vmatpush1.msra.mxu0 %v2302
        %2325 = vmatprep.subr.mxu0 0.0
        %2326 = vmatpush1.msra.mxu0 %v2303
        %2327 = vmatprep.subr.mxu0 0.0
        %2328 = vmatpush1.msra.mxu0 %v2304
        %2329 = vmatprep.subr.mxu0 0.0
        %2330 = vmatpush1.msra.mxu0 %v2305
        %2331 = vmatprep.subr.mxu0 0.0
        %2332 = vmatpush1.msra.mxu0 %v2306
        %2333 = vmatprep.subr.mxu0 0.0
        %2334 = vmatpush1.msra.mxu0 %v2307
        %2335 = vmatprep.subr.mxu0 0.0
        %2336 = vmatpush1.msra.mxu0 %v2308
        %2337 = vmatprep.subr.mxu0 0.0
        %2338 = vmatpush1.msra.mxu0 %v2309
        %2339 = vmatprep.subr.mxu0 0.0
        %2340 = vmatpush1.msra.mxu0 %v2310
        %2341 = vmatprep.subr.mxu0 0.0
        %2342 = vmatpush1.msra.mxu0 %v2311
        %2343 = vmatprep.subr.mxu0 0.0
        %2344 = vmatpush1.msra.mxu0 %v2312
        %2345 = vmatprep.subr.mxu0 0.0
        %2346 = vmatpush1.msra.mxu0 %v2313
        %2347 = vmatprep.subr.mxu0 0.0
        %2348 = vmatpush1.msra.mxu0 %v2314
        %2349 = vmatprep.subr.mxu0 0.0
        %2350 = vmatpush1.msra.mxu0 0.0
        %2351 = vmatprep.subr.mxu0 0.0
        %2352 = vmatpush1.msra.mxu0 0.0
        %2353 = vmatprep.subr.mxu0 0.0
        %2354 = vmatpush1.msra.mxu0 0.0
        %2355 = vmatprep.subr.mxu0 0.0
        %2356 = vmatpush1.msra.mxu0 0.0
        %2357 = vmatprep.subr.mxu0 0.0
        %2358 = vmatpush1.msra.mxu0 0.0
        %2359 = vmatprep.subr.mxu0 0.0
        %2360 = vmatpush1.msra.mxu0 0.0
        %2361 = vmatprep.subr.mxu0 0.0
        %2362 = vmatpush1.msra.mxu0 0.0
        %2363 = vmatprep.subr.mxu0 0.0
        %2364 = vmatpush1.msra.mxu0 0.0
        %2365 = vmatprep.subr.mxu0 0.0
        %2366 = vmatpush1.msra.mxu0 0.0
        %2367 = vmatprep.subr.mxu0 0.0
        %2368 = vmatpush1.msra.mxu0 0.0
        %2369 = vmatprep.subr.mxu0 0.0
        %2370 = vmatpush1.msra.mxu0 0.0
        %2371 = vmatprep.subr.mxu0 0.0
        %2372 = vmatpush1.msra.mxu0 0.0
        %2373 = vmatprep.subr.mxu0 0.0
        %2374 = vmatpush1.msra.mxu0 0.0
        %2375 = vmatprep.subr.mxu0 0.0
        %2376 = vmatpush1.msra.mxu0 0.0
        %2377 = vmatprep.subr.mxu0 0.0
        %2378 = vmatpush1.msra.mxu0 0.0
        %2379 = vmatprep.subr.mxu0 0.0
        %2380 = vmatpush1.msra.mxu0 0.0
        %2381 = vmatprep.mubr.f32.mxu0 0.0
        %2382 = vmatmul.mubr.f32.gmra.mrb[0].mxu0 %v2315
        %v2383 = vpop.f32.mrb[0].mxu0
        %v2384 = vadd.f32 0.0, %v2383
        %v2385 = vpop.f32.mrb[0].mxu0
        %2386 = vdwg.mxu0
        %v2387 = vadd.f32 %v2297, %v2384
        %v2388 = vld [vmem:[%s6] sm:$0x1]
        %v2389 = vadd.f32 %v2387, %v2388
        %v2390 = vmax.f32 %v2389, 0.0
        %v2391 = vld [vmem:[%s7] sm:$0xff]
        %v2392 = vld [vmem:[%s7 + $0x8] sm:$0xff]
        %v2393 = vld [vmem:[%s7 + $0x10] sm:$0xff]
        %v2394 = vld [vmem:[%s7 + $0x18] sm:$0xff]
        %v2395 = vld [vmem:[%s7 + $0x20] sm:$0xff]
        %v2396 = vld [vmem:[%s7 + $0x28] sm:$0xff]
        %v2397 = vld [vmem:[%s7 + $0x30] sm:$0xff]
        %v2398 = vld [vmem:[%s7 + $0x38] sm:$0xff]
        %v2399 = vld [vmem:[%s7 + $0x40] sm:$0xff]
        %v2400 = vld [vmem:[%s7 + $0x48] sm:$0xff]
        %v2401 = vld [vmem:[%s7 + $0x50] sm:$0xff]
        %v2402 = vld [vmem:[%s7 + $0x58] sm:$0xff]
        %v2403 = vld [vmem:[%s7 + $0x60] sm:$0xff]
        %v2404 = vld [vmem:[%s7 + $0x68] sm:$0xff]
        %v2405 = vld [vmem:[%s7 + $0x70] sm:$0xff]
        %v2406 = vld [vmem:[%s7 + $0x78] sm:$0xff]
        %v2407 = vld [vmem:[%s8] sm:$0x1]
        %2408 = vmatprep.subr.mxu0 0.0
        %2409 = vmatpush1.msra.mxu0 %v2391
        %2410 = vmatprep.subr.mxu0 0.0
        %2411 = vmatpush1.msra.mxu0 %v2392
        %2412 = vmatprep.subr.mxu0 0.0
        %2413 = vmatpush1.msra.mxu0 %v2393
        %2414 = vmatprep.subr.mxu0 0.0
        %2415 = vmatpush1.msra.mxu0 %v2394
        %2416 = vmatprep.subr.mxu0 0.0
        %2417 = vmatpush1.msra.mxu0 %v2395
        %2418 = vmatprep.subr.mxu0 0.0
        %2419 = vmatpush1.msra.mxu0 %v2396
        %2420 = vmatprep.subr.mxu0 0.0
        %2421 = vmatpush1.msra.mxu0 %v2397
        %2422 = vmatprep.subr.mxu0 0.0
        %2423 = vmatpush1.msra.mxu0 %v2398
        %2424 = vmatprep.subr.mxu0 0.0
        %2425 = vmatpush1.msra.mxu0 %v2399
        %2426 = vmatprep.subr.mxu0 0.0
        %2427 = vmatpush1.msra.mxu0 %v2400
        %2428 = vmatprep.subr.mxu0 0.0
        %2429 = vmatpush1.msra.mxu0 %v2401
        %2430 = vmatprep.subr.mxu0 0.0
        %2431 = vmatpush1.msra.mxu0 %v2402
        %2432 = vmatprep.subr.mxu0 0.0
        %2433 = vmatpush1.msra.mxu0 %v2403
        %2434 = vmatprep.subr.mxu0 0.0
        %2435 = vmatpush1.msra.mxu0 %v2404
        %2436 = vmatprep.subr.mxu0 0.0
        %2437 = vmatpush1.msra.mxu0 %v2405
        %2438 = vmatprep.subr.mxu0 0.0
        %2439 = vmatpush1.msra.mxu0 %v2406
        %2440 = vmatprep.subr.mxu0 0.0
        %2441 = vmatpush1.msra.mxu0 0.0
        %2442 = vmatprep.subr.mxu0 0.0
        %2443 = vmatpush1.msra.mxu0 0.0
        %2444 = vmatprep.subr.mxu0 0.0
        %2445 = vmatpush1.msra.mxu0 0.0
        %2446 = vmatprep.subr.mxu0 0.0
        %2447 = vmatpush1.msra.mxu0 0.0
        %2448 = vmatprep.subr.mxu0 0.0
        %2449 = vmatpush1.msra.mxu0 0.0
        %2450 = vmatprep.subr.mxu0 0.0
        %2451 = vmatpush1.msra.mxu0 0.0
        %2452 = vmatprep.subr.mxu0 0.0
        %2453 = vmatpush1.msra.mxu0 0.0
        %2454 = vmatprep.subr.mxu0 0.0
        %2455 = vmatpush1.msra.mxu0 0.0
        %2456 = vmatprep.subr.mxu0 0.0
        %2457 = vmatpush1.msra.mxu0 0.0
        %2458 = vmatprep.subr.mxu0 0.0
        %2459 = vmatpush1.msra.mxu0 0.0
        %2460 = vmatprep.subr.mxu0 0.0
        %2461 = vmatpush1.msra.mxu0 0.0
        %2462 = vmatprep.subr.mxu0 0.0
        %2463 = vmatpush1.msra.mxu0 0.0
        %2464 = vmatprep.subr.mxu0 0.0
        %2465 = vmatpush1.msra.mxu0 0.0
        %2466 = vmatprep.subr.mxu0 0.0
        %2467 = vmatpush1.msra.mxu0 0.0
        %2468 = vmatprep.subr.mxu0 0.0
        %2469 = vmatpush1.msra.mxu0 0.0
        %2470 = vmatprep.subr.mxu0 0.0
        %2471 = vmatpush1.msra.mxu0 0.0
        %2472 = vmatprep.mubr.f32.mxu0 0.0
        %2473 = vmatmul.mubr.f32.gmra.mrb[0].mxu0 %v2390
        %v2474 = vpop.f32.mrb[0].mxu0
        %v2475 = vadd.f32 %v2407, %v2474
        %v2476 = vpop.f32.mrb[0].mxu0
        %2477 = vdwg.mxu0
        %v2478 = vmax.f32 %v2475, 0.0
        %v2479 = vld [vmem:[%s9] sm:$0xff]
        %v2480 = vld [vmem:[%s9 + $0x8] sm:$0xff]
        %v2481 = vld [vmem:[%s9 + $0x10] sm:$0xff]
        %v2482 = vld [vmem:[%s9 + $0x18] sm:$0xff]
        %v2483 = vld [vmem:[%s9 + $0x20] sm:$0xff]
        %v2484 = vld [vmem:[%s9 + $0x28] sm:$0xff]
        %v2485 = vld [vmem:[%s9 + $0x30] sm:$0xff]
        %v2486 = vld [vmem:[%s9 + $0x38] sm:$0xff]
        %v2487 = vld [vmem:[%s9 + $0x40] sm:$0xff]
        %v2488 = vld [vmem:[%s9 + $0x48] sm:$0xff]
        %v2489 = vld [vmem:[%s9 + $0x50] sm:$0xff]
        %v2490 = vld [vmem:[%s9 + $0x58] sm:$0xff]
        %v2491 = vld [vmem:[%s9 + $0x60] sm:$0xff]
        %v2492 = vld [vmem:[%s9 + $0x68] sm:$0xff]
        %v2493 = vld [vmem:[%s9 + $0x70] sm:$0xff]
        %v2494 = vld [vmem:[%s9 + $0x78] sm:$0xff]
        %v2495 = vld [vmem:[%s10] sm:$0x1]
        %2496 = vmatprep.subr.mxu0 0.0
        %2497 = vmatpush1.msra.mxu0 %v2479
        %2498 = vmatprep.subr.mxu0 0.0
        %2499 = vmatpush1.msra.mxu0 %v2480
        %2500 = vmatprep.subr.mxu0 0.0
        %2501 = vmatpush1.msra.mxu0 %v2481
        %2502 = vmatprep.subr.mxu0 0.0
        %2503 = vmatpush1.msra.mxu0 %v2482
        %2504 = vmatprep.subr.mxu0 0.0
        %2505 = vmatpush1.msra.mxu0 %v2483
        %2506 = vmatprep.subr.mxu0 0.0
        %2507 = vmatpush1.msra.mxu0 %v2484
        %2508 = vmatprep.subr.mxu0 0.0
        %2509 = vmatpush1.msra.mxu0 %v2485
        %2510 = vmatprep.subr.mxu0 0.0
        %2511 = vmatpush1.msra.mxu0 %v2486
        %2512 = vmatprep.subr.mxu0 0.0
        %2513 = vmatpush1.msra.mxu0 %v2487
        %2514 = vmatprep.subr.mxu0 0.0
        %2515 = vmatpush1.msra.mxu0 %v2488
        %2516 = vmatprep.subr.mxu0 0.0
        %2517 = vmatpush1.msra.mxu0 %v2489
        %2518 = vmatprep.subr.mxu0 0.0
        %2519 = vmatpush1.msra.mxu0 %v2490
        %2520 = vmatprep.subr.mxu0 0.0
        %2521 = vmatpush1.msra.mxu0 %v2491
        %2522 = vmatprep.subr.mxu0 0.0
        %2523 = vmatpush1.msra.mxu0 %v2492
        %2524 = vmatprep.subr.mxu0 0.0
        %2525 = vmatpush1.msra.mxu0 %v2493
        %2526 = vmatprep.subr.mxu0 0.0
        %2527 = vmatpush1.msra.mxu0 %v2494
        %2528 = vmatprep.subr.mxu0 0.0
        %2529 = vmatpush1.msra.mxu0 0.0
        %2530 = vmatprep.subr.mxu0 0.0
        %2531 = vmatpush1.msra.mxu0 0.0
        %2532 = vmatprep.subr.mxu0 0.0
        %2533 = vmatpush1.msra.mxu0 0.0
        %2534 = vmatprep.subr.mxu0 0.0
        %2535 = vmatpush1.msra.mxu0 0.0
        %2536 = vmatprep.subr.mxu0 0.0
        %2537 = vmatpush1.msra.mxu0 0.0
        %2538 = vmatprep.subr.mxu0 0.0
        %2539 = vmatpush1.msra.mxu0 0.0
        %2540 = vmatprep.subr.mxu0 0.0
        %2541 = vmatpush1.msra.mxu0 0.0
        %2542 = vmatprep.subr.mxu0 0.0
        %2543 = vmatpush1.msra.mxu0 0.0
        %2544 = vmatprep.subr.mxu0 0.0
        %2545 = vmatpush1.msra.mxu0 0.0
        %2546 = vmatprep.subr.mxu0 0.0
        %2547 = vmatpush1.msra.mxu0 0.0
        %2548 = vmatprep.subr.mxu0 0.0
        %2549 = vmatpush1.msra.mxu0 0.0
        %2550 = vmatprep.subr.mxu0 0.0
        %2551 = vmatpush1.msra.mxu0 0.0
        %2552 = vmatprep.subr.mxu0 0.0
        %2553 = vmatpush1.msra.mxu0 0.0
        %2554 = vmatprep.subr.mxu0 0.0
        %2555 = vmatpush1.msra.mxu0 0.0
        %2556 = vmatprep.subr.mxu0 0.0
        %2557 = vmatpush1.msra.mxu0 0.0
        %2558 = vmatprep.subr.mxu0 0.0
        %2559 = vmatpush1.msra.mxu0 0.0
        %2560 = vmatprep.mubr.f32.mxu0 0.0
        %2561 = vmatmul.mubr.f32.gmra.mrb[0].mxu0 %v2478
        %v2562 = vpop.f32.mrb[0].mxu0
        %v2563 = vadd.f32 %v2495, %v2562
        %v2564 = vpop.f32.mrb[0].mxu0
        %2565 = vdwg.mxu0
        %2566 = vst [vmem:[%s408] sm:$0x1] %v2563
        %s2567 = sand.u32 %s271, 1
        %s2568 = scalar_lea.sflag [#allocation4], %s2567
        %s2569 = sand.u32 %s271, 1
        %s2570 = scalar_lea.vmem [#allocation7], %s2569
        // Predicated region
        $region73: #{convnet_forward.1} parent=63 // pred_check
          %p2571 = pneg %p281
        $region74: #{convnet_forward.1} parent=63 // pred_check_branch
          %2573 = sbr.rel (%p2571) target = $region76
        $region75: #{convnet_forward.1} parent=63 // pred_region
          %s2575 = ssub.s32 16, 16
          %2576 = vsyncadd %s2568, %s2575
          %s2577 = smul.addr %s27, 16
          %s2578 = scalar_lea.hbm %s11, %s2577
          %s2580 = sshll.u32 %s2570, 4
          %s2581 = int_to_ptr.vmem [resolvable:$true] %s2580
          %2583 = dma.vmem_to_hbm [thread:$0]  %s2581, 16, %s2578, %s2568
        $region76: #{convnet_forward.1} parent=63 // pred_fallthru
          _
      $region64: #{convnet_forward.1} parent=5 // pred_fallthru
        _
      %p2584 = scmp.le.s32.totalorder 2, %s22
      // Predicated region
      $region77: #{convnet_forward.1} parent=5 // pred_check
        %p2585 = pneg %p2584
      $region78: #{convnet_forward.1} parent=5 // pred_check_branch
        %2587 = sbr.rel (%p2585) target = $region80
      $region79: #{convnet_forward.1} parent=5 // pred_region
        %s2588 = ssub.s32 %s22, 2
        // Predicated region
        $region81: #{convnet_forward.1} parent=79 // pred_check
          %p2589 = pneg %p287
        $region82: #{convnet_forward.1} parent=79 // pred_check_branch
          %2591 = sbr.rel (%p2589) target = $region84
        $region83: #{convnet_forward.1} parent=79 // pred_region
          %s2592 = sand.u32 %s272, 1
          %s2593 = scalar_lea.sflag [#allocation4], %s2592
          %s2594 = sand.u32 %s272, 1
          %s2595 = scalar_lea.vmem [#allocation7], %s2594
          %2596 = dma.done %s2593, 16
        $region84: #{convnet_forward.1} parent=79 // pred_fallthru
          _
      $region80: #{convnet_forward.1} parent=5 // pred_fallthru
        _
    $region6: #{convnet_forward.1} parent=1 // loop_footer
      %s26 = sadd.s32 1, %s22
    $region7: #{convnet_forward.1} parent=1 // loop_footer_branch
      %21 = sbr.rel target = $region3
    $region8: #{convnet_forward.1} parent=1 // loop_exit
      _
    %2597 = vsyncpa [#allocation3], 1
    %s2598 = scalar_lea.sflag [#allocation3], 1
    %2599 = vsyncpa %s2598, 1
    %2600 = vsyncpa [#allocation6], 1
    %2601 = vsyncpa [#allocation4], 1
    %s2602 = scalar_lea.sflag [#allocation4], 1
    %2603 = vsyncpa %s2602, 1

</llo_original>
